<compile_context>
chip_gen: v7x
topology: tpu7x:2x2x1
jax: 0.10.0
libtpu: 0.0.40
codegen_flags: <defaults>
</compile_context>

<pallas_src>
import functools

import jax
import jax.numpy as jnp
from jax.experimental import pallas as pl
from jax.experimental.pallas import tpu as pltpu

STEM_CH = 32      # stem conv output channels
FEAT_DIM = 1792   # conv_head / pooled feature width (lane-dense, 14 * 128)
OUT_PAD = 128     # pad out_dim up to one full lane width for dense stores


# ----------------------------------------------------------------------------
# Fused Pallas kernel: stem matmul + SiLU -> head matmul + SiLU -> avg-pool
# accumulation -> (last step) dense head.  Grid = (batch, spatial_tiles).
# ----------------------------------------------------------------------------
def _fused_backbone_pool_dense_kernel(
    patches_ref,   # (1, tile_s, KPAD)   bf16
    stem_w_ref,    # (KPAD, STEM_CH)     bf16
    stem_b_ref,    # (1, STEM_CH)        f32
    head_w_ref,    # (STEM_CH, FEAT_DIM) bf16
    head_b_ref,    # (1, FEAT_DIM)       f32
    dense_w_ref,   # (FEAT_DIM, OUT_PAD) f32
    dense_b_ref,   # (1, OUT_PAD)        f32
    out_ref,       # (1, 1, OUT_PAD)     f32
    acc_ref,       # VMEM scratch (1, FEAT_DIM) f32 — running spatial sum
    *,
    inv_s,
):
    s = pl.program_id(1)

    @pl.when(s == 0)
    def _():
        acc_ref[...] = jnp.zeros_like(acc_ref)

    x = patches_ref[0]  # (tile_s, KPAD) bf16

    # stem 3x3/s2 conv as matmul (BN folded) + SiLU; stays in vregs/VMEM.
    stem = jnp.dot(x, stem_w_ref[...], preferred_element_type=jnp.float32)
    stem = stem + stem_b_ref[...]
    stem = stem * jax.nn.sigmoid(stem)          # SiLU (sigmoid -> EUP slot)

    # 1x1 conv_head to 1792 channels + SiLU; never written to HBM.
    feats = jnp.dot(stem.astype(jnp.bfloat16), head_w_ref[...],
                    preferred_element_type=jnp.float32)
    feats = feats + head_b_ref[...]
    feats = feats * jax.nn.sigmoid(feats)       # (tile_s, FEAT_DIM) f32

    # adaptive_avg_pool2d accumulation: running sum over spatial rows.
    acc_ref[...] += jnp.sum(feats, axis=0, keepdims=True)

    @pl.when(s == pl.num_programs(1) - 1)
    def _():
        pooled = acc_ref[...] * inv_s           # mean over H'*W'  -> (1, FEAT_DIM)
        y = jnp.dot(pooled, dense_w_ref[...],
                    preferred_element_type=jnp.float32) + dense_b_ref[...]
        out_ref[...] = y[None, :, :]            # (1, 1, OUT_PAD), lane-dense


# ----------------------------------------------------------------------------
# JAX glue
# ----------------------------------------------------------------------------
def im2col_3x3_s2(x_nhwc):
    """3x3 / stride-2 / pad-1 patch extraction -> (N, Ho*Wo, 9*C)."""
    N, H, W, C = x_nhwc.shape
    Ho = (H - 1) // 2 + 1          # PyTorch conv output formula (handles odd H/W)
    Wo = (W - 1) // 2 + 1
    xp = jnp.pad(x_nhwc, ((0, 0), (1, 1), (1, 1), (0, 0)))
    cols = []
    for kh in range(3):
        for kw in range(3):
            cols.append(xp[:, kh:kh + 2 * Ho:2, kw:kw + 2 * Wo:2, :])
    patches = jnp.concatenate(cols, axis=-1)    # (N, Ho, Wo, 9*C)
    return patches.reshape(N, Ho * Wo, 9 * C), (N, Ho, Wo)


def _pick_spatial_tile(s, max_tile=512):
    """Largest multiple-of-8 divisor of s that is <= max_tile."""
    upper = min(max_tile, s)
    upper -= upper % 8
    for t in range(upper, 7, -8):
        if s % t == 0:
            return t
    return s  # tiny/odd spatial extents: full-extent block is always legal


def init_params(key, in_chans=3, stem_ch=STEM_CH, feat_dim=FEAT_DIM, out_dim=1):
    """Deterministic synthetic parameters (BN folded into conv weights/biases)."""
    k = jax.random.split(key, 6)
    return {
        "stem_w": 0.10 * jax.random.normal(k[0], (9 * in_chans, stem_ch), jnp.float32),
        "stem_b": 0.01 * jax.random.normal(k[1], (1, stem_ch), jnp.float32),
        "head_w": 0.05 * jax.random.normal(k[2], (stem_ch, feat_dim), jnp.float32),
        "head_b": 0.01 * jax.random.normal(k[3], (1, feat_dim), jnp.float32),
        "dense_w": 0.02 * jax.random.normal(k[4], (feat_dim, out_dim), jnp.float32),
        "dense_b": 0.01 * jax.random.normal(k[5], (1, out_dim), jnp.float32),
    }


def efficientnet_forward(params, x_nchw, meta=None, verbose=False):
    """Mirrors EfficientNet.forward(x, meta); `meta` is accepted but unused,
    exactly as in the PyTorch module."""
    x = x_nchw.astype(jnp.float32)            # x.float()
    x = jnp.transpose(x, (0, 2, 3, 1))        # NCHW -> NHWC (channels on lanes)

    patches, (N, Ho, Wo) = im2col_3x3_s2(x)   # (N, S, 27)
    S = Ho * Wo
    k_raw = patches.shape[-1]
    kpad = max(8, ((k_raw + 7) // 8) * 8)     # 27 -> 32 (MXU/sublane friendly)

    # bf16 operands for the MXU; zero-pad the contraction dim.
    patches = jnp.pad(patches, ((0, 0), (0, 0), (0, kpad - k_raw))).astype(jnp.bfloat16)
    stem_w = jnp.pad(params["stem_w"], ((0, kpad - k_raw), (0, 0))).astype(jnp.bfloat16)
    stem_b = params["stem_b"].astype(jnp.float32)
    head_w = params["head_w"].astype(jnp.bfloat16)
    head_b = params["head_b"].astype(jnp.float32)

    out_dim = params["dense_w"].shape[1]
    assert out_dim <= OUT_PAD
    dense_w = jnp.pad(params["dense_w"], ((0, 0), (0, OUT_PAD - out_dim))).astype(jnp.float32)
    dense_b = jnp.pad(params["dense_b"], ((0, 0), (0, OUT_PAD - out_dim))).astype(jnp.float32)

    tile_s = _pick_spatial_tile(S)
    n_s_tiles = S // tile_s
    feat_dim = head_w.shape[1]
    stem_ch = head_w.shape[0]

    kern = functools.partial(_fused_backbone_pool_dense_kernel, inv_s=1.0 / S)

    out = pl.pallas_call(
        kern,
        out_shape=jax.ShapeDtypeStruct((N, 1, OUT_PAD), jnp.float32),
        grid_spec=pltpu.PrefetchScalarGridSpec(
            num_scalar_prefetch=0,
            grid=(N, n_s_tiles),
            in_specs=[
                pl.BlockSpec((1, tile_s, kpad), lambda n, s: (n, s, 0)),
                pl.BlockSpec((kpad, stem_ch), lambda n, s: (0, 0)),
                pl.BlockSpec((1, stem_ch), lambda n, s: (0, 0)),
                pl.BlockSpec((stem_ch, feat_dim), lambda n, s: (0, 0)),
                pl.BlockSpec((1, feat_dim), lambda n, s: (0, 0)),
                pl.BlockSpec((feat_dim, OUT_PAD), lambda n, s: (0, 0)),
                pl.BlockSpec((1, OUT_PAD), lambda n, s: (0, 0)),
            ],
            out_specs=pl.BlockSpec((1, 1, OUT_PAD), lambda n, s: (n, 0, 0)),
            scratch_shapes=[pltpu.VMEM((1, feat_dim), jnp.float32)],
        ),
        compiler_params=pltpu.CompilerParams(
            dimension_semantics=("parallel", "arbitrary"),
            vmem_limit_bytes=48 * 1024 * 1024,   # safe on v5e/v6e (128 MiB) & v7x (64 MiB)
        ),
    )(patches, stem_w, stem_b, head_w, head_b, dense_w, dense_b)

    out = out.reshape(N, OUT_PAD)[:, :out_dim]   # strip lane padding -> (N, out_dim)
    return out.reshape(-1)                        # torch: x.reshape(-1)


if __name__ == "__main__":
    key = jax.random.PRNGKey(0)
    kx, km, kp = jax.random.split(key, 3)

    # small shapes consistent with the module: batch=2, 3 input channels, 16x16
    x = jax.random.normal(kx, (2, 3, 16, 16), jnp.float32)
    meta = jax.random.normal(km, (2, 4), jnp.float32)  # unused by forward, as in torch
    params = init_params(kp, out_dim=1)

    fwd = jax.jit(efficientnet_forward)
    y = fwd(params, x, meta)
    jax.block_until_ready(y)

    assert y.shape == (2,), y.shape
    assert y.dtype == jnp.float32
    print("KERNEL_OK")
</pallas_src>

<mosaic_0001>
module attributes {stable_mosaic.version = 11 : i64} {
  func.func @_fused_backbone_pool_dense_kernel(%arg0: i32, %arg1: i32, %arg2: memref<1x64x32xbf16, #tpu.memory_space<vmem>>, %arg3: memref<32x32xbf16, #tpu.memory_space<vmem>>, %arg4: memref<1x32xf32, #tpu.memory_space<vmem>>, %arg5: memref<32x1792xbf16, #tpu.memory_space<vmem>>, %arg6: memref<1x1792xf32, #tpu.memory_space<vmem>>, %arg7: memref<1792x128xf32, #tpu.memory_space<vmem>>, %arg8: memref<1x128xf32, #tpu.memory_space<vmem>>, %arg9: memref<1x1x128xf32, #tpu.memory_space<vmem>>, %arg10: memref<1x1792xf32, #tpu.memory_space<vmem>>) attributes {dimension_semantics = [#tpu.dimension_semantics<parallel>, #tpu.dimension_semantics<arbitrary>], iteration_bounds = array<i64: 2, 1>, scalar_prefetch = 0 : i64, scratch_operands = 1 : i64, tpu.core_type = #tpu.core_type<tc>, window_params = [{transform_indices = @transform_0, window_bounds = array<i64: 1, 64, 32>}, {pipeline_mode = #tpu.pipeline_mode<synchronous>, transform_indices = @transform_1, window_bounds = array<i64: 32, 32>}, {pipeline_mode = #tpu.pipeline_mode<synchronous>, transform_indices = @transform_2, window_bounds = array<i64: 1, 32>}, {pipeline_mode = #tpu.pipeline_mode<synchronous>, transform_indices = @transform_3, window_bounds = array<i64: 32, 1792>}, {pipeline_mode = #tpu.pipeline_mode<synchronous>, transform_indices = @transform_4, window_bounds = array<i64: 1, 1792>}, {pipeline_mode = #tpu.pipeline_mode<synchronous>, transform_indices = @transform_5, window_bounds = array<i64: 1792, 128>}, {pipeline_mode = #tpu.pipeline_mode<synchronous>, transform_indices = @transform_6, window_bounds = array<i64: 1, 128>}, {transform_indices = @transform_7, window_bounds = array<i64: 1, 1, 128>}]} {
    %c0_i32 = arith.constant 0 : i32
    %0 = arith.cmpi eq, %arg1, %c0_i32 : i32
    %1 = arith.extui %0 : i1 to i32
    %c0_i32_0 = arith.constant 0 : i32
    %2 = arith.cmpi ne, %1, %c0_i32_0 : i32
    scf.if %2 {
      %cst_21 = arith.constant 0.000000e+00 : f32
      %36 = vector.broadcast %cst_21 : f32 to vector<1x1792xf32>
      %c0_22 = arith.constant 0 : index
      %c0_23 = arith.constant 0 : index
      %37 = vector.load %arg10[%c0_22, %c0_23] : memref<1x1792xf32, #tpu.memory_space<vmem>>, vector<1x1792xf32>
      tpu.vector_store %arg10[%c0_22, %c0_23], %36 {strides = array<i32>} : memref<1x1792xf32, #tpu.memory_space<vmem>>, vector<1x1792xf32>,
    } else {
    }
    %c0 = arith.constant 0 : index
    %c0_1 = arith.constant 0 : index
    %c0_2 = arith.constant 0 : index
    %3 = vector.load %arg2[%c0, %c0_1, %c0_2] : memref<1x64x32xbf16, #tpu.memory_space<vmem>>, vector<1x64x32xbf16>
    %4 = vector.shape_cast %3 : vector<1x64x32xbf16> to vector<64x32xbf16>
    %c0_3 = arith.constant 0 : index
    %c0_4 = arith.constant 0 : index
    %5 = vector.load %arg3[%c0_3, %c0_4] : memref<32x32xbf16, #tpu.memory_space<vmem>>, vector<32x32xbf16>
    %cst = arith.constant dense<0.000000e+00> : vector<64x32xf32>
    %6 = tpu.matmul %4, %5, %cst {dimension_numbers = #tpu.dot_dimension_numbers<[1], [0], [0], [1], [0, 0, 1, 1], [], []>} : vector<64x32xbf16>, vector<32x32xbf16>, vector<64x32xf32> -> vector<64x32xf32>
    %c0_5 = arith.constant 0 : index
    %c0_6 = arith.constant 0 : index
    %7 = vector.load %arg4[%c0_5, %c0_6] : memref<1x32xf32, #tpu.memory_space<vmem>>, vector<1x32xf32>
    %8 = vector.broadcast %7 : vector<1x32xf32> to vector<64x32xf32>
    %9 = arith.addf %6, %8 : vector<64x32xf32>
    %10 = arith.negf %9 : vector<64x32xf32>
    %11 = math.exp %10 : vector<64x32xf32>
    %cst_7 = arith.constant 1.000000e+00 : f32
    %12 = vector.broadcast %cst_7 : f32 to vector<64x32xf32>
    %13 = arith.addf %12, %11 : vector<64x32xf32>
    %14 = arith.divf %12, %13 : vector<64x32xf32>
    %15 = arith.mulf %9, %14 : vector<64x32xf32>
    %16 = arith.truncf %15 : vector<64x32xf32> to vector<64x32xbf16>
    %c0_8 = arith.constant 0 : index
    %c0_9 = arith.constant 0 : index
    %17 = vector.load %arg5[%c0_8, %c0_9] : memref<32x1792xbf16, #tpu.memory_space<vmem>>, vector<32x1792xbf16>
    %cst_10 = arith.constant dense<0.000000e+00> : vector<64x1792xf32>
    %18 = tpu.matmul %16, %17, %cst_10 {dimension_numbers = #tpu.dot_dimension_numbers<[1], [0], [0], [1], [0, 0, 1, 1], [], []>} : vector<64x32xbf16>, vector<32x1792xbf16>, vector<64x1792xf32> -> vector<64x1792xf32>
    %c0_11 = arith.constant 0 : index
    %c0_12 = arith.constant 0 : index
    %19 = vector.load %arg6[%c0_11, %c0_12] : memref<1x1792xf32, #tpu.memory_space<vmem>>, vector<1x1792xf32>
    %20 = vector.broadcast %19 : vector<1x1792xf32> to vector<64x1792xf32>
    %21 = arith.addf %18, %20 : vector<64x1792xf32>
    %22 = arith.negf %21 : vector<64x1792xf32>
    %23 = math.exp %22 : vector<64x1792xf32>
    %cst_13 = arith.constant 1.000000e+00 : f32
    %24 = vector.broadcast %cst_13 : f32 to vector<64x1792xf32>
    %25 = arith.addf %24, %23 : vector<64x1792xf32>
    %26 = arith.divf %24, %25 : vector<64x1792xf32>
    %27 = arith.mulf %21, %26 : vector<64x1792xf32>
    %c0_14 = arith.constant 0 : index
    %c0_15 = arith.constant 0 : index
    %28 = vector.load %arg10[%c0_14, %c0_15] : memref<1x1792xf32, #tpu.memory_space<vmem>>, vector<1x1792xf32>
    %cst_16 = arith.constant dense<0.000000e+00> : vector<1792xf32>
    %29 = vector.multi_reduction <add>, %27, %cst_16 [0] : vector<64x1792xf32> to vector<1792xf32>
    %30 = vector.shape_cast %29 : vector<1792xf32> to vector<1x1792xf32>
    %31 = arith.addf %28, %30 : vector<1x1792xf32>
    %c0_17 = arith.constant 0 : index
    %c0_18 = arith.constant 0 : index
    %32 = vector.load %arg10[%c0_17, %c0_18] : memref<1x1792xf32, #tpu.memory_space<vmem>>, vector<1x1792xf32>
    tpu.vector_store %arg10[%c0_17, %c0_18], %31 {strides = array<i32>} : memref<1x1792xf32, #tpu.memory_space<vmem>>, vector<1x1792xf32>,
    %c0_i32_19 = arith.constant 0 : i32
    %33 = arith.cmpi eq, %arg1, %c0_i32_19 : i32
    %34 = arith.extui %33 : i1 to i32
    %c0_i32_20 = arith.constant 0 : i32
    %35 = arith.cmpi ne, %34, %c0_i32_20 : i32
    scf.if %35 {
      %c0_21 = arith.constant 0 : index
      %c0_22 = arith.constant 0 : index
      %36 = vector.load %arg10[%c0_21, %c0_22] : memref<1x1792xf32, #tpu.memory_space<vmem>>, vector<1x1792xf32>
      %cst_23 = arith.constant 1.562500e-02 : f32
      %37 = vector.broadcast %cst_23 : f32 to vector<1x1792xf32>
      %38 = arith.mulf %36, %37 : vector<1x1792xf32>
      %c0_24 = arith.constant 0 : index
      %c0_25 = arith.constant 0 : index
      %39 = vector.load %arg7[%c0_24, %c0_25] : memref<1792x128xf32, #tpu.memory_space<vmem>>, vector<1792x128xf32>
      %cst_26 = arith.constant dense<0.000000e+00> : vector<1x128xf32>
      %40 = tpu.matmul %38, %39, %cst_26 {dimension_numbers = #tpu.dot_dimension_numbers<[1], [0], [0], [1], [0, 0, 1, 1], [], []>} : vector<1x1792xf32>, vector<1792x128xf32>, vector<1x128xf32> -> vector<1x128xf32>
      %c0_27 = arith.constant 0 : index
      %c0_28 = arith.constant 0 : index
      %41 = vector.load %arg8[%c0_27, %c0_28] : memref<1x128xf32, #tpu.memory_space<vmem>>, vector<1x128xf32>
      %42 = arith.addf %40, %41 : vector<1x128xf32>
      %43 = vector.shape_cast %42 : vector<1x128xf32> to vector<1x1x128xf32>
      %c0_29 = arith.constant 0 : index
      %c0_30 = arith.constant 0 : index
      %c0_31 = arith.constant 0 : index
      %44 = vector.load %arg9[%c0_29, %c0_30, %c0_31] : memref<1x1x128xf32, #tpu.memory_space<vmem>>, vector<1x1x128xf32>
      tpu.vector_store %arg9[%c0_29, %c0_30, %c0_31], %43 {strides = array<i32>} : memref<1x1x128xf32, #tpu.memory_space<vmem>>, vector<1x1x128xf32>,
    } else {
    }
    return
  }
  func.func @transform_0(%arg0: i32, %arg1: i32) -> (i32, i32, i32) {
    %c0_i32 = arith.constant 0 : i32
    %c0_i32_0 = arith.constant 0 : i32
    return %arg0, %arg1, %c0_i32 : i32, i32, i32
  }
  func.func @transform_1(%arg0: i32, %arg1: i32) -> (i32, i32) {
    %c0_i32 = arith.constant 0 : i32
    %c0_i32_0 = arith.constant 0 : i32
    %c0_i32_1 = arith.constant 0 : i32
    return %c0_i32, %c0_i32_0 : i32, i32
  }
  func.func @transform_2(%arg0: i32, %arg1: i32) -> (i32, i32) {
    %c0_i32 = arith.constant 0 : i32
    %c0_i32_0 = arith.constant 0 : i32
    %c0_i32_1 = arith.constant 0 : i32
    return %c0_i32, %c0_i32_0 : i32, i32
  }
  func.func @transform_3(%arg0: i32, %arg1: i32) -> (i32, i32) {
    %c0_i32 = arith.constant 0 : i32
    %c0_i32_0 = arith.constant 0 : i32
    %c0_i32_1 = arith.constant 0 : i32
    return %c0_i32, %c0_i32_0 : i32, i32
  }
  func.func @transform_4(%arg0: i32, %arg1: i32) -> (i32, i32) {
    %c0_i32 = arith.constant 0 : i32
    %c0_i32_0 = arith.constant 0 : i32
    %c0_i32_1 = arith.constant 0 : i32
    return %c0_i32, %c0_i32_0 : i32, i32
  }
  func.func @transform_5(%arg0: i32, %arg1: i32) -> (i32, i32) {
    %c0_i32 = arith.constant 0 : i32
    %c0_i32_0 = arith.constant 0 : i32
    %c0_i32_1 = arith.constant 0 : i32
    return %c0_i32, %c0_i32_0 : i32, i32
  }
  func.func @transform_6(%arg0: i32, %arg1: i32) -> (i32, i32) {
    %c0_i32 = arith.constant 0 : i32
    %c0_i32_0 = arith.constant 0 : i32
    %c0_i32_1 = arith.constant 0 : i32
    return %c0_i32, %c0_i32_0 : i32, i32
  }
  func.func @transform_7(%arg0: i32, %arg1: i32) -> (i32, i32, i32) {
    %c0_i32 = arith.constant 0 : i32
    %c0_i32_0 = arith.constant 0 : i32
    %c0_i32_1 = arith.constant 0 : i32
    return %arg0, %c0_i32, %c0_i32_0 : i32, i32, i32
  }
}

</mosaic_0001>

<llo_original>
// kernel: efficientnet_forward.1
$region0: #{efficientnet_forward.1}
  #allocation0 [shape = 'u32[]', space=smem, size = 0x4, offset = 0x4, fixed_abs, tag = 'smem constant byte address 0x4 - core index']
  #allocation1 [shape = 'u32[144,128]{1,0:T(1,128)}', space=vmem, size = 0x12000, scoped, tag = 'internal scratch']
  #allocation2 [shape = 'f32[1,1792]{1,0:T(1,128)}', space=vmem, size = 0x1c00, scoped, tag = 'scratch operand']
  %s0 = inlined_call_operand.vmem [shape: bf16[2,64,32], index: 0, kind: input, shape index: {}]
  %s1 = inlined_call_operand.vmem [shape: bf16[32,32], index: 1, kind: input, shape index: {}]
  %s2 = inlined_call_operand.vmem [shape: f32[1,32], index: 2, kind: input, shape index: {}]
  %s3 = inlined_call_operand.vmem [shape: bf16[32,1792], index: 3, kind: input, shape index: {}]
  %s4 = inlined_call_operand.vmem [shape: f32[1,1792], index: 4, kind: input, shape index: {}]
  %s5 = inlined_call_operand.vmem [shape: f32[1792,128], index: 5, kind: input, shape index: {}]
  %s6 = inlined_call_operand.vmem [shape: f32[1,128], index: 6, kind: input, shape index: {}]
  %s7 = inlined_call_operand.vmem [shape: f32[2,1,128], index: 7, kind: output, shape index: {}]
  %s8 = sld [smem:[#allocation0]]
  $region69: #{efficientnet_forward.1} parent=0
    _
  %s10 = ssub.s32 1, %s8
  %s11 = scalar_select 0, %s10, %s8
  loop: start=0, step=1, limit=4
  $region2: #{efficientnet_forward.1} parent=0 // loop_pre_header
    _
  $region3: #{efficientnet_forward.1} parent=0 // loop_header
    %s13 = sphi 0, %s17
    %p14 = scmp.ge.s32.totalorder %s13, 4
    %s20 = sphi 0, %s32
    %s21 = sphi 0, %s28
    %s22 = sphi 0, %s20
    %s23 = sphi 0, %s21
    %s24 = sphi 0, %s22
    %s25 = sphi 0, %s23
    %s37 = sphi 0, %s39
    %s40 = sphi 0, %s37
    %s41 = sphi 0, %s40
    %s57 = sphi 0, %s41
    %s61 = sphi 0, %s61
    %s63 = sphi 0, %s61
    %s64 = sphi 0, %s63
    %s78 = sphi 0, %s64
    %s82 = sphi 0, %s82
    %s84 = sphi 0, %s82
    %s85 = sphi 0, %s84
    %s99 = sphi 0, %s85
    %s103 = sphi 0, %s103
    %s105 = sphi 0, %s103
    %s106 = sphi 0, %s105
    %s120 = sphi 0, %s106
    %s124 = sphi 0, %s124
    %s126 = sphi 0, %s124
    %s127 = sphi 0, %s126
    %s141 = sphi 0, %s127
    %s145 = sphi 0, %s145
    %s147 = sphi 0, %s145
    %s148 = sphi 0, %s147
    %s162 = sphi 0, %s148
    %s166 = sphi 0, %s166
    %s168 = sphi 0, %s166
    %s169 = sphi 0, %s168
    %s183 = sphi 0, %s169
    %s189 = sphi 0, %s191
    %s192 = sphi 0, %s189
    %s193 = sphi 0, %s192
    %s209 = sphi 0, %s193
  $region4: #{efficientnet_forward.1} parent=0 // loop_header_branch
    %16 = sbr.rel (%p14) target = $region8
  $region5: #{efficientnet_forward.1} parent=0 // loop_body
    %s18 = ssub.s32 %s13, 1
    %s19 = ssub.s32 %s13, 2
    %s26 = sadd.s32 1, %s21
    %p27 = scmp.ge.s32.totalorder %s26, 1
    %s28 = scalar_select %p27, 0, %s26
    %s29 = sadd.s32 1, %s20
    %s30 = scalar_select %p27, %s29, %s20
    %p31 = scmp.ge.s32.totalorder %s30, 2
    %s32 = scalar_select %p31, 0, %s30
    %s33 = ssub.s32 %s20, %s32
    %s34 = ssub.s32 %s21, %s28
    %s35 = sor.u32 %s33, %s34
    %p36 = scmp.eq.s32.totalorder %s35, 0
    %s38 = sadd.s32 %s37, 1
    %s39 = scalar_select %p36, %s37, %s38
    %p42 = pneg %p36
    %p43 = scmp.eq.s32.totalorder %s13, 1
    %p44 = por %p42, %p43
    %p45 = scmp.ne.s32.totalorder %s37, %s40
    %p46 = scmp.eq.s32.totalorder %s13, 0
    %p47 = por %p45, %p46
    %p48 = scmp.ne.s32.totalorder %s37, %s40
    %p49 = scmp.eq.s32.totalorder %s18, 1
    %p50 = por %p48, %p49
    %p51 = scmp.ne.s32.totalorder %s40, %s41
    %p52 = scmp.eq.s32.totalorder %s18, 0
    %p53 = por %p51, %p52
    %p54 = scmp.ne.s32.totalorder %s40, %s41
    %p55 = scmp.eq.s32.totalorder %s19, 1
    %p56 = por %p54, %p55
    %p58 = scmp.ne.s32.totalorder %s41, %s57
    %p59 = scmp.eq.s32.totalorder %s19, 0
    %p60 = por %p58, %p59
    %s62 = sadd.s32 %s61, 1
    %p65 = scmp.eq.s32.totalorder %s13, 1
    %p66 = scmp.ne.s32.totalorder %s61, %s63
    %p67 = scmp.eq.s32.totalorder %s13, 0
    %p68 = por %p66, %p67
    %p69 = scmp.ne.s32.totalorder %s61, %s63
    %p70 = scmp.eq.s32.totalorder %s18, 1
    %p71 = por %p69, %p70
    %p72 = scmp.ne.s32.totalorder %s63, %s64
    %p73 = scmp.eq.s32.totalorder %s18, 0
    %p74 = por %p72, %p73
    %p75 = scmp.ne.s32.totalorder %s63, %s64
    %p76 = scmp.eq.s32.totalorder %s19, 1
    %p77 = por %p75, %p76
    %p79 = scmp.ne.s32.totalorder %s64, %s78
    %p80 = scmp.eq.s32.totalorder %s19, 0
    %p81 = por %p79, %p80
    %s83 = sadd.s32 %s82, 1
    %p86 = scmp.eq.s32.totalorder %s13, 1
    %p87 = scmp.ne.s32.totalorder %s82, %s84
    %p88 = scmp.eq.s32.totalorder %s13, 0
    %p89 = por %p87, %p88
    %p90 = scmp.ne.s32.totalorder %s82, %s84
    %p91 = scmp.eq.s32.totalorder %s18, 1
    %p92 = por %p90, %p91
    %p93 = scmp.ne.s32.totalorder %s84, %s85
    %p94 = scmp.eq.s32.totalorder %s18, 0
    %p95 = por %p93, %p94
    %p96 = scmp.ne.s32.totalorder %s84, %s85
    %p97 = scmp.eq.s32.totalorder %s19, 1
    %p98 = por %p96, %p97
    %p100 = scmp.ne.s32.totalorder %s85, %s99
    %p101 = scmp.eq.s32.totalorder %s19, 0
    %p102 = por %p100, %p101
    %s104 = sadd.s32 %s103, 1
    %p107 = scmp.eq.s32.totalorder %s13, 1
    %p108 = scmp.ne.s32.totalorder %s103, %s105
    %p109 = scmp.eq.s32.totalorder %s13, 0
    %p110 = por %p108, %p109
    %p111 = scmp.ne.s32.totalorder %s103, %s105
    %p112 = scmp.eq.s32.totalorder %s18, 1
    %p113 = por %p111, %p112
    %p114 = scmp.ne.s32.totalorder %s105, %s106
    %p115 = scmp.eq.s32.totalorder %s18, 0
    %p116 = por %p114, %p115
    %p117 = scmp.ne.s32.totalorder %s105, %s106
    %p118 = scmp.eq.s32.totalorder %s19, 1
    %p119 = por %p117, %p118
    %p121 = scmp.ne.s32.totalorder %s106, %s120
    %p122 = scmp.eq.s32.totalorder %s19, 0
    %p123 = por %p121, %p122
    %s125 = sadd.s32 %s124, 1
    %p128 = scmp.eq.s32.totalorder %s13, 1
    %p129 = scmp.ne.s32.totalorder %s124, %s126
    %p130 = scmp.eq.s32.totalorder %s13, 0
    %p131 = por %p129, %p130
    %p132 = scmp.ne.s32.totalorder %s124, %s126
    %p133 = scmp.eq.s32.totalorder %s18, 1
    %p134 = por %p132, %p133
    %p135 = scmp.ne.s32.totalorder %s126, %s127
    %p136 = scmp.eq.s32.totalorder %s18, 0
    %p137 = por %p135, %p136
    %p138 = scmp.ne.s32.totalorder %s126, %s127
    %p139 = scmp.eq.s32.totalorder %s19, 1
    %p140 = por %p138, %p139
    %p142 = scmp.ne.s32.totalorder %s127, %s141
    %p143 = scmp.eq.s32.totalorder %s19, 0
    %p144 = por %p142, %p143
    %s146 = sadd.s32 %s145, 1
    %p149 = scmp.eq.s32.totalorder %s13, 1
    %p150 = scmp.ne.s32.totalorder %s145, %s147
    %p151 = scmp.eq.s32.totalorder %s13, 0
    %p152 = por %p150, %p151
    %p153 = scmp.ne.s32.totalorder %s145, %s147
    %p154 = scmp.eq.s32.totalorder %s18, 1
    %p155 = por %p153, %p154
    %p156 = scmp.ne.s32.totalorder %s147, %s148
    %p157 = scmp.eq.s32.totalorder %s18, 0
    %p158 = por %p156, %p157
    %p159 = scmp.ne.s32.totalorder %s147, %s148
    %p160 = scmp.eq.s32.totalorder %s19, 1
    %p161 = por %p159, %p160
    %p163 = scmp.ne.s32.totalorder %s148, %s162
    %p164 = scmp.eq.s32.totalorder %s19, 0
    %p165 = por %p163, %p164
    %s167 = sadd.s32 %s166, 1
    %p170 = scmp.eq.s32.totalorder %s13, 1
    %p171 = scmp.ne.s32.totalorder %s166, %s168
    %p172 = scmp.eq.s32.totalorder %s13, 0
    %p173 = por %p171, %p172
    %p174 = scmp.ne.s32.totalorder %s166, %s168
    %p175 = scmp.eq.s32.totalorder %s18, 1
    %p176 = por %p174, %p175
    %p177 = scmp.ne.s32.totalorder %s168, %s169
    %p178 = scmp.eq.s32.totalorder %s18, 0
    %p179 = por %p177, %p178
    %p180 = scmp.ne.s32.totalorder %s168, %s169
    %p181 = scmp.eq.s32.totalorder %s19, 1
    %p182 = por %p180, %p181
    %p184 = scmp.ne.s32.totalorder %s169, %s183
    %p185 = scmp.eq.s32.totalorder %s19, 0
    %p186 = por %p184, %p185
    %s187 = ssub.s32 %s20, %s32
    %p188 = scmp.eq.s32.totalorder %s187, 0
    %s190 = sadd.s32 %s189, 1
    %s191 = scalar_select %p188, %s189, %s190
    %p194 = pneg %p188
    %p195 = scmp.eq.s32.totalorder %s13, 1
    %p196 = por %p194, %p195
    %p197 = scmp.ne.s32.totalorder %s189, %s192
    %p198 = scmp.eq.s32.totalorder %s13, 0
    %p199 = por %p197, %p198
    %p200 = scmp.ne.s32.totalorder %s189, %s192
    %p201 = scmp.eq.s32.totalorder %s18, 1
    %p202 = por %p200, %p201
    %p203 = scmp.ne.s32.totalorder %s192, %s193
    %p204 = scmp.eq.s32.totalorder %s18, 0
    %p205 = por %p203, %p204
    %p206 = scmp.ne.s32.totalorder %s192, %s193
    %p207 = scmp.eq.s32.totalorder %s19, 1
    %p208 = por %p206, %p207
    %p210 = scmp.ne.s32.totalorder %s193, %s209
    %p211 = scmp.eq.s32.totalorder %s19, 0
    %p212 = por %p210, %p211
    %p213 = scmp.le.s32.totalorder 1, %s13
    %p214 = scmp.lt.s32.totalorder %s13, 3
    %p215 = pnand %p213, %p214
    %p216 = pneg %p215
    // Predicated region
    $region9: #{efficientnet_forward.1} parent=5 // pred_check
      _
    $region10: #{efficientnet_forward.1} parent=5 // pred_check_branch
      %218 = sbr.rel (%p215) target = $region12
    $region11: #{efficientnet_forward.1} parent=5 // pred_region
      %s219 = ssub.s32 %s13, 1
      // Predicated region
      $region13: #{efficientnet_forward.1} parent=11 // pred_check
        %p220 = pneg %p74
      $region14: #{efficientnet_forward.1} parent=11 // pred_check_branch
        %222 = sbr.rel (%p220) target = $region16
      $region15: #{efficientnet_forward.1} parent=11 // pred_region
        _
      $region16: #{efficientnet_forward.1} parent=11 // pred_fallthru
        _
      // Predicated region
      $region17: #{efficientnet_forward.1} parent=11 // pred_check
        %p223 = pneg %p95
      $region18: #{efficientnet_forward.1} parent=11 // pred_check_branch
        %225 = sbr.rel (%p223) target = $region20
      $region19: #{efficientnet_forward.1} parent=11 // pred_region
        _
      $region20: #{efficientnet_forward.1} parent=11 // pred_fallthru
        _
      // Predicated region
      $region21: #{efficientnet_forward.1} parent=11 // pred_check
        %p226 = pneg %p116
      $region22: #{efficientnet_forward.1} parent=11 // pred_check_branch
        %228 = sbr.rel (%p226) target = $region24
      $region23: #{efficientnet_forward.1} parent=11 // pred_region
        _
      $region24: #{efficientnet_forward.1} parent=11 // pred_fallthru
        _
      // Predicated region
      $region25: #{efficientnet_forward.1} parent=11 // pred_check
        %p229 = pneg %p137
      $region26: #{efficientnet_forward.1} parent=11 // pred_check_branch
        %231 = sbr.rel (%p229) target = $region28
      $region27: #{efficientnet_forward.1} parent=11 // pred_region
        _
      $region28: #{efficientnet_forward.1} parent=11 // pred_fallthru
        _
      // Predicated region
      $region29: #{efficientnet_forward.1} parent=11 // pred_check
        %p232 = pneg %p158
      $region30: #{efficientnet_forward.1} parent=11 // pred_check_branch
        %234 = sbr.rel (%p232) target = $region32
      $region31: #{efficientnet_forward.1} parent=11 // pred_region
        _
      $region32: #{efficientnet_forward.1} parent=11 // pred_fallthru
        _
      // Predicated region
      $region33: #{efficientnet_forward.1} parent=11 // pred_check
        %p235 = pneg %p179
      $region34: #{efficientnet_forward.1} parent=11 // pred_check_branch
        %237 = sbr.rel (%p235) target = $region36
      $region35: #{efficientnet_forward.1} parent=11 // pred_region
        _
      $region36: #{efficientnet_forward.1} parent=11 // pred_fallthru
        _
    $region12: #{efficientnet_forward.1} parent=5 // pred_fallthru
      _
    %p238 = scmp.lt.s32.totalorder %s13, 2
    // Predicated region
    $region37: #{efficientnet_forward.1} parent=5 // pred_check
      %p239 = pneg %p238
    $region38: #{efficientnet_forward.1} parent=5 // pred_check_branch
      %241 = sbr.rel (%p239) target = $region40
    $region39: #{efficientnet_forward.1} parent=5 // pred_region
      // Predicated region
      $region41: #{efficientnet_forward.1} parent=39 // pred_check
        %p242 = pneg %p47
      $region42: #{efficientnet_forward.1} parent=39 // pred_check_branch
        %244 = sbr.rel (%p242) target = $region44
      $region43: #{efficientnet_forward.1} parent=39 // pred_region
        %s245 = smul.u32 8, %s21
        %p246 = scmp.lt.s32.totalorder %s20, 1
        %s247 = scalar_select %p246, %s20, 1
        %p248 = scmp.lt.s32.totalorder %s245, 7
        %s249 = scalar_select %p248, %s245, 7
        %s250 = smul.addr %s247, 8
        %s251 = sadd.s32 %s249, %s250
        %s252 = smul.addr %s251, 4
        %s253 = scalar_lea.vmem %s0, %s252
        %s254 = smul.u32 8, %s21
      $region44: #{efficientnet_forward.1} parent=39 // pred_fallthru
        _
    $region40: #{efficientnet_forward.1} parent=5 // pred_fallthru
      _
    %p255 = scmp.le.s32.totalorder 1, %s13
    %p256 = scmp.lt.s32.totalorder %s13, 3
    %p257 = pnand %p255, %p256
    %p258 = pneg %p257
    // Predicated region
    $region45: #{efficientnet_forward.1} parent=5 // pred_check
      _
    $region46: #{efficientnet_forward.1} parent=5 // pred_check_branch
      %260 = sbr.rel (%p257) target = $region48
    $region47: #{efficientnet_forward.1} parent=5 // pred_region
      %s261 = ssub.s32 %s13, 1
      %s262 = smul.u32 8, %s23
      %p263 = scmp.lt.s32.totalorder %s22, 1
      %s264 = scalar_select %p263, %s22, 1
      %p265 = scmp.lt.s32.totalorder %s262, 7
      %s266 = scalar_select %p265, %s262, 7
      %s267 = smul.addr %s264, 8
      %s268 = sadd.s32 %s266, %s267
      %s269 = smul.addr %s268, 4
      %s270 = scalar_lea.vmem %s0, %s269
      %p271 = pneg %p53
      %p272 = pneg %p50
      %p273 = pneg %p74
      %p274 = pneg %p71
      %p275 = pneg %p95
      %p276 = pneg %p92
      %p277 = pneg %p116
      %p278 = pneg %p113
      %p279 = pneg %p137
      %p280 = pneg %p134
      %p281 = pneg %p158
      %p282 = pneg %p155
      %p283 = pneg %p179
      %p284 = pneg %p176
      %p285 = pneg %p205
      %p286 = pneg %p202
      %p287 = scmp.lt.s32.totalorder %s22, 1
      %s288 = scalar_select %p287, %s22, 1
      %s289 = scalar_lea.vmem %s7, %s288
      %s290 = smul.u32 8, %s23
      %p291 = scmp.lt.s32.totalorder %s22, 1
      %s292 = scalar_select %p291, %s22, 1
      %p293 = scmp.lt.s32.totalorder %s290, 7
      %s294 = scalar_select %p293, %s290, 7
      %s295 = smul.addr %s292, 8
      %s296 = sadd.s32 %s294, %s295
      %s297 = smul.addr %s296, 4
      %s298 = scalar_lea.vmem %s0, %s297
      %s299 = smul.u32 8, %s23
      %p300 = scmp.lt.s32.totalorder %s22, 1
      %s301 = scalar_select %p300, %s22, 1
      %s302 = scalar_lea.vmem %s7, %s301
      %p304 = scmp.eq.s32.totalorder %s23, 0
      // Predicated region
      $region49: #{efficientnet_forward.1} parent=47 // pred_check
        %p305 = pneg %p304
      $region50: #{efficientnet_forward.1} parent=47 // pred_check_branch
        %307 = sbr.rel (%p305) target = $region52
      $region51: #{efficientnet_forward.1} parent=47 // pred_region
        %308 = vst [vmem:[#allocation2] sm:$0xff] 0.0
        %v309 = vlaneseq
        %vm310 = vcmp.ge.s32.totalorder %v309, 0
        %vm311 = vcmp.lt.s32.totalorder %v309, 768
        %vm312 = vmand %vm310, %vm311
        %313 = vst.msk [vmem:[#allocation2 + $0x8] sm:$0x3f] %vm312, 0.0
      $region52: #{efficientnet_forward.1} parent=47 // pred_fallthru
        _
      %v314 = vld [vmem:[%s298] sm:$0xf]
      %v315 = vld [vmem:[%s298 + $0x4] sm:$0xf]
      %v316 = vld [vmem:[%s298 + $0x8] sm:$0xf]
      %v317 = vld [vmem:[%s298 + $0xc] sm:$0xf]
      %v318 = vld [vmem:[%s298 + $0x10] sm:$0xf]
      %v319 = vld [vmem:[%s298 + $0x14] sm:$0xf]
      %v320 = vld [vmem:[%s298 + $0x18] sm:$0xf]
      %v321 = vld [vmem:[%s298 + $0x1c] sm:$0xf]
      %v322 = vld [vmem:[%s1] sm:$0xf]
      %v323 = vld [vmem:[%s1 + $0x4] sm:$0xf]
      %v324 = vld [vmem:[%s1 + $0x8] sm:$0xf]
      %v325 = vld [vmem:[%s1 + $0xc] sm:$0xf]
      %v326 = vld [vmem:[%s2] sm:$0x1]
      %v328 = vlaneseq
      %v329 = vshrl.u32 %v328, 7
      %v330 = vsub.s32 0, %v329
      %v331 = vrot.slane %v326, %v330
      %v341 = vunpack.c.l.b16 %v314
      %v342 = vunpack.c.l.b16 %v315
      %v343 = vunpack.c.l.b16 %v316
      %v344 = vunpack.c.l.b16 %v317
      %v345 = vunpack.c.l.b16 %v318
      %v346 = vunpack.c.l.b16 %v319
      %v347 = vunpack.c.l.b16 %v320
      %v348 = vunpack.c.l.b16 %v321
      %v349 = vpack.c.b16 %v342, %v341
      %v350 = vpack.c.b16 %v344, %v343
      %v351 = vpack.c.b16 %v346, %v345
      %v352 = vpack.c.b16 %v348, %v347
      %v357 = vunpack.c.l.b16 %v322
      %v358 = vunpack.c.l.b16 %v323
      %v359 = vunpack.c.l.b16 %v324
      %v360 = vunpack.c.l.b16 %v325
      %v361 = vpack.c.b16 %v358, %v357
      %v362 = vpack.c.b16 %v360, %v359
      %vm365 = vcmask 261120
      %v367 = vsel %vm365, %v349, 0
      %v370 = vsel %vm365, %v350, 0
      %v373 = vsel %vm365, %v351, 0
      %v376 = vsel %vm365, %v352, 0
      %378 = vmatprep.subr.bf16.mxu0 0
      %379 = vmatpush1.bf16.msra.mxu0 %v361
      %380 = vmatprep.subr.bf16.mxu0 0
      %381 = vmatpush1.bf16.msra.mxu0 %v362
      %382 = vmatprep.subr.bf16.mxu0 0
      %383 = vmatpush1.bf16.msra.mxu0 0
      %384 = vmatprep.subr.bf16.mxu0 0
      %385 = vmatpush1.bf16.msra.mxu0 0
      %386 = vmatprep.subr.bf16.mxu0 0
      %387 = vmatpush1.bf16.msra.mxu0 0
      %388 = vmatprep.subr.bf16.mxu0 0
      %389 = vmatpush1.bf16.msra.mxu0 0
      %390 = vmatprep.subr.bf16.mxu0 0
      %391 = vmatpush1.bf16.msra.mxu0 0
      %392 = vmatprep.subr.bf16.mxu0 0
      %393 = vmatpush1.bf16.msra.mxu0 0
      %394 = vmatprep.subr.bf16.mxu0 0
      %395 = vmatpush1.bf16.msra.mxu0 0
      %396 = vmatprep.subr.bf16.mxu0 0
      %397 = vmatpush1.bf16.msra.mxu0 0
      %398 = vmatprep.subr.bf16.mxu0 0
      %399 = vmatpush1.bf16.msra.mxu0 0
      %400 = vmatprep.subr.bf16.mxu0 0
      %401 = vmatpush1.bf16.msra.mxu0 0
      %402 = vmatprep.subr.bf16.mxu0 0
      %403 = vmatpush1.bf16.msra.mxu0 0
      %404 = vmatprep.subr.bf16.mxu0 0
      %405 = vmatpush1.bf16.msra.mxu0 0
      %406 = vmatprep.subr.bf16.mxu0 0
      %407 = vmatpush1.bf16.msra.mxu0 0
      %408 = vmatprep.subr.bf16.mxu0 0
      %409 = vmatpush1.bf16.msra.mxu0 0
      %410 = vmatprep.mubr.bf16.mxu0 0
      %411 = vmatmul.mubr.bf16.gmra.mrb[0].mxu0 %v367
      %v412 = vpop.f32.mrb[0].mxu0
      %v413 = vadd.f32 %v331, %v412
      %v414 = vpop.f32.mrb[0].mxu0
      %v415 = vpop.f32.mrb[0].mxu0
      %v416 = vadd.f32 %v331, %v415
      %v417 = vpop.f32.mrb[0].mxu0
      %418 = vmatprep.mubr.bf16.mxu0 0
      %419 = vmatmul.mubr.bf16.gmra.mrb[0].mxu0 %v370
      %v420 = vpop.f32.mrb[0].mxu0
      %v421 = vadd.f32 %v331, %v420
      %v422 = vpop.f32.mrb[0].mxu0
      %v423 = vpop.f32.mrb[0].mxu0
      %v424 = vadd.f32 %v331, %v423
      %v425 = vpop.f32.mrb[0].mxu0
      %426 = vmatprep.mubr.bf16.mxu0 0
      %427 = vmatmul.mubr.bf16.gmra.mrb[0].mxu0 %v373
      %v428 = vpop.f32.mrb[0].mxu0
      %v429 = vadd.f32 %v331, %v428
      %v430 = vpop.f32.mrb[0].mxu0
      %v431 = vpop.f32.mrb[0].mxu0
      %v432 = vadd.f32 %v331, %v431
      %v433 = vpop.f32.mrb[0].mxu0
      %434 = vmatprep.mubr.bf16.mxu0 0
      %435 = vmatmul.mubr.bf16.gmra.mrb[0].mxu0 %v376
      %v436 = vpop.f32.mrb[0].mxu0
      %v437 = vadd.f32 %v331, %v436
      %v438 = vpop.f32.mrb[0].mxu0
      %v439 = vpop.f32.mrb[0].mxu0
      %v440 = vadd.f32 %v331, %v439
      %v441 = vpop.f32.mrb[0].mxu0
      %442 = vdwg.mxu0
      %v443 = vxor.u32 %v413, 2147483648
      %v444 = vxor.u32 %v416, 2147483648
      %v445 = vxor.u32 %v421, 2147483648
      %v446 = vxor.u32 %v424, 2147483648
      %v447 = vxor.u32 %v429, 2147483648
      %v448 = vxor.u32 %v432, 2147483648
      %v449 = vxor.u32 %v437, 2147483648
      %v450 = vxor.u32 %v440, 2147483648
      %v451 = vmul.f32 %v443, 1.442695
      %v452 = vpow.pop %v451
      %v453 = vmul.f32 %v444, 1.442695
      %v454 = vpow.pop %v453
      %v455 = vmul.f32 %v445, 1.442695
      %v456 = vpow.pop %v455
      %v457 = vmul.f32 %v446, 1.442695
      %v458 = vpow.pop %v457
      %v459 = vmul.f32 %v447, 1.442695
      %v460 = vpow.pop %v459
      %v461 = vmul.f32 %v448, 1.442695
      %v462 = vpow.pop %v461
      %v463 = vmul.f32 %v449, 1.442695
      %v464 = vpow.pop %v463
      %v465 = vmul.f32 %v450, 1.442695
      %v466 = vpow.pop %v465
      %v467 = vadd.f32 %v452, 1.0
      %v468 = vadd.f32 %v454, 1.0
      %v469 = vadd.f32 %v456, 1.0
      %v470 = vadd.f32 %v458, 1.0
      %v471 = vadd.f32 %v460, 1.0
      %v472 = vadd.f32 %v462, 1.0
      %v473 = vadd.f32 %v464, 1.0
      %v474 = vadd.f32 %v466, 1.0
      %v475 = vrcp.pop %v467
      %v476 = vmul.f32 1.0, %v475
      %v477 = vrcp.pop %v468
      %v478 = vmul.f32 1.0, %v477
      %v479 = vrcp.pop %v469
      %v480 = vmul.f32 1.0, %v479
      %v481 = vrcp.pop %v470
      %v482 = vmul.f32 1.0, %v481
      %v483 = vrcp.pop %v471
      %v484 = vmul.f32 1.0, %v483
      %v485 = vrcp.pop %v472
      %v486 = vmul.f32 1.0, %v485
      %v487 = vrcp.pop %v473
      %v488 = vmul.f32 1.0, %v487
      %v489 = vrcp.pop %v474
      %v490 = vmul.f32 1.0, %v489
      %v491 = vmul.f32 %v413, %v476
      %v492 = vmul.f32 %v416, %v478
      %v493 = vmul.f32 %v421, %v480
      %v494 = vmul.f32 %v424, %v482
      %v495 = vmul.f32 %v429, %v484
      %v496 = vmul.f32 %v432, %v486
      %v497 = vmul.f32 %v437, %v488
      %v498 = vmul.f32 %v440, %v490
      %v499 = vpack.c.bf16 %v492, %v491
      %v500 = vpack.c.bf16 %v494, %v493
      %v501 = vpack.c.bf16 %v496, %v495
      %v502 = vpack.c.bf16 %v498, %v497
      %v503 = vld [vmem:[%s3] sm:$0xff]
      %v504 = vld [vmem:[%s3 + $0x8] sm:$0xff]
      %v505 = vld [vmem:[%s3 + $0x10] sm:$0xff]
      %v506 = vld [vmem:[%s3 + $0x18] sm:$0xff]
      %v507 = vld [vmem:[%s3 + $0x20] sm:$0xff]
      %v508 = vld [vmem:[%s3 + $0x28] sm:$0xff]
      %v509 = vld [vmem:[%s3 + $0x30] sm:$0xff]
      %v510 = vld [vmem:[%s3 + $0x38] sm:$0xff]
      %v511 = vld [vmem:[%s3 + $0x40] sm:$0xff]
      %v512 = vld [vmem:[%s3 + $0x48] sm:$0xff]
      %v513 = vld [vmem:[%s3 + $0x50] sm:$0xff]
      %v514 = vld [vmem:[%s3 + $0x58] sm:$0xff]
      %v515 = vld [vmem:[%s3 + $0x60] sm:$0xff]
      %v516 = vld [vmem:[%s3 + $0x68] sm:$0xff]
      %v517 = vld [vmem:[%s3 + $0x70] sm:$0xff]
      %v518 = vld [vmem:[%s3 + $0x78] sm:$0xff]
      %v519 = vld [vmem:[%s3 + $0x80] sm:$0xff]
      %v520 = vld [vmem:[%s3 + $0x88] sm:$0xff]
      %v521 = vld [vmem:[%s3 + $0x90] sm:$0xff]
      %v522 = vld [vmem:[%s3 + $0x98] sm:$0xff]
      %v523 = vld [vmem:[%s3 + $0xa0] sm:$0xff]
      %v524 = vld [vmem:[%s3 + $0xa8] sm:$0xff]
      %v525 = vld [vmem:[%s3 + $0xb0] sm:$0xff]
      %v526 = vld [vmem:[%s3 + $0xb8] sm:$0xff]
      %v527 = vld [vmem:[%s3 + $0xc0] sm:$0xff]
      %v528 = vld [vmem:[%s3 + $0xc8] sm:$0xff]
      %v529 = vld [vmem:[%s3 + $0xd0] sm:$0xff]
      %v530 = vld [vmem:[%s3 + $0xd8] sm:$0xff]
      %v531 = vld [vmem:[%s4] sm:$0xff]
      %v532 = vld [vmem:[%s4 + $0x8] sm:$0x3f]
      %v535 = vlaneseq
      %v536 = vshrl.u32 %v535, 7
      %v537 = vsub.s32 0, %v536
      %v538 = vrot.slane %v531, %v537
      %v539 = vlaneseq
      %v540 = vshrl.u32 %v539, 7
      %v541 = vsub.s32 1, %v540
      %v542 = vrot.slane %v531, %v541
      %v543 = vlaneseq
      %v544 = vshrl.u32 %v543, 7
      %v545 = vsub.s32 2, %v544
      %v546 = vrot.slane %v531, %v545
      %v547 = vlaneseq
      %v548 = vshrl.u32 %v547, 7
      %v549 = vsub.s32 3, %v548
      %v550 = vrot.slane %v531, %v549
      %v551 = vlaneseq
      %v552 = vshrl.u32 %v551, 7
      %v553 = vsub.s32 4, %v552
      %v554 = vrot.slane %v531, %v553
      %v555 = vlaneseq
      %v556 = vshrl.u32 %v555, 7
      %v557 = vsub.s32 5, %v556
      %v558 = vrot.slane %v531, %v557
      %v559 = vlaneseq
      %v560 = vshrl.u32 %v559, 7
      %v561 = vsub.s32 6, %v560
      %v562 = vrot.slane %v531, %v561
      %v563 = vlaneseq
      %v564 = vshrl.u32 %v563, 7
      %v565 = vsub.s32 7, %v564
      %v566 = vrot.slane %v531, %v565
      %v567 = vlaneseq
      %v568 = vshrl.u32 %v567, 7
      %v569 = vsub.s32 0, %v568
      %v570 = vrot.slane %v532, %v569
      %v571 = vlaneseq
      %v572 = vshrl.u32 %v571, 7
      %v573 = vsub.s32 1, %v572
      %v574 = vrot.slane %v532, %v573
      %v575 = vlaneseq
      %v576 = vshrl.u32 %v575, 7
      %v577 = vsub.s32 2, %v576
      %v578 = vrot.slane %v532, %v577
      %v579 = vlaneseq
      %v580 = vshrl.u32 %v579, 7
      %v581 = vsub.s32 3, %v580
      %v582 = vrot.slane %v532, %v581
      %v583 = vlaneseq
      %v584 = vshrl.u32 %v583, 7
      %v585 = vsub.s32 4, %v584
      %v586 = vrot.slane %v532, %v585
      %v587 = vlaneseq
      %v588 = vshrl.u32 %v587, 7
      %v589 = vsub.s32 5, %v588
      %v590 = vrot.slane %v532, %v589
      %v633 = vunpack.c.l.b16 %v503
      %v634 = vunpack.c.h.b16 %v503
      %v635 = vunpack.c.l.b16 %v504
      %v636 = vunpack.c.h.b16 %v504
      %v637 = vunpack.c.l.b16 %v505
      %v638 = vunpack.c.h.b16 %v505
      %v639 = vunpack.c.l.b16 %v506
      %v640 = vunpack.c.h.b16 %v506
      %v641 = vunpack.c.l.b16 %v507
      %v642 = vunpack.c.h.b16 %v507
      %v643 = vunpack.c.l.b16 %v508
      %v644 = vunpack.c.h.b16 %v508
      %v645 = vunpack.c.l.b16 %v509
      %v646 = vunpack.c.h.b16 %v509
      %v647 = vunpack.c.l.b16 %v510
      %v648 = vunpack.c.h.b16 %v510
      %v649 = vunpack.c.l.b16 %v511
      %v650 = vunpack.c.h.b16 %v511
      %v651 = vunpack.c.l.b16 %v512
      %v652 = vunpack.c.h.b16 %v512
      %v653 = vunpack.c.l.b16 %v513
      %v654 = vunpack.c.h.b16 %v513
      %v655 = vunpack.c.l.b16 %v514
      %v656 = vunpack.c.h.b16 %v514
      %v657 = vunpack.c.l.b16 %v515
      %v658 = vunpack.c.h.b16 %v515
      %v659 = vunpack.c.l.b16 %v516
      %v660 = vunpack.c.h.b16 %v516
      %v661 = vunpack.c.l.b16 %v517
      %v662 = vunpack.c.h.b16 %v517
      %v663 = vunpack.c.l.b16 %v518
      %v664 = vunpack.c.h.b16 %v518
      %v665 = vunpack.c.l.b16 %v519
      %v666 = vunpack.c.h.b16 %v519
      %v667 = vunpack.c.l.b16 %v520
      %v668 = vunpack.c.h.b16 %v520
      %v669 = vunpack.c.l.b16 %v521
      %v670 = vunpack.c.h.b16 %v521
      %v671 = vunpack.c.l.b16 %v522
      %v672 = vunpack.c.h.b16 %v522
      %v673 = vunpack.c.l.b16 %v523
      %v674 = vunpack.c.h.b16 %v523
      %v675 = vunpack.c.l.b16 %v524
      %v676 = vunpack.c.h.b16 %v524
      %v677 = vunpack.c.l.b16 %v525
      %v678 = vunpack.c.h.b16 %v525
      %v679 = vunpack.c.l.b16 %v526
      %v680 = vunpack.c.h.b16 %v526
      %v681 = vunpack.c.l.b16 %v527
      %v682 = vunpack.c.h.b16 %v527
      %v683 = vunpack.c.l.b16 %v528
      %v684 = vunpack.c.h.b16 %v528
      %v685 = vunpack.c.l.b16 %v529
      %v686 = vunpack.c.h.b16 %v529
      %v687 = vunpack.c.l.b16 %v530
      %v688 = vunpack.c.h.b16 %v530
      %v689 = vpack.c.b16 %v647, %v633
      %v690 = vpack.c.b16 %v648, %v634
      %v691 = vpack.c.b16 %v649, %v635
      %v692 = vpack.c.b16 %v650, %v636
      %v693 = vpack.c.b16 %v651, %v637
      %v694 = vpack.c.b16 %v652, %v638
      %v695 = vpack.c.b16 %v653, %v639
      %v696 = vpack.c.b16 %v654, %v640
      %v697 = vpack.c.b16 %v655, %v641
      %v698 = vpack.c.b16 %v656, %v642
      %v699 = vpack.c.b16 %v657, %v643
      %v700 = vpack.c.b16 %v658, %v644
      %v701 = vpack.c.b16 %v659, %v645
      %v702 = vpack.c.b16 %v660, %v646
      %v703 = vpack.c.b16 %v675, %v661
      %v704 = vpack.c.b16 %v676, %v662
      %v705 = vpack.c.b16 %v677, %v663
      %v706 = vpack.c.b16 %v678, %v664
      %v707 = vpack.c.b16 %v679, %v665
      %v708 = vpack.c.b16 %v680, %v666
      %v709 = vpack.c.b16 %v681, %v667
      %v710 = vpack.c.b16 %v682, %v668
      %v711 = vpack.c.b16 %v683, %v669
      %v712 = vpack.c.b16 %v684, %v670
      %v713 = vpack.c.b16 %v685, %v671
      %v714 = vpack.c.b16 %v686, %v672
      %v715 = vpack.c.b16 %v687, %v673
      %v716 = vpack.c.b16 %v688, %v674
      %v746 = vsel %vm365, %v499, 0
      %v749 = vsel %vm365, %v500, 0
      %v752 = vsel %vm365, %v501, 0
      %v755 = vsel %vm365, %v502, 0
      %757 = vmatprep.subr.bf16.mxu0 %v690
      %758 = vmatpush1.bf16.msra.mxu0 %v689
      %759 = vmatprep.subr.bf16.mxu0 %v704
      %760 = vmatpush1.bf16.msra.mxu0 %v703
      %761 = vmatprep.subr.bf16.mxu0 0
      %762 = vmatpush1.bf16.msra.mxu0 0
      %763 = vmatprep.subr.bf16.mxu0 0
      %764 = vmatpush1.bf16.msra.mxu0 0
      %765 = vmatprep.subr.bf16.mxu0 0
      %766 = vmatpush1.bf16.msra.mxu0 0
      %767 = vmatprep.subr.bf16.mxu0 0
      %768 = vmatpush1.bf16.msra.mxu0 0
      %769 = vmatprep.subr.bf16.mxu0 0
      %770 = vmatpush1.bf16.msra.mxu0 0
      %771 = vmatprep.subr.bf16.mxu0 0
      %772 = vmatpush1.bf16.msra.mxu0 0
      %773 = vmatprep.subr.bf16.mxu0 0
      %774 = vmatpush1.bf16.msra.mxu0 0
      %775 = vmatprep.subr.bf16.mxu0 0
      %776 = vmatpush1.bf16.msra.mxu0 0
      %777 = vmatprep.subr.bf16.mxu0 0
      %778 = vmatpush1.bf16.msra.mxu0 0
      %779 = vmatprep.subr.bf16.mxu0 0
      %780 = vmatpush1.bf16.msra.mxu0 0
      %781 = vmatprep.subr.bf16.mxu0 0
      %782 = vmatpush1.bf16.msra.mxu0 0
      %783 = vmatprep.subr.bf16.mxu0 0
      %784 = vmatpush1.bf16.msra.mxu0 0
      %785 = vmatprep.subr.bf16.mxu0 0
      %786 = vmatpush1.bf16.msra.mxu0 0
      %787 = vmatprep.subr.bf16.mxu0 0
      %788 = vmatpush1.bf16.msra.mxu0 0
      %789 = vmatprep.mubr.bf16.mxu0 0
      %790 = vmatmul.mubr.bf16.gmra.mrb[0].mxu0 %v746
      %v791 = vpop.f32.mrb[0].mxu0
      %v792 = vadd.f32 %v538, %v791
      %v793 = vpop.f32.mrb[0].mxu0
      %v794 = vadd.f32 %v542, %v793
      %v795 = vpop.f32.mrb[0].mxu0
      %v796 = vadd.f32 %v538, %v795
      %v797 = vpop.f32.mrb[0].mxu0
      %v798 = vadd.f32 %v542, %v797
      %799 = vmatprep.mubr.bf16.mxu0 0
      %800 = vmatmul.mubr.bf16.gmra.mrb[0].mxu0 %v749
      %v801 = vpop.f32.mrb[0].mxu0
      %v802 = vadd.f32 %v538, %v801
      %v803 = vpop.f32.mrb[0].mxu0
      %v804 = vadd.f32 %v542, %v803
      %v805 = vpop.f32.mrb[0].mxu0
      %v806 = vadd.f32 %v538, %v805
      %v807 = vpop.f32.mrb[0].mxu0
      %v808 = vadd.f32 %v542, %v807
      %809 = vmatprep.mubr.bf16.mxu0 0
      %810 = vmatmul.mubr.bf16.gmra.mrb[0].mxu0 %v752
      %v811 = vpop.f32.mrb[0].mxu0
      %v812 = vadd.f32 %v538, %v811
      %v813 = vpop.f32.mrb[0].mxu0
      %v814 = vadd.f32 %v542, %v813
      %v815 = vpop.f32.mrb[0].mxu0
      %v816 = vadd.f32 %v538, %v815
      %v817 = vpop.f32.mrb[0].mxu0
      %v818 = vadd.f32 %v542, %v817
      %819 = vmatprep.mubr.bf16.mxu0 0
      %820 = vmatmul.mubr.bf16.gmra.mrb[0].mxu0 %v755
      %v821 = vpop.f32.mrb[0].mxu0
      %v822 = vadd.f32 %v538, %v821
      %v823 = vpop.f32.mrb[0].mxu0
      %v824 = vadd.f32 %v542, %v823
      %v825 = vpop.f32.mrb[0].mxu0
      %v826 = vadd.f32 %v538, %v825
      %v827 = vpop.f32.mrb[0].mxu0
      %v828 = vadd.f32 %v542, %v827
      %829 = vdwg.mxu0
      %830 = vmatprep.subr.bf16.mxu0 %v692
      %831 = vmatpush1.bf16.msra.mxu0 %v691
      %832 = vmatprep.subr.bf16.mxu0 %v706
      %833 = vmatpush1.bf16.msra.mxu0 %v705
      %834 = vmatprep.subr.bf16.mxu0 0
      %835 = vmatpush1.bf16.msra.mxu0 0
      %836 = vmatprep.subr.bf16.mxu0 0
      %837 = vmatpush1.bf16.msra.mxu0 0
      %838 = vmatprep.subr.bf16.mxu0 0
      %839 = vmatpush1.bf16.msra.mxu0 0
      %840 = vmatprep.subr.bf16.mxu0 0
      %841 = vmatpush1.bf16.msra.mxu0 0
      %842 = vmatprep.subr.bf16.mxu0 0
      %843 = vmatpush1.bf16.msra.mxu0 0
      %844 = vmatprep.subr.bf16.mxu0 0
      %845 = vmatpush1.bf16.msra.mxu0 0
      %846 = vmatprep.subr.bf16.mxu0 0
      %847 = vmatpush1.bf16.msra.mxu0 0
      %848 = vmatprep.subr.bf16.mxu0 0
      %849 = vmatpush1.bf16.msra.mxu0 0
      %850 = vmatprep.subr.bf16.mxu0 0
      %851 = vmatpush1.bf16.msra.mxu0 0
      %852 = vmatprep.subr.bf16.mxu0 0
      %853 = vmatpush1.bf16.msra.mxu0 0
      %854 = vmatprep.subr.bf16.mxu0 0
      %855 = vmatpush1.bf16.msra.mxu0 0
      %856 = vmatprep.subr.bf16.mxu0 0
      %857 = vmatpush1.bf16.msra.mxu0 0
      %858 = vmatprep.subr.bf16.mxu0 0
      %859 = vmatpush1.bf16.msra.mxu0 0
      %860 = vmatprep.subr.bf16.mxu0 0
      %861 = vmatpush1.bf16.msra.mxu0 0
      %862 = vmatprep.mubr.bf16.mxu0 0
      %863 = vmatmul.mubr.bf16.gmra.mrb[0].mxu0 %v746
      %v864 = vpop.f32.mrb[0].mxu0
      %v865 = vadd.f32 %v546, %v864
      %v866 = vpop.f32.mrb[0].mxu0
      %v867 = vadd.f32 %v550, %v866
      %v868 = vpop.f32.mrb[0].mxu0
      %v869 = vadd.f32 %v546, %v868
      %v870 = vpop.f32.mrb[0].mxu0
      %v871 = vadd.f32 %v550, %v870
      %872 = vmatprep.mubr.bf16.mxu0 0
      %873 = vmatmul.mubr.bf16.gmra.mrb[0].mxu0 %v749
      %v874 = vpop.f32.mrb[0].mxu0
      %v875 = vadd.f32 %v546, %v874
      %v876 = vpop.f32.mrb[0].mxu0
      %v877 = vadd.f32 %v550, %v876
      %v878 = vpop.f32.mrb[0].mxu0
      %v879 = vadd.f32 %v546, %v878
      %v880 = vpop.f32.mrb[0].mxu0
      %v881 = vadd.f32 %v550, %v880
      %882 = vmatprep.mubr.bf16.mxu0 0
      %883 = vmatmul.mubr.bf16.gmra.mrb[0].mxu0 %v752
      %v884 = vpop.f32.mrb[0].mxu0
      %v885 = vadd.f32 %v546, %v884
      %v886 = vpop.f32.mrb[0].mxu0
      %v887 = vadd.f32 %v550, %v886
      %v888 = vpop.f32.mrb[0].mxu0
      %v889 = vadd.f32 %v546, %v888
      %v890 = vpop.f32.mrb[0].mxu0
      %v891 = vadd.f32 %v550, %v890
      %892 = vmatprep.mubr.bf16.mxu0 0
      %893 = vmatmul.mubr.bf16.gmra.mrb[0].mxu0 %v755
      %v894 = vpop.f32.mrb[0].mxu0
      %v895 = vadd.f32 %v546, %v894
      %v896 = vpop.f32.mrb[0].mxu0
      %v897 = vadd.f32 %v550, %v896
      %v898 = vpop.f32.mrb[0].mxu0
      %v899 = vadd.f32 %v546, %v898
      %v900 = vpop.f32.mrb[0].mxu0
      %v901 = vadd.f32 %v550, %v900
      %902 = vdwg.mxu0
      %903 = vmatprep.subr.bf16.mxu0 %v694
      %904 = vmatpush1.bf16.msra.mxu0 %v693
      %905 = vmatprep.subr.bf16.mxu0 %v708
      %906 = vmatpush1.bf16.msra.mxu0 %v707
      %907 = vmatprep.subr.bf16.mxu0 0
      %908 = vmatpush1.bf16.msra.mxu0 0
      %909 = vmatprep.subr.bf16.mxu0 0
      %910 = vmatpush1.bf16.msra.mxu0 0
      %911 = vmatprep.subr.bf16.mxu0 0
      %912 = vmatpush1.bf16.msra.mxu0 0
      %913 = vmatprep.subr.bf16.mxu0 0
      %914 = vmatpush1.bf16.msra.mxu0 0
      %915 = vmatprep.subr.bf16.mxu0 0
      %916 = vmatpush1.bf16.msra.mxu0 0
      %917 = vmatprep.subr.bf16.mxu0 0
      %918 = vmatpush1.bf16.msra.mxu0 0
      %919 = vmatprep.subr.bf16.mxu0 0
      %920 = vmatpush1.bf16.msra.mxu0 0
      %921 = vmatprep.subr.bf16.mxu0 0
      %922 = vmatpush1.bf16.msra.mxu0 0
      %923 = vmatprep.subr.bf16.mxu0 0
      %924 = vmatpush1.bf16.msra.mxu0 0
      %925 = vmatprep.subr.bf16.mxu0 0
      %926 = vmatpush1.bf16.msra.mxu0 0
      %927 = vmatprep.subr.bf16.mxu0 0
      %928 = vmatpush1.bf16.msra.mxu0 0
      %929 = vmatprep.subr.bf16.mxu0 0
      %930 = vmatpush1.bf16.msra.mxu0 0
      %931 = vmatprep.subr.bf16.mxu0 0
      %932 = vmatpush1.bf16.msra.mxu0 0
      %933 = vmatprep.subr.bf16.mxu0 0
      %934 = vmatpush1.bf16.msra.mxu0 0
      %935 = vmatprep.mubr.bf16.mxu0 0
      %936 = vmatmul.mubr.bf16.gmra.mrb[0].mxu0 %v746
      %v937 = vpop.f32.mrb[0].mxu0
      %v938 = vadd.f32 %v554, %v937
      %v939 = vpop.f32.mrb[0].mxu0
      %v940 = vadd.f32 %v558, %v939
      %v941 = vpop.f32.mrb[0].mxu0
      %v942 = vadd.f32 %v554, %v941
      %v943 = vpop.f32.mrb[0].mxu0
      %v944 = vadd.f32 %v558, %v943
      %945 = vmatprep.mubr.bf16.mxu0 0
      %946 = vmatmul.mubr.bf16.gmra.mrb[0].mxu0 %v749
      %v947 = vpop.f32.mrb[0].mxu0
      %v948 = vadd.f32 %v554, %v947
      %v949 = vpop.f32.mrb[0].mxu0
      %v950 = vadd.f32 %v558, %v949
      %v951 = vpop.f32.mrb[0].mxu0
      %v952 = vadd.f32 %v554, %v951
      %v953 = vpop.f32.mrb[0].mxu0
      %v954 = vadd.f32 %v558, %v953
      %955 = vmatprep.mubr.bf16.mxu0 0
      %956 = vmatmul.mubr.bf16.gmra.mrb[0].mxu0 %v752
      %v957 = vpop.f32.mrb[0].mxu0
      %v958 = vadd.f32 %v554, %v957
      %v959 = vpop.f32.mrb[0].mxu0
      %v960 = vadd.f32 %v558, %v959
      %v961 = vpop.f32.mrb[0].mxu0
      %v962 = vadd.f32 %v554, %v961
      %v963 = vpop.f32.mrb[0].mxu0
      %v964 = vadd.f32 %v558, %v963
      %965 = vmatprep.mubr.bf16.mxu0 0
      %966 = vmatmul.mubr.bf16.gmra.mrb[0].mxu0 %v755
      %v967 = vpop.f32.mrb[0].mxu0
      %v968 = vadd.f32 %v554, %v967
      %v969 = vpop.f32.mrb[0].mxu0
      %v970 = vadd.f32 %v558, %v969
      %v971 = vpop.f32.mrb[0].mxu0
      %v972 = vadd.f32 %v554, %v971
      %v973 = vpop.f32.mrb[0].mxu0
      %v974 = vadd.f32 %v558, %v973
      %975 = vdwg.mxu0
      %976 = vmatprep.subr.bf16.mxu0 %v696
      %977 = vmatpush1.bf16.msra.mxu0 %v695
      %978 = vmatprep.subr.bf16.mxu0 %v710
      %979 = vmatpush1.bf16.msra.mxu0 %v709
      %980 = vmatprep.subr.bf16.mxu0 0
      %981 = vmatpush1.bf16.msra.mxu0 0
      %982 = vmatprep.subr.bf16.mxu0 0
      %983 = vmatpush1.bf16.msra.mxu0 0
      %984 = vmatprep.subr.bf16.mxu0 0
      %985 = vmatpush1.bf16.msra.mxu0 0
      %986 = vmatprep.subr.bf16.mxu0 0
      %987 = vmatpush1.bf16.msra.mxu0 0
      %988 = vmatprep.subr.bf16.mxu0 0
      %989 = vmatpush1.bf16.msra.mxu0 0
      %990 = vmatprep.subr.bf16.mxu0 0
      %991 = vmatpush1.bf16.msra.mxu0 0
      %992 = vmatprep.subr.bf16.mxu0 0
      %993 = vmatpush1.bf16.msra.mxu0 0
      %994 = vmatprep.subr.bf16.mxu0 0
      %995 = vmatpush1.bf16.msra.mxu0 0
      %996 = vmatprep.subr.bf16.mxu0 0
      %997 = vmatpush1.bf16.msra.mxu0 0
      %998 = vmatprep.subr.bf16.mxu0 0
      %999 = vmatpush1.bf16.msra.mxu0 0
      %1000 = vmatprep.subr.bf16.mxu0 0
      %1001 = vmatpush1.bf16.msra.mxu0 0
      %1002 = vmatprep.subr.bf16.mxu0 0
      %1003 = vmatpush1.bf16.msra.mxu0 0
      %1004 = vmatprep.subr.bf16.mxu0 0
      %1005 = vmatpush1.bf16.msra.mxu0 0
      %1006 = vmatprep.subr.bf16.mxu0 0
      %1007 = vmatpush1.bf16.msra.mxu0 0
      %1008 = vmatprep.mubr.bf16.mxu0 0
      %1009 = vmatmul.mubr.bf16.gmra.mrb[0].mxu0 %v746
      %v1010 = vpop.f32.mrb[0].mxu0
      %v1011 = vadd.f32 %v562, %v1010
      %v1012 = vpop.f32.mrb[0].mxu0
      %v1013 = vadd.f32 %v566, %v1012
      %v1014 = vpop.f32.mrb[0].mxu0
      %v1015 = vadd.f32 %v562, %v1014
      %v1016 = vpop.f32.mrb[0].mxu0
      %v1017 = vadd.f32 %v566, %v1016
      %1018 = vmatprep.mubr.bf16.mxu0 0
      %1019 = vmatmul.mubr.bf16.gmra.mrb[0].mxu0 %v749
      %v1020 = vpop.f32.mrb[0].mxu0
      %v1021 = vadd.f32 %v562, %v1020
      %v1022 = vpop.f32.mrb[0].mxu0
      %v1023 = vadd.f32 %v566, %v1022
      %v1024 = vpop.f32.mrb[0].mxu0
      %v1025 = vadd.f32 %v562, %v1024
      %v1026 = vpop.f32.mrb[0].mxu0
      %v1027 = vadd.f32 %v566, %v1026
      %1028 = vmatprep.mubr.bf16.mxu0 0
      %1029 = vmatmul.mubr.bf16.gmra.mrb[0].mxu0 %v752
      %v1030 = vpop.f32.mrb[0].mxu0
      %v1031 = vadd.f32 %v562, %v1030
      %v1032 = vpop.f32.mrb[0].mxu0
      %v1033 = vadd.f32 %v566, %v1032
      %v1034 = vpop.f32.mrb[0].mxu0
      %v1035 = vadd.f32 %v562, %v1034
      %v1036 = vpop.f32.mrb[0].mxu0
      %v1037 = vadd.f32 %v566, %v1036
      %1038 = vmatprep.mubr.bf16.mxu0 0
      %1039 = vmatmul.mubr.bf16.gmra.mrb[0].mxu0 %v755
      %v1040 = vpop.f32.mrb[0].mxu0
      %v1041 = vadd.f32 %v562, %v1040
      %v1042 = vpop.f32.mrb[0].mxu0
      %v1043 = vadd.f32 %v566, %v1042
      %v1044 = vpop.f32.mrb[0].mxu0
      %v1045 = vadd.f32 %v562, %v1044
      %v1046 = vpop.f32.mrb[0].mxu0
      %v1047 = vadd.f32 %v566, %v1046
      %1048 = vdwg.mxu0
      %1049 = vmatprep.subr.bf16.mxu0 %v698
      %1050 = vmatpush1.bf16.msra.mxu0 %v697
      %1051 = vmatprep.subr.bf16.mxu0 %v712
      %1052 = vmatpush1.bf16.msra.mxu0 %v711
      %1053 = vmatprep.subr.bf16.mxu0 0
      %1054 = vmatpush1.bf16.msra.mxu0 0
      %1055 = vmatprep.subr.bf16.mxu0 0
      %1056 = vmatpush1.bf16.msra.mxu0 0
      %1057 = vmatprep.subr.bf16.mxu0 0
      %1058 = vmatpush1.bf16.msra.mxu0 0
      %1059 = vmatprep.subr.bf16.mxu0 0
      %1060 = vmatpush1.bf16.msra.mxu0 0
      %1061 = vmatprep.subr.bf16.mxu0 0
      %1062 = vmatpush1.bf16.msra.mxu0 0
      %1063 = vmatprep.subr.bf16.mxu0 0
      %1064 = vmatpush1.bf16.msra.mxu0 0
      %1065 = vmatprep.subr.bf16.mxu0 0
      %1066 = vmatpush1.bf16.msra.mxu0 0
      %1067 = vmatprep.subr.bf16.mxu0 0
      %1068 = vmatpush1.bf16.msra.mxu0 0
      %1069 = vmatprep.subr.bf16.mxu0 0
      %1070 = vmatpush1.bf16.msra.mxu0 0
      %1071 = vmatprep.subr.bf16.mxu0 0
      %1072 = vmatpush1.bf16.msra.mxu0 0
      %1073 = vmatprep.subr.bf16.mxu0 0
      %1074 = vmatpush1.bf16.msra.mxu0 0
      %1075 = vmatprep.subr.bf16.mxu0 0
      %1076 = vmatpush1.bf16.msra.mxu0 0
      %1077 = vmatprep.subr.bf16.mxu0 0
      %1078 = vmatpush1.bf16.msra.mxu0 0
      %1079 = vmatprep.subr.bf16.mxu0 0
      %1080 = vmatpush1.bf16.msra.mxu0 0
      %1081 = vmatprep.mubr.bf16.mxu0 0
      %1082 = vmatmul.mubr.bf16.gmra.mrb[0].mxu0 %v746
      %v1083 = vpop.f32.mrb[0].mxu0
      %v1084 = vadd.f32 %v570, %v1083
      %v1085 = vpop.f32.mrb[0].mxu0
      %v1086 = vadd.f32 %v574, %v1085
      %v1087 = vpop.f32.mrb[0].mxu0
      %v1088 = vadd.f32 %v570, %v1087
      %v1089 = vpop.f32.mrb[0].mxu0
      %v1090 = vadd.f32 %v574, %v1089
      %1091 = vmatprep.mubr.bf16.mxu0 0
      %1092 = vmatmul.mubr.bf16.gmra.mrb[0].mxu0 %v749
      %v1093 = vpop.f32.mrb[0].mxu0
      %v1094 = vadd.f32 %v570, %v1093
      %v1095 = vpop.f32.mrb[0].mxu0
      %v1096 = vadd.f32 %v574, %v1095
      %v1097 = vpop.f32.mrb[0].mxu0
      %v1098 = vadd.f32 %v570, %v1097
      %v1099 = vpop.f32.mrb[0].mxu0
      %v1100 = vadd.f32 %v574, %v1099
      %1101 = vmatprep.mubr.bf16.mxu0 0
      %1102 = vmatmul.mubr.bf16.gmra.mrb[0].mxu0 %v752
      %v1103 = vpop.f32.mrb[0].mxu0
      %v1104 = vadd.f32 %v570, %v1103
      %v1105 = vpop.f32.mrb[0].mxu0
      %v1106 = vadd.f32 %v574, %v1105
      %v1107 = vpop.f32.mrb[0].mxu0
      %v1108 = vadd.f32 %v570, %v1107
      %v1109 = vpop.f32.mrb[0].mxu0
      %v1110 = vadd.f32 %v574, %v1109
      %1111 = vmatprep.mubr.bf16.mxu0 0
      %1112 = vmatmul.mubr.bf16.gmra.mrb[0].mxu0 %v755
      %v1113 = vpop.f32.mrb[0].mxu0
      %v1114 = vadd.f32 %v570, %v1113
      %v1115 = vpop.f32.mrb[0].mxu0
      %v1116 = vadd.f32 %v574, %v1115
      %v1117 = vpop.f32.mrb[0].mxu0
      %v1118 = vadd.f32 %v570, %v1117
      %v1119 = vpop.f32.mrb[0].mxu0
      %v1120 = vadd.f32 %v574, %v1119
      %1121 = vdwg.mxu0
      %1122 = vmatprep.subr.bf16.mxu0 %v700
      %1123 = vmatpush1.bf16.msra.mxu0 %v699
      %1124 = vmatprep.subr.bf16.mxu0 %v714
      %1125 = vmatpush1.bf16.msra.mxu0 %v713
      %1126 = vmatprep.subr.bf16.mxu0 0
      %1127 = vmatpush1.bf16.msra.mxu0 0
      %1128 = vmatprep.subr.bf16.mxu0 0
      %1129 = vmatpush1.bf16.msra.mxu0 0
      %1130 = vmatprep.subr.bf16.mxu0 0
      %1131 = vmatpush1.bf16.msra.mxu0 0
      %1132 = vmatprep.subr.bf16.mxu0 0
      %1133 = vmatpush1.bf16.msra.mxu0 0
      %1134 = vmatprep.subr.bf16.mxu0 0
      %1135 = vmatpush1.bf16.msra.mxu0 0
      %1136 = vmatprep.subr.bf16.mxu0 0
      %1137 = vmatpush1.bf16.msra.mxu0 0
      %1138 = vmatprep.subr.bf16.mxu0 0
      %1139 = vmatpush1.bf16.msra.mxu0 0
      %1140 = vmatprep.subr.bf16.mxu0 0
      %1141 = vmatpush1.bf16.msra.mxu0 0
      %1142 = vmatprep.subr.bf16.mxu0 0
      %1143 = vmatpush1.bf16.msra.mxu0 0
      %1144 = vmatprep.subr.bf16.mxu0 0
      %1145 = vmatpush1.bf16.msra.mxu0 0
      %1146 = vmatprep.subr.bf16.mxu0 0
      %1147 = vmatpush1.bf16.msra.mxu0 0
      %1148 = vmatprep.subr.bf16.mxu0 0
      %1149 = vmatpush1.bf16.msra.mxu0 0
      %1150 = vmatprep.subr.bf16.mxu0 0
      %1151 = vmatpush1.bf16.msra.mxu0 0
      %1152 = vmatprep.subr.bf16.mxu0 0
      %1153 = vmatpush1.bf16.msra.mxu0 0
      %1154 = vmatprep.mubr.bf16.mxu0 0
      %1155 = vmatmul.mubr.bf16.gmra.mrb[0].mxu0 %v746
      %v1156 = vpop.f32.mrb[0].mxu0
      %v1157 = vadd.f32 %v578, %v1156
      %v1158 = vpop.f32.mrb[0].mxu0
      %v1159 = vadd.f32 %v582, %v1158
      %v1160 = vpop.f32.mrb[0].mxu0
      %v1161 = vadd.f32 %v578, %v1160
      %v1162 = vpop.f32.mrb[0].mxu0
      %v1163 = vadd.f32 %v582, %v1162
      %1164 = vmatprep.mubr.bf16.mxu0 0
      %1165 = vmatmul.mubr.bf16.gmra.mrb[0].mxu0 %v749
      %v1166 = vpop.f32.mrb[0].mxu0
      %v1167 = vadd.f32 %v578, %v1166
      %v1168 = vpop.f32.mrb[0].mxu0
      %v1169 = vadd.f32 %v582, %v1168
      %v1170 = vpop.f32.mrb[0].mxu0
      %v1171 = vadd.f32 %v578, %v1170
      %v1172 = vpop.f32.mrb[0].mxu0
      %v1173 = vadd.f32 %v582, %v1172
      %1174 = vmatprep.mubr.bf16.mxu0 0
      %1175 = vmatmul.mubr.bf16.gmra.mrb[0].mxu0 %v752
      %v1176 = vpop.f32.mrb[0].mxu0
      %v1177 = vadd.f32 %v578, %v1176
      %v1178 = vpop.f32.mrb[0].mxu0
      %v1179 = vadd.f32 %v582, %v1178
      %v1180 = vpop.f32.mrb[0].mxu0
      %v1181 = vadd.f32 %v578, %v1180
      %v1182 = vpop.f32.mrb[0].mxu0
      %v1183 = vadd.f32 %v582, %v1182
      %1184 = vmatprep.mubr.bf16.mxu0 0
      %1185 = vmatmul.mubr.bf16.gmra.mrb[0].mxu0 %v755
      %v1186 = vpop.f32.mrb[0].mxu0
      %v1187 = vadd.f32 %v578, %v1186
      %v1188 = vpop.f32.mrb[0].mxu0
      %v1189 = vadd.f32 %v582, %v1188
      %v1190 = vpop.f32.mrb[0].mxu0
      %v1191 = vadd.f32 %v578, %v1190
      %v1192 = vpop.f32.mrb[0].mxu0
      %v1193 = vadd.f32 %v582, %v1192
      %1194 = vdwg.mxu0
      %1195 = vmatprep.subr.bf16.mxu0 %v702
      %1196 = vmatpush1.bf16.msra.mxu0 %v701
      %1197 = vmatprep.subr.bf16.mxu0 %v716
      %1198 = vmatpush1.bf16.msra.mxu0 %v715
      %1199 = vmatprep.subr.bf16.mxu0 0
      %1200 = vmatpush1.bf16.msra.mxu0 0
      %1201 = vmatprep.subr.bf16.mxu0 0
      %1202 = vmatpush1.bf16.msra.mxu0 0
      %1203 = vmatprep.subr.bf16.mxu0 0
      %1204 = vmatpush1.bf16.msra.mxu0 0
      %1205 = vmatprep.subr.bf16.mxu0 0
      %1206 = vmatpush1.bf16.msra.mxu0 0
      %1207 = vmatprep.subr.bf16.mxu0 0
      %1208 = vmatpush1.bf16.msra.mxu0 0
      %1209 = vmatprep.subr.bf16.mxu0 0
      %1210 = vmatpush1.bf16.msra.mxu0 0
      %1211 = vmatprep.subr.bf16.mxu0 0
      %1212 = vmatpush1.bf16.msra.mxu0 0
      %1213 = vmatprep.subr.bf16.mxu0 0
      %1214 = vmatpush1.bf16.msra.mxu0 0
      %1215 = vmatprep.subr.bf16.mxu0 0
      %1216 = vmatpush1.bf16.msra.mxu0 0
      %1217 = vmatprep.subr.bf16.mxu0 0
      %1218 = vmatpush1.bf16.msra.mxu0 0
      %1219 = vmatprep.subr.bf16.mxu0 0
      %1220 = vmatpush1.bf16.msra.mxu0 0
      %1221 = vmatprep.subr.bf16.mxu0 0
      %1222 = vmatpush1.bf16.msra.mxu0 0
      %1223 = vmatprep.subr.bf16.mxu0 0
      %1224 = vmatpush1.bf16.msra.mxu0 0
      %1225 = vmatprep.subr.bf16.mxu0 0
      %1226 = vmatpush1.bf16.msra.mxu0 0
      %1227 = vmatprep.mubr.bf16.mxu0 0
      %1228 = vmatmul.mubr.bf16.gmra.mrb[0].mxu0 %v746
      %v1229 = vpop.f32.mrb[0].mxu0
      %v1230 = vadd.f32 %v586, %v1229
      %v1231 = vpop.f32.mrb[0].mxu0
      %v1232 = vadd.f32 %v590, %v1231
      %v1233 = vpop.f32.mrb[0].mxu0
      %v1234 = vadd.f32 %v586, %v1233
      %v1235 = vpop.f32.mrb[0].mxu0
      %v1236 = vadd.f32 %v590, %v1235
      %1237 = vmatprep.mubr.bf16.mxu0 0
      %1238 = vmatmul.mubr.bf16.gmra.mrb[0].mxu0 %v749
      %v1239 = vpop.f32.mrb[0].mxu0
      %v1240 = vadd.f32 %v586, %v1239
      %v1241 = vpop.f32.mrb[0].mxu0
      %v1242 = vadd.f32 %v590, %v1241
      %v1243 = vpop.f32.mrb[0].mxu0
      %v1244 = vadd.f32 %v586, %v1243
      %v1245 = vpop.f32.mrb[0].mxu0
      %v1246 = vadd.f32 %v590, %v1245
      %1247 = vmatprep.mubr.bf16.mxu0 0
      %1248 = vmatmul.mubr.bf16.gmra.mrb[0].mxu0 %v752
      %v1249 = vpop.f32.mrb[0].mxu0
      %v1250 = vadd.f32 %v586, %v1249
      %v1251 = vpop.f32.mrb[0].mxu0
      %v1252 = vadd.f32 %v590, %v1251
      %v1253 = vpop.f32.mrb[0].mxu0
      %v1254 = vadd.f32 %v586, %v1253
      %v1255 = vpop.f32.mrb[0].mxu0
      %v1256 = vadd.f32 %v590, %v1255
      %1257 = vmatprep.mubr.bf16.mxu0 0
      %1258 = vmatmul.mubr.bf16.gmra.mrb[0].mxu0 %v755
      %v1259 = vpop.f32.mrb[0].mxu0
      %v1260 = vadd.f32 %v586, %v1259
      %v1261 = vpop.f32.mrb[0].mxu0
      %v1262 = vadd.f32 %v590, %v1261
      %v1263 = vpop.f32.mrb[0].mxu0
      %v1264 = vadd.f32 %v586, %v1263
      %v1265 = vpop.f32.mrb[0].mxu0
      %v1266 = vadd.f32 %v590, %v1265
      %1267 = vdwg.mxu0
      %v1268 = vxor.u32 %v792, 2147483648
      %v1269 = vxor.u32 %v794, 2147483648
      %v1270 = vxor.u32 %v865, 2147483648
      %v1271 = vxor.u32 %v867, 2147483648
      %v1272 = vxor.u32 %v938, 2147483648
      %v1273 = vxor.u32 %v940, 2147483648
      %v1274 = vxor.u32 %v1011, 2147483648
      %v1275 = vxor.u32 %v1013, 2147483648
      %v1276 = vxor.u32 %v1084, 2147483648
      %v1277 = vxor.u32 %v1086, 2147483648
      %v1278 = vxor.u32 %v1157, 2147483648
      %v1279 = vxor.u32 %v1159, 2147483648
      %v1280 = vxor.u32 %v1230, 2147483648
      %v1281 = vxor.u32 %v1232, 2147483648
      %v1282 = vxor.u32 %v796, 2147483648
      %v1283 = vxor.u32 %v798, 2147483648
      %v1284 = vxor.u32 %v869, 2147483648
      %v1285 = vxor.u32 %v871, 2147483648
      %v1286 = vxor.u32 %v942, 2147483648
      %v1287 = vxor.u32 %v944, 2147483648
      %v1288 = vxor.u32 %v1015, 2147483648
      %v1289 = vxor.u32 %v1017, 2147483648
      %v1290 = vxor.u32 %v1088, 2147483648
      %v1291 = vxor.u32 %v1090, 2147483648
      %v1292 = vxor.u32 %v1161, 2147483648
      %v1293 = vxor.u32 %v1163, 2147483648
      %v1294 = vxor.u32 %v1234, 2147483648
      %v1295 = vxor.u32 %v1236, 2147483648
      %v1296 = vxor.u32 %v802, 2147483648
      %v1297 = vxor.u32 %v804, 2147483648
      %v1298 = vxor.u32 %v875, 2147483648
      %v1299 = vxor.u32 %v877, 2147483648
      %v1300 = vxor.u32 %v948, 2147483648
      %v1301 = vxor.u32 %v950, 2147483648
      %v1302 = vxor.u32 %v1021, 2147483648
      %v1303 = vxor.u32 %v1023, 2147483648
      %v1304 = vxor.u32 %v1094, 2147483648
      %v1305 = vxor.u32 %v1096, 2147483648
      %v1306 = vxor.u32 %v1167, 2147483648
      %v1307 = vxor.u32 %v1169, 2147483648
      %v1308 = vxor.u32 %v1240, 2147483648
      %v1309 = vxor.u32 %v1242, 2147483648
      %v1310 = vxor.u32 %v806, 2147483648
      %v1311 = vxor.u32 %v808, 2147483648
      %v1312 = vxor.u32 %v879, 2147483648
      %v1313 = vxor.u32 %v881, 2147483648
      %v1314 = vxor.u32 %v952, 2147483648
      %v1315 = vxor.u32 %v954, 2147483648
      %v1316 = vxor.u32 %v1025, 2147483648
      %v1317 = vxor.u32 %v1027, 2147483648
      %v1318 = vxor.u32 %v1098, 2147483648
      %v1319 = vxor.u32 %v1100, 2147483648
      %v1320 = vxor.u32 %v1171, 2147483648
      %v1321 = vxor.u32 %v1173, 2147483648
      %v1322 = vxor.u32 %v1244, 2147483648
      %v1323 = vxor.u32 %v1246, 2147483648
      %v1324 = vxor.u32 %v812, 2147483648
      %v1325 = vxor.u32 %v814, 2147483648
      %v1326 = vxor.u32 %v885, 2147483648
      %v1327 = vxor.u32 %v887, 2147483648
      %v1328 = vxor.u32 %v958, 2147483648
      %v1329 = vxor.u32 %v960, 2147483648
      %v1330 = vxor.u32 %v1031, 2147483648
      %v1331 = vxor.u32 %v1033, 2147483648
      %v1332 = vxor.u32 %v1104, 2147483648
      %v1333 = vxor.u32 %v1106, 2147483648
      %v1334 = vxor.u32 %v1177, 2147483648
      %v1335 = vxor.u32 %v1179, 2147483648
      %v1336 = vxor.u32 %v1250, 2147483648
      %v1337 = vxor.u32 %v1252, 2147483648
      %v1338 = vxor.u32 %v816, 2147483648
      %v1339 = vxor.u32 %v818, 2147483648
      %v1340 = vxor.u32 %v889, 2147483648
      %v1341 = vxor.u32 %v891, 2147483648
      %v1342 = vxor.u32 %v962, 2147483648
      %v1343 = vxor.u32 %v964, 2147483648
      %v1344 = vxor.u32 %v1035, 2147483648
      %v1345 = vxor.u32 %v1037, 2147483648
      %v1346 = vxor.u32 %v1108, 2147483648
      %v1347 = vxor.u32 %v1110, 2147483648
      %v1348 = vxor.u32 %v1181, 2147483648
      %v1349 = vxor.u32 %v1183, 2147483648
      %v1350 = vxor.u32 %v1254, 2147483648
      %v1351 = vxor.u32 %v1256, 2147483648
      %v1352 = vxor.u32 %v822, 2147483648
      %v1353 = vxor.u32 %v824, 2147483648
      %v1354 = vxor.u32 %v895, 2147483648
      %v1355 = vxor.u32 %v897, 2147483648
      %v1356 = vxor.u32 %v968, 2147483648
      %v1357 = vxor.u32 %v970, 2147483648
      %v1358 = vxor.u32 %v1041, 2147483648
      %v1359 = vxor.u32 %v1043, 2147483648
      %v1360 = vxor.u32 %v1114, 2147483648
      %v1361 = vxor.u32 %v1116, 2147483648
      %v1362 = vxor.u32 %v1187, 2147483648
      %v1363 = vxor.u32 %v1189, 2147483648
      %v1364 = vxor.u32 %v1260, 2147483648
      %v1365 = vxor.u32 %v1262, 2147483648
      %v1366 = vxor.u32 %v826, 2147483648
      %v1367 = vxor.u32 %v828, 2147483648
      %v1368 = vxor.u32 %v899, 2147483648
      %v1369 = vxor.u32 %v901, 2147483648
      %v1370 = vxor.u32 %v972, 2147483648
      %v1371 = vxor.u32 %v974, 2147483648
      %v1372 = vxor.u32 %v1045, 2147483648
      %v1373 = vxor.u32 %v1047, 2147483648
      %v1374 = vxor.u32 %v1118, 2147483648
      %v1375 = vxor.u32 %v1120, 2147483648
      %v1376 = vxor.u32 %v1191, 2147483648
      %v1377 = vxor.u32 %v1193, 2147483648
      %v1378 = vxor.u32 %v1264, 2147483648
      %v1379 = vxor.u32 %v1266, 2147483648
      %v1380 = vmul.f32 %v1268, 1.442695
      %v1381 = vpow.pop %v1380
      %v1382 = vmul.f32 %v1269, 1.442695
      %v1383 = vpow.pop %v1382
      %v1384 = vmul.f32 %v1270, 1.442695
      %v1385 = vpow.pop %v1384
      %v1386 = vmul.f32 %v1271, 1.442695
      %v1387 = vpow.pop %v1386
      %v1388 = vmul.f32 %v1272, 1.442695
      %v1389 = vpow.pop %v1388
      %v1390 = vmul.f32 %v1273, 1.442695
      %v1391 = vpow.pop %v1390
      %v1392 = vmul.f32 %v1274, 1.442695
      %v1393 = vpow.pop %v1392
      %v1394 = vmul.f32 %v1275, 1.442695
      %v1395 = vpow.pop %v1394
      %v1396 = vmul.f32 %v1276, 1.442695
      %v1397 = vpow.pop %v1396
      %v1398 = vmul.f32 %v1277, 1.442695
      %v1399 = vpow.pop %v1398
      %v1400 = vmul.f32 %v1278, 1.442695
      %v1401 = vpow.pop %v1400
      %v1402 = vmul.f32 %v1279, 1.442695
      %v1403 = vpow.pop %v1402
      %v1404 = vmul.f32 %v1280, 1.442695
      %v1405 = vpow.pop %v1404
      %v1406 = vmul.f32 %v1281, 1.442695
      %v1407 = vpow.pop %v1406
      %v1408 = vmul.f32 %v1282, 1.442695
      %v1409 = vpow.pop %v1408
      %v1410 = vmul.f32 %v1283, 1.442695
      %v1411 = vpow.pop %v1410
      %v1412 = vmul.f32 %v1284, 1.442695
      %v1413 = vpow.pop %v1412
      %v1414 = vmul.f32 %v1285, 1.442695
      %v1415 = vpow.pop %v1414
      %v1416 = vmul.f32 %v1286, 1.442695
      %v1417 = vpow.pop %v1416
      %v1418 = vmul.f32 %v1287, 1.442695
      %v1419 = vpow.pop %v1418
      %v1420 = vmul.f32 %v1288, 1.442695
      %v1421 = vpow.pop %v1420
      %v1422 = vmul.f32 %v1289, 1.442695
      %v1423 = vpow.pop %v1422
      %v1424 = vmul.f32 %v1290, 1.442695
      %v1425 = vpow.pop %v1424
      %v1426 = vmul.f32 %v1291, 1.442695
      %v1427 = vpow.pop %v1426
      %v1428 = vmul.f32 %v1292, 1.442695
      %v1429 = vpow.pop %v1428
      %v1430 = vmul.f32 %v1293, 1.442695
      %v1431 = vpow.pop %v1430
      %v1432 = vmul.f32 %v1294, 1.442695
      %v1433 = vpow.pop %v1432
      %v1434 = vmul.f32 %v1295, 1.442695
      %v1435 = vpow.pop %v1434
      %v1436 = vmul.f32 %v1296, 1.442695
      %v1437 = vpow.pop %v1436
      %v1438 = vmul.f32 %v1297, 1.442695
      %v1439 = vpow.pop %v1438
      %v1440 = vmul.f32 %v1298, 1.442695
      %v1441 = vpow.pop %v1440
      %v1442 = vmul.f32 %v1299, 1.442695
      %v1443 = vpow.pop %v1442
      %v1444 = vmul.f32 %v1300, 1.442695
      %v1445 = vpow.pop %v1444
      %v1446 = vmul.f32 %v1301, 1.442695
      %v1447 = vpow.pop %v1446
      %v1448 = vmul.f32 %v1302, 1.442695
      %v1449 = vpow.pop %v1448
      %v1450 = vmul.f32 %v1303, 1.442695
      %v1451 = vpow.pop %v1450
      %v1452 = vmul.f32 %v1304, 1.442695
      %v1453 = vpow.pop %v1452
      %v1454 = vmul.f32 %v1305, 1.442695
      %v1455 = vpow.pop %v1454
      %v1456 = vmul.f32 %v1306, 1.442695
      %v1457 = vpow.pop %v1456
      %v1458 = vmul.f32 %v1307, 1.442695
      %v1459 = vpow.pop %v1458
      %v1460 = vmul.f32 %v1308, 1.442695
      %v1461 = vpow.pop %v1460
      %v1462 = vmul.f32 %v1309, 1.442695
      %v1463 = vpow.pop %v1462
      %v1464 = vmul.f32 %v1310, 1.442695
      %v1465 = vpow.pop %v1464
      %v1466 = vmul.f32 %v1311, 1.442695
      %v1467 = vpow.pop %v1466
      %v1468 = vmul.f32 %v1312, 1.442695
      %v1469 = vpow.pop %v1468
      %v1470 = vmul.f32 %v1313, 1.442695
      %v1471 = vpow.pop %v1470
      %v1472 = vmul.f32 %v1314, 1.442695
      %v1473 = vpow.pop %v1472
      %v1474 = vmul.f32 %v1315, 1.442695
      %v1475 = vpow.pop %v1474
      %v1476 = vmul.f32 %v1316, 1.442695
      %v1477 = vpow.pop %v1476
      %v1478 = vmul.f32 %v1317, 1.442695
      %v1479 = vpow.pop %v1478
      %v1480 = vmul.f32 %v1318, 1.442695
      %v1481 = vpow.pop %v1480
      %v1482 = vmul.f32 %v1319, 1.442695
      %v1483 = vpow.pop %v1482
      %v1484 = vmul.f32 %v1320, 1.442695
      %v1485 = vpow.pop %v1484
      %v1486 = vmul.f32 %v1321, 1.442695
      %v1487 = vpow.pop %v1486
      %v1488 = vmul.f32 %v1322, 1.442695
      %v1489 = vpow.pop %v1488
      %v1490 = vmul.f32 %v1323, 1.442695
      %v1491 = vpow.pop %v1490
      %v1492 = vmul.f32 %v1324, 1.442695
      %v1493 = vpow.pop %v1492
      %v1494 = vmul.f32 %v1325, 1.442695
      %v1495 = vpow.pop %v1494
      %v1496 = vmul.f32 %v1326, 1.442695
      %v1497 = vpow.pop %v1496
      %v1498 = vmul.f32 %v1327, 1.442695
      %v1499 = vpow.pop %v1498
      %v1500 = vmul.f32 %v1328, 1.442695
      %v1501 = vpow.pop %v1500
      %v1502 = vmul.f32 %v1329, 1.442695
      %v1503 = vpow.pop %v1502
      %v1504 = vmul.f32 %v1330, 1.442695
      %v1505 = vpow.pop %v1504
      %v1506 = vmul.f32 %v1331, 1.442695
      %v1507 = vpow.pop %v1506
      %v1508 = vmul.f32 %v1332, 1.442695
      %v1509 = vpow.pop %v1508
      %v1510 = vmul.f32 %v1333, 1.442695
      %v1511 = vpow.pop %v1510
      %v1512 = vmul.f32 %v1334, 1.442695
      %v1513 = vpow.pop %v1512
      %v1514 = vmul.f32 %v1335, 1.442695
      %v1515 = vpow.pop %v1514
      %v1516 = vmul.f32 %v1336, 1.442695
      %v1517 = vpow.pop %v1516
      %v1518 = vmul.f32 %v1337, 1.442695
      %v1519 = vpow.pop %v1518
      %v1520 = vmul.f32 %v1338, 1.442695
      %v1521 = vpow.pop %v1520
      %v1522 = vmul.f32 %v1339, 1.442695
      %v1523 = vpow.pop %v1522
      %v1524 = vmul.f32 %v1340, 1.442695
      %v1525 = vpow.pop %v1524
      %v1526 = vmul.f32 %v1341, 1.442695
      %v1527 = vpow.pop %v1526
      %v1528 = vmul.f32 %v1342, 1.442695
      %v1529 = vpow.pop %v1528
      %v1530 = vmul.f32 %v1343, 1.442695
      %v1531 = vpow.pop %v1530
      %v1532 = vmul.f32 %v1344, 1.442695
      %v1533 = vpow.pop %v1532
      %v1534 = vmul.f32 %v1345, 1.442695
      %v1535 = vpow.pop %v1534
      %v1536 = vmul.f32 %v1346, 1.442695
      %v1537 = vpow.pop %v1536
      %v1538 = vmul.f32 %v1347, 1.442695
      %v1539 = vpow.pop %v1538
      %v1540 = vmul.f32 %v1348, 1.442695
      %v1541 = vpow.pop %v1540
      %v1542 = vmul.f32 %v1349, 1.442695
      %v1543 = vpow.pop %v1542
      %v1544 = vmul.f32 %v1350, 1.442695
      %v1545 = vpow.pop %v1544
      %v1546 = vmul.f32 %v1351, 1.442695
      %v1547 = vpow.pop %v1546
      %v1548 = vmul.f32 %v1352, 1.442695
      %v1549 = vpow.pop %v1548
      %v1550 = vmul.f32 %v1353, 1.442695
      %v1551 = vpow.pop %v1550
      %v1552 = vmul.f32 %v1354, 1.442695
      %v1553 = vpow.pop %v1552
      %v1554 = vmul.f32 %v1355, 1.442695
      %v1555 = vpow.pop %v1554
      %v1556 = vmul.f32 %v1356, 1.442695
      %v1557 = vpow.pop %v1556
      %v1558 = vmul.f32 %v1357, 1.442695
      %v1559 = vpow.pop %v1558
      %v1560 = vmul.f32 %v1358, 1.442695
      %v1561 = vpow.pop %v1560
      %v1562 = vmul.f32 %v1359, 1.442695
      %v1563 = vpow.pop %v1562
      %v1564 = vmul.f32 %v1360, 1.442695
      %v1565 = vpow.pop %v1564
      %v1566 = vmul.f32 %v1361, 1.442695
      %v1567 = vpow.pop %v1566
      %v1568 = vmul.f32 %v1362, 1.442695
      %v1569 = vpow.pop %v1568
      %v1570 = vmul.f32 %v1363, 1.442695
      %v1571 = vpow.pop %v1570
      %v1572 = vmul.f32 %v1364, 1.442695
      %v1573 = vpow.pop %v1572
      %v1574 = vmul.f32 %v1365, 1.442695
      %v1575 = vpow.pop %v1574
      %v1576 = vmul.f32 %v1366, 1.442695
      %v1577 = vpow.pop %v1576
      %v1578 = vmul.f32 %v1367, 1.442695
      %v1579 = vpow.pop %v1578
      %v1580 = vmul.f32 %v1368, 1.442695
      %v1581 = vpow.pop %v1580
      %v1582 = vmul.f32 %v1369, 1.442695
      %v1583 = vpow.pop %v1582
      %v1584 = vmul.f32 %v1370, 1.442695
      %v1585 = vpow.pop %v1584
      %v1586 = vmul.f32 %v1371, 1.442695
      %v1587 = vpow.pop %v1586
      %v1588 = vmul.f32 %v1372, 1.442695
      %v1589 = vpow.pop %v1588
      %v1590 = vmul.f32 %v1373, 1.442695
      %v1591 = vpow.pop %v1590
      %v1592 = vmul.f32 %v1374, 1.442695
      %v1593 = vpow.pop %v1592
      %v1594 = vmul.f32 %v1375, 1.442695
      %v1595 = vpow.pop %v1594
      %v1596 = vmul.f32 %v1376, 1.442695
      %v1597 = vpow.pop %v1596
      %v1598 = vmul.f32 %v1377, 1.442695
      %v1599 = vpow.pop %v1598
      %v1600 = vmul.f32 %v1378, 1.442695
      %v1601 = vpow.pop %v1600
      %v1602 = vmul.f32 %v1379, 1.442695
      %v1603 = vpow.pop %v1602
      %v1604 = vadd.f32 %v1381, 1.0
      %v1605 = vadd.f32 %v1383, 1.0
      %v1606 = vadd.f32 %v1385, 1.0
      %v1607 = vadd.f32 %v1387, 1.0
      %v1608 = vadd.f32 %v1389, 1.0
      %v1609 = vadd.f32 %v1391, 1.0
      %v1610 = vadd.f32 %v1393, 1.0
      %v1611 = vadd.f32 %v1395, 1.0
      %v1612 = vadd.f32 %v1397, 1.0
      %v1613 = vadd.f32 %v1399, 1.0
      %v1614 = vadd.f32 %v1401, 1.0
      %v1615 = vadd.f32 %v1403, 1.0
      %v1616 = vadd.f32 %v1405, 1.0
      %v1617 = vadd.f32 %v1407, 1.0
      %v1618 = vadd.f32 %v1409, 1.0
      %v1619 = vadd.f32 %v1411, 1.0
      %v1620 = vadd.f32 %v1413, 1.0
      %v1621 = vadd.f32 %v1415, 1.0
      %v1622 = vadd.f32 %v1417, 1.0
      %v1623 = vadd.f32 %v1419, 1.0
      %v1624 = vadd.f32 %v1421, 1.0
      %v1625 = vadd.f32 %v1423, 1.0
      %v1626 = vadd.f32 %v1425, 1.0
      %v1627 = vadd.f32 %v1427, 1.0
      %v1628 = vadd.f32 %v1429, 1.0
      %v1629 = vadd.f32 %v1431, 1.0
      %v1630 = vadd.f32 %v1433, 1.0
      %v1631 = vadd.f32 %v1435, 1.0
      %v1632 = vadd.f32 %v1437, 1.0
      %v1633 = vadd.f32 %v1439, 1.0
      %v1634 = vadd.f32 %v1441, 1.0
      %v1635 = vadd.f32 %v1443, 1.0
      %v1636 = vadd.f32 %v1445, 1.0
      %v1637 = vadd.f32 %v1447, 1.0
      %v1638 = vadd.f32 %v1449, 1.0
      %v1639 = vadd.f32 %v1451, 1.0
      %v1640 = vadd.f32 %v1453, 1.0
      %v1641 = vadd.f32 %v1455, 1.0
      %v1642 = vadd.f32 %v1457, 1.0
      %v1643 = vadd.f32 %v1459, 1.0
      %v1644 = vadd.f32 %v1461, 1.0
      %v1645 = vadd.f32 %v1463, 1.0
      %v1646 = vadd.f32 %v1465, 1.0
      %v1647 = vadd.f32 %v1467, 1.0
      %v1648 = vadd.f32 %v1469, 1.0
      %v1649 = vadd.f32 %v1471, 1.0
      %v1650 = vadd.f32 %v1473, 1.0
      %v1651 = vadd.f32 %v1475, 1.0
      %v1652 = vadd.f32 %v1477, 1.0
      %v1653 = vadd.f32 %v1479, 1.0
      %v1654 = vadd.f32 %v1481, 1.0
      %v1655 = vadd.f32 %v1483, 1.0
      %v1656 = vadd.f32 %v1485, 1.0
      %v1657 = vadd.f32 %v1487, 1.0
      %v1658 = vadd.f32 %v1489, 1.0
      %v1659 = vadd.f32 %v1491, 1.0
      %v1660 = vadd.f32 %v1493, 1.0
      %v1661 = vadd.f32 %v1495, 1.0
      %v1662 = vadd.f32 %v1497, 1.0
      %v1663 = vadd.f32 %v1499, 1.0
      %v1664 = vadd.f32 %v1501, 1.0
      %v1665 = vadd.f32 %v1503, 1.0
      %v1666 = vadd.f32 %v1505, 1.0
      %v1667 = vadd.f32 %v1507, 1.0
      %v1668 = vadd.f32 %v1509, 1.0
      %v1669 = vadd.f32 %v1511, 1.0
      %v1670 = vadd.f32 %v1513, 1.0
      %v1671 = vadd.f32 %v1515, 1.0
      %v1672 = vadd.f32 %v1517, 1.0
      %v1673 = vadd.f32 %v1519, 1.0
      %v1674 = vadd.f32 %v1521, 1.0
      %v1675 = vadd.f32 %v1523, 1.0
      %v1676 = vadd.f32 %v1525, 1.0
      %v1677 = vadd.f32 %v1527, 1.0
      %v1678 = vadd.f32 %v1529, 1.0
      %v1679 = vadd.f32 %v1531, 1.0
      %v1680 = vadd.f32 %v1533, 1.0
      %v1681 = vadd.f32 %v1535, 1.0
      %v1682 = vadd.f32 %v1537, 1.0
      %v1683 = vadd.f32 %v1539, 1.0
      %v1684 = vadd.f32 %v1541, 1.0
      %v1685 = vadd.f32 %v1543, 1.0
      %v1686 = vadd.f32 %v1545, 1.0
      %v1687 = vadd.f32 %v1547, 1.0
      %v1688 = vadd.f32 %v1549, 1.0
      %v1689 = vadd.f32 %v1551, 1.0
      %v1690 = vadd.f32 %v1553, 1.0
      %v1691 = vadd.f32 %v1555, 1.0
      %v1692 = vadd.f32 %v1557, 1.0
      %v1693 = vadd.f32 %v1559, 1.0
      %v1694 = vadd.f32 %v1561, 1.0
      %v1695 = vadd.f32 %v1563, 1.0
      %v1696 = vadd.f32 %v1565, 1.0
      %v1697 = vadd.f32 %v1567, 1.0
      %v1698 = vadd.f32 %v1569, 1.0
      %v1699 = vadd.f32 %v1571, 1.0
      %v1700 = vadd.f32 %v1573, 1.0
      %v1701 = vadd.f32 %v1575, 1.0
      %v1702 = vadd.f32 %v1577, 1.0
      %v1703 = vadd.f32 %v1579, 1.0
      %v1704 = vadd.f32 %v1581, 1.0
      %v1705 = vadd.f32 %v1583, 1.0
      %v1706 = vadd.f32 %v1585, 1.0
      %v1707 = vadd.f32 %v1587, 1.0
      %v1708 = vadd.f32 %v1589, 1.0
      %v1709 = vadd.f32 %v1591, 1.0
      %v1710 = vadd.f32 %v1593, 1.0
      %v1711 = vadd.f32 %v1595, 1.0
      %v1712 = vadd.f32 %v1597, 1.0
      %v1713 = vadd.f32 %v1599, 1.0
      %v1714 = vadd.f32 %v1601, 1.0
      %v1715 = vadd.f32 %v1603, 1.0
      %v1716 = vrcp.pop %v1604
      %v1717 = vmul.f32 1.0, %v1716
      %v1718 = vrcp.pop %v1605
      %v1719 = vmul.f32 1.0, %v1718
      %v1720 = vrcp.pop %v1606
      %v1721 = vmul.f32 1.0, %v1720
      %v1722 = vrcp.pop %v1607
      %v1723 = vmul.f32 1.0, %v1722
      %v1724 = vrcp.pop %v1608
      %v1725 = vmul.f32 1.0, %v1724
      %v1726 = vrcp.pop %v1609
      %v1727 = vmul.f32 1.0, %v1726
      %v1728 = vrcp.pop %v1610
      %v1729 = vmul.f32 1.0, %v1728
      %v1730 = vrcp.pop %v1611
      %v1731 = vmul.f32 1.0, %v1730
      %v1732 = vrcp.pop %v1612
      %v1733 = vmul.f32 1.0, %v1732
      %v1734 = vrcp.pop %v1613
      %v1735 = vmul.f32 1.0, %v1734
      %v1736 = vrcp.pop %v1614
      %v1737 = vmul.f32 1.0, %v1736
      %v1738 = vrcp.pop %v1615
      %v1739 = vmul.f32 1.0, %v1738
      %v1740 = vrcp.pop %v1616
      %v1741 = vmul.f32 1.0, %v1740
      %v1742 = vrcp.pop %v1617
      %v1743 = vmul.f32 1.0, %v1742
      %v1744 = vrcp.pop %v1618
      %v1745 = vmul.f32 1.0, %v1744
      %v1746 = vrcp.pop %v1619
      %v1747 = vmul.f32 1.0, %v1746
      %v1748 = vrcp.pop %v1620
      %v1749 = vmul.f32 1.0, %v1748
      %v1750 = vrcp.pop %v1621
      %v1751 = vmul.f32 1.0, %v1750
      %v1752 = vrcp.pop %v1622
      %v1753 = vmul.f32 1.0, %v1752
      %v1754 = vrcp.pop %v1623
      %v1755 = vmul.f32 1.0, %v1754
      %v1756 = vrcp.pop %v1624
      %v1757 = vmul.f32 1.0, %v1756
      %v1758 = vrcp.pop %v1625
      %v1759 = vmul.f32 1.0, %v1758
      %v1760 = vrcp.pop %v1626
      %v1761 = vmul.f32 1.0, %v1760
      %v1762 = vrcp.pop %v1627
      %v1763 = vmul.f32 1.0, %v1762
      %v1764 = vrcp.pop %v1628
      %v1765 = vmul.f32 1.0, %v1764
      %v1766 = vrcp.pop %v1629
      %v1767 = vmul.f32 1.0, %v1766
      %v1768 = vrcp.pop %v1630
      %v1769 = vmul.f32 1.0, %v1768
      %v1770 = vrcp.pop %v1631
      %v1771 = vmul.f32 1.0, %v1770
      %v1772 = vrcp.pop %v1632
      %v1773 = vmul.f32 1.0, %v1772
      %v1774 = vrcp.pop %v1633
      %v1775 = vmul.f32 1.0, %v1774
      %v1776 = vrcp.pop %v1634
      %v1777 = vmul.f32 1.0, %v1776
      %v1778 = vrcp.pop %v1635
      %v1779 = vmul.f32 1.0, %v1778
      %v1780 = vrcp.pop %v1636
      %v1781 = vmul.f32 1.0, %v1780
      %v1782 = vrcp.pop %v1637
      %v1783 = vmul.f32 1.0, %v1782
      %v1784 = vrcp.pop %v1638
      %v1785 = vmul.f32 1.0, %v1784
      %v1786 = vrcp.pop %v1639
      %v1787 = vmul.f32 1.0, %v1786
      %v1788 = vrcp.pop %v1640
      %v1789 = vmul.f32 1.0, %v1788
      %v1790 = vrcp.pop %v1641
      %v1791 = vmul.f32 1.0, %v1790
      %v1792 = vrcp.pop %v1642
      %v1793 = vmul.f32 1.0, %v1792
      %v1794 = vrcp.pop %v1643
      %v1795 = vmul.f32 1.0, %v1794
      %v1796 = vrcp.pop %v1644
      %v1797 = vmul.f32 1.0, %v1796
      %v1798 = vrcp.pop %v1645
      %v1799 = vmul.f32 1.0, %v1798
      %v1800 = vrcp.pop %v1646
      %v1801 = vmul.f32 1.0, %v1800
      %v1802 = vrcp.pop %v1647
      %v1803 = vmul.f32 1.0, %v1802
      %v1804 = vrcp.pop %v1648
      %v1805 = vmul.f32 1.0, %v1804
      %v1806 = vrcp.pop %v1649
      %v1807 = vmul.f32 1.0, %v1806
      %v1808 = vrcp.pop %v1650
      %v1809 = vmul.f32 1.0, %v1808
      %v1810 = vrcp.pop %v1651
      %v1811 = vmul.f32 1.0, %v1810
      %v1812 = vrcp.pop %v1652
      %v1813 = vmul.f32 1.0, %v1812
      %v1814 = vrcp.pop %v1653
      %v1815 = vmul.f32 1.0, %v1814
      %v1816 = vrcp.pop %v1654
      %v1817 = vmul.f32 1.0, %v1816
      %v1818 = vrcp.pop %v1655
      %v1819 = vmul.f32 1.0, %v1818
      %v1820 = vrcp.pop %v1656
      %v1821 = vmul.f32 1.0, %v1820
      %v1822 = vrcp.pop %v1657
      %v1823 = vmul.f32 1.0, %v1822
      %v1824 = vrcp.pop %v1658
      %v1825 = vmul.f32 1.0, %v1824
      %v1826 = vrcp.pop %v1659
      %v1827 = vmul.f32 1.0, %v1826
      %v1828 = vrcp.pop %v1660
      %v1829 = vmul.f32 1.0, %v1828
      %v1830 = vrcp.pop %v1661
      %v1831 = vmul.f32 1.0, %v1830
      %v1832 = vrcp.pop %v1662
      %v1833 = vmul.f32 1.0, %v1832
      %v1834 = vrcp.pop %v1663
      %v1835 = vmul.f32 1.0, %v1834
      %v1836 = vrcp.pop %v1664
      %v1837 = vmul.f32 1.0, %v1836
      %v1838 = vrcp.pop %v1665
      %v1839 = vmul.f32 1.0, %v1838
      %v1840 = vrcp.pop %v1666
      %v1841 = vmul.f32 1.0, %v1840
      %v1842 = vrcp.pop %v1667
      %v1843 = vmul.f32 1.0, %v1842
      %v1844 = vrcp.pop %v1668
      %v1845 = vmul.f32 1.0, %v1844
      %v1846 = vrcp.pop %v1669
      %v1847 = vmul.f32 1.0, %v1846
      %v1848 = vrcp.pop %v1670
      %v1849 = vmul.f32 1.0, %v1848
      %v1850 = vrcp.pop %v1671
      %v1851 = vmul.f32 1.0, %v1850
      %v1852 = vrcp.pop %v1672
      %v1853 = vmul.f32 1.0, %v1852
      %v1854 = vrcp.pop %v1673
      %v1855 = vmul.f32 1.0, %v1854
      %v1856 = vrcp.pop %v1674
      %v1857 = vmul.f32 1.0, %v1856
      %v1858 = vrcp.pop %v1675
      %v1859 = vmul.f32 1.0, %v1858
      %v1860 = vrcp.pop %v1676
      %v1861 = vmul.f32 1.0, %v1860
      %v1862 = vrcp.pop %v1677
      %v1863 = vmul.f32 1.0, %v1862
      %v1864 = vrcp.pop %v1678
      %v1865 = vmul.f32 1.0, %v1864
      %v1866 = vrcp.pop %v1679
      %v1867 = vmul.f32 1.0, %v1866
      %v1868 = vrcp.pop %v1680
      %v1869 = vmul.f32 1.0, %v1868
      %v1870 = vrcp.pop %v1681
      %v1871 = vmul.f32 1.0, %v1870
      %v1872 = vrcp.pop %v1682
      %v1873 = vmul.f32 1.0, %v1872
      %v1874 = vrcp.pop %v1683
      %v1875 = vmul.f32 1.0, %v1874
      %v1876 = vrcp.pop %v1684
      %v1877 = vmul.f32 1.0, %v1876
      %v1878 = vrcp.pop %v1685
      %v1879 = vmul.f32 1.0, %v1878
      %v1880 = vrcp.pop %v1686
      %v1881 = vmul.f32 1.0, %v1880
      %v1882 = vrcp.pop %v1687
      %v1883 = vmul.f32 1.0, %v1882
      %v1884 = vrcp.pop %v1688
      %v1885 = vmul.f32 1.0, %v1884
      %v1886 = vrcp.pop %v1689
      %v1887 = vmul.f32 1.0, %v1886
      %v1888 = vrcp.pop %v1690
      %v1889 = vmul.f32 1.0, %v1888
      %v1890 = vrcp.pop %v1691
      %v1891 = vmul.f32 1.0, %v1890
      %v1892 = vrcp.pop %v1692
      %v1893 = vmul.f32 1.0, %v1892
      %v1894 = vrcp.pop %v1693
      %v1895 = vmul.f32 1.0, %v1894
      %v1896 = vrcp.pop %v1694
      %v1897 = vmul.f32 1.0, %v1896
      %v1898 = vrcp.pop %v1695
      %v1899 = vmul.f32 1.0, %v1898
      %v1900 = vrcp.pop %v1696
      %v1901 = vmul.f32 1.0, %v1900
      %v1902 = vrcp.pop %v1697
      %v1903 = vmul.f32 1.0, %v1902
      %v1904 = vrcp.pop %v1698
      %v1905 = vmul.f32 1.0, %v1904
      %v1906 = vrcp.pop %v1699
      %v1907 = vmul.f32 1.0, %v1906
      %v1908 = vrcp.pop %v1700
      %v1909 = vmul.f32 1.0, %v1908
      %v1910 = vrcp.pop %v1701
      %v1911 = vmul.f32 1.0, %v1910
      %v1912 = vrcp.pop %v1702
      %v1913 = vmul.f32 1.0, %v1912
      %v1914 = vrcp.pop %v1703
      %v1915 = vmul.f32 1.0, %v1914
      %v1916 = vrcp.pop %v1704
      %v1917 = vmul.f32 1.0, %v1916
      %v1918 = vrcp.pop %v1705
      %v1919 = vmul.f32 1.0, %v1918
      %v1920 = vrcp.pop %v1706
      %v1921 = vmul.f32 1.0, %v1920
      %v1922 = vrcp.pop %v1707
      %v1923 = vmul.f32 1.0, %v1922
      %v1924 = vrcp.pop %v1708
      %v1925 = vmul.f32 1.0, %v1924
      %v1926 = vrcp.pop %v1709
      %v1927 = vmul.f32 1.0, %v1926
      %v1928 = vrcp.pop %v1710
      %v1929 = vmul.f32 1.0, %v1928
      %v1930 = vrcp.pop %v1711
      %v1931 = vmul.f32 1.0, %v1930
      %v1932 = vrcp.pop %v1712
      %v1933 = vmul.f32 1.0, %v1932
      %v1934 = vrcp.pop %v1713
      %v1935 = vmul.f32 1.0, %v1934
      %v1936 = vrcp.pop %v1714
      %v1937 = vmul.f32 1.0, %v1936
      %v1938 = vrcp.pop %v1715
      %v1939 = vmul.f32 1.0, %v1938
      %v1940 = vmul.f32 %v792, %v1717
      %v1941 = vmul.f32 %v794, %v1719
      %v1942 = vmul.f32 %v865, %v1721
      %v1943 = vmul.f32 %v867, %v1723
      %v1944 = vmul.f32 %v938, %v1725
      %v1945 = vmul.f32 %v940, %v1727
      %v1946 = vmul.f32 %v1011, %v1729
      %v1947 = vmul.f32 %v1013, %v1731
      %v1948 = vmul.f32 %v1084, %v1733
      %v1949 = vmul.f32 %v1086, %v1735
      %v1950 = vmul.f32 %v1157, %v1737
      %v1951 = vmul.f32 %v1159, %v1739
      %v1952 = vmul.f32 %v1230, %v1741
      %v1953 = vmul.f32 %v1232, %v1743
      %v1954 = vmul.f32 %v796, %v1745
      %v1955 = vmul.f32 %v798, %v1747
      %v1956 = vmul.f32 %v869, %v1749
      %v1957 = vmul.f32 %v871, %v1751
      %v1958 = vmul.f32 %v942, %v1753
      %v1959 = vmul.f32 %v944, %v1755
      %v1960 = vmul.f32 %v1015, %v1757
      %v1961 = vmul.f32 %v1017, %v1759
      %v1962 = vmul.f32 %v1088, %v1761
      %v1963 = vmul.f32 %v1090, %v1763
      %v1964 = vmul.f32 %v1161, %v1765
      %v1965 = vmul.f32 %v1163, %v1767
      %v1966 = vmul.f32 %v1234, %v1769
      %v1967 = vmul.f32 %v1236, %v1771
      %v1968 = vmul.f32 %v802, %v1773
      %v1969 = vmul.f32 %v804, %v1775
      %v1970 = vmul.f32 %v875, %v1777
      %v1971 = vmul.f32 %v877, %v1779
      %v1972 = vmul.f32 %v948, %v1781
      %v1973 = vmul.f32 %v950, %v1783
      %v1974 = vmul.f32 %v1021, %v1785
      %v1975 = vmul.f32 %v1023, %v1787
      %v1976 = vmul.f32 %v1094, %v1789
      %v1977 = vmul.f32 %v1096, %v1791
      %v1978 = vmul.f32 %v1167, %v1793
      %v1979 = vmul.f32 %v1169, %v1795
      %v1980 = vmul.f32 %v1240, %v1797
      %v1981 = vmul.f32 %v1242, %v1799
      %v1982 = vmul.f32 %v806, %v1801
      %v1983 = vmul.f32 %v808, %v1803
      %v1984 = vmul.f32 %v879, %v1805
      %v1985 = vmul.f32 %v881, %v1807
      %v1986 = vmul.f32 %v952, %v1809
      %v1987 = vmul.f32 %v954, %v1811
      %v1988 = vmul.f32 %v1025, %v1813
      %v1989 = vmul.f32 %v1027, %v1815
      %v1990 = vmul.f32 %v1098, %v1817
      %v1991 = vmul.f32 %v1100, %v1819
      %v1992 = vmul.f32 %v1171, %v1821
      %v1993 = vmul.f32 %v1173, %v1823
      %v1994 = vmul.f32 %v1244, %v1825
      %v1995 = vmul.f32 %v1246, %v1827
      %v1996 = vmul.f32 %v812, %v1829
      %v1997 = vmul.f32 %v814, %v1831
      %v1998 = vmul.f32 %v885, %v1833
      %v1999 = vmul.f32 %v887, %v1835
      %v2000 = vmul.f32 %v958, %v1837
      %v2001 = vmul.f32 %v960, %v1839
      %v2002 = vmul.f32 %v1031, %v1841
      %v2003 = vmul.f32 %v1033, %v1843
      %v2004 = vmul.f32 %v1104, %v1845
      %v2005 = vmul.f32 %v1106, %v1847
      %v2006 = vmul.f32 %v1177, %v1849
      %v2007 = vmul.f32 %v1179, %v1851
      %v2008 = vmul.f32 %v1250, %v1853
      %v2009 = vmul.f32 %v1252, %v1855
      %v2010 = vmul.f32 %v816, %v1857
      %v2011 = vmul.f32 %v818, %v1859
      %v2012 = vmul.f32 %v889, %v1861
      %v2013 = vmul.f32 %v891, %v1863
      %v2014 = vmul.f32 %v962, %v1865
      %v2015 = vmul.f32 %v964, %v1867
      %v2016 = vmul.f32 %v1035, %v1869
      %v2017 = vmul.f32 %v1037, %v1871
      %v2018 = vmul.f32 %v1108, %v1873
      %v2019 = vmul.f32 %v1110, %v1875
      %v2020 = vmul.f32 %v1181, %v1877
      %v2021 = vmul.f32 %v1183, %v1879
      %v2022 = vmul.f32 %v1254, %v1881
      %v2023 = vmul.f32 %v1256, %v1883
      %v2024 = vmul.f32 %v822, %v1885
      %v2025 = vmul.f32 %v824, %v1887
      %v2026 = vmul.f32 %v895, %v1889
      %v2027 = vmul.f32 %v897, %v1891
      %v2028 = vmul.f32 %v968, %v1893
      %v2029 = vmul.f32 %v970, %v1895
      %v2030 = vmul.f32 %v1041, %v1897
      %v2031 = vmul.f32 %v1043, %v1899
      %v2032 = vmul.f32 %v1114, %v1901
      %v2033 = vmul.f32 %v1116, %v1903
      %v2034 = vmul.f32 %v1187, %v1905
      %v2035 = vmul.f32 %v1189, %v1907
      %v2036 = vmul.f32 %v1260, %v1909
      %v2037 = vmul.f32 %v1262, %v1911
      %v2038 = vmul.f32 %v826, %v1913
      %v2039 = vmul.f32 %v828, %v1915
      %v2040 = vmul.f32 %v899, %v1917
      %v2041 = vmul.f32 %v901, %v1919
      %v2042 = vmul.f32 %v972, %v1921
      %v2043 = vmul.f32 %v974, %v1923
      %v2044 = vmul.f32 %v1045, %v1925
      %v2045 = vmul.f32 %v1047, %v1927
      %v2046 = vmul.f32 %v1118, %v1929
      %v2047 = vmul.f32 %v1120, %v1931
      %v2048 = vmul.f32 %v1191, %v1933
      %v2049 = vmul.f32 %v1193, %v1935
      %v2050 = vmul.f32 %v1264, %v1937
      %v2051 = vmul.f32 %v1266, %v1939
      %v2052 = vld [vmem:[#allocation2] sm:$0xff]
      %v2053 = vld [vmem:[#allocation2 + $0x8] sm:$0x3f]
      %v2054 = vadd.f32 %v1940, %v1954
      %v2055 = vadd.f32 %v2054, %v1968
      %v2056 = vadd.f32 %v2055, %v1982
      %v2057 = vadd.f32 %v2056, %v1996
      %v2058 = vadd.f32 %v2057, %v2010
      %v2059 = vadd.f32 %v2058, %v2024
      %v2060 = vadd.f32 %v2059, %v2038
      %v2061 = vrot.slane %v2060, 4
      %v2062 = vadd.f32 %v2060, %v2061
      %v2063 = vrot.slane %v2062, 2
      %v2064 = vadd.f32 %v2062, %v2063
      %v2065 = vrot.slane %v2064, 1
      %v2066 = vadd.f32 %v2064, %v2065
      %v2067 = vadd.f32 %v1941, %v1955
      %v2068 = vadd.f32 %v2067, %v1969
      %v2069 = vadd.f32 %v2068, %v1983
      %v2070 = vadd.f32 %v2069, %v1997
      %v2071 = vadd.f32 %v2070, %v2011
      %v2072 = vadd.f32 %v2071, %v2025
      %v2073 = vadd.f32 %v2072, %v2039
      %v2074 = vrot.slane %v2073, 4
      %v2075 = vadd.f32 %v2073, %v2074
      %v2076 = vrot.slane %v2075, 2
      %v2077 = vadd.f32 %v2075, %v2076
      %v2078 = vrot.slane %v2077, 1
      %v2079 = vadd.f32 %v2077, %v2078
      %v2080 = vadd.f32 %v1942, %v1956
      %v2081 = vadd.f32 %v2080, %v1970
      %v2082 = vadd.f32 %v2081, %v1984
      %v2083 = vadd.f32 %v2082, %v1998
      %v2084 = vadd.f32 %v2083, %v2012
      %v2085 = vadd.f32 %v2084, %v2026
      %v2086 = vadd.f32 %v2085, %v2040
      %v2087 = vrot.slane %v2086, 4
      %v2088 = vadd.f32 %v2086, %v2087
      %v2089 = vrot.slane %v2088, 2
      %v2090 = vadd.f32 %v2088, %v2089
      %v2091 = vrot.slane %v2090, 1
      %v2092 = vadd.f32 %v2090, %v2091
      %v2093 = vadd.f32 %v1943, %v1957
      %v2094 = vadd.f32 %v2093, %v1971
      %v2095 = vadd.f32 %v2094, %v1985
      %v2096 = vadd.f32 %v2095, %v1999
      %v2097 = vadd.f32 %v2096, %v2013
      %v2098 = vadd.f32 %v2097, %v2027
      %v2099 = vadd.f32 %v2098, %v2041
      %v2100 = vrot.slane %v2099, 4
      %v2101 = vadd.f32 %v2099, %v2100
      %v2102 = vrot.slane %v2101, 2
      %v2103 = vadd.f32 %v2101, %v2102
      %v2104 = vrot.slane %v2103, 1
      %v2105 = vadd.f32 %v2103, %v2104
      %v2106 = vadd.f32 %v1944, %v1958
      %v2107 = vadd.f32 %v2106, %v1972
      %v2108 = vadd.f32 %v2107, %v1986
      %v2109 = vadd.f32 %v2108, %v2000
      %v2110 = vadd.f32 %v2109, %v2014
      %v2111 = vadd.f32 %v2110, %v2028
      %v2112 = vadd.f32 %v2111, %v2042
      %v2113 = vrot.slane %v2112, 4
      %v2114 = vadd.f32 %v2112, %v2113
      %v2115 = vrot.slane %v2114, 2
      %v2116 = vadd.f32 %v2114, %v2115
      %v2117 = vrot.slane %v2116, 1
      %v2118 = vadd.f32 %v2116, %v2117
      %v2119 = vadd.f32 %v1945, %v1959
      %v2120 = vadd.f32 %v2119, %v1973
      %v2121 = vadd.f32 %v2120, %v1987
      %v2122 = vadd.f32 %v2121, %v2001
      %v2123 = vadd.f32 %v2122, %v2015
      %v2124 = vadd.f32 %v2123, %v2029
      %v2125 = vadd.f32 %v2124, %v2043
      %v2126 = vrot.slane %v2125, 4
      %v2127 = vadd.f32 %v2125, %v2126
      %v2128 = vrot.slane %v2127, 2
      %v2129 = vadd.f32 %v2127, %v2128
      %v2130 = vrot.slane %v2129, 1
      %v2131 = vadd.f32 %v2129, %v2130
      %v2132 = vadd.f32 %v1946, %v1960
      %v2133 = vadd.f32 %v2132, %v1974
      %v2134 = vadd.f32 %v2133, %v1988
      %v2135 = vadd.f32 %v2134, %v2002
      %v2136 = vadd.f32 %v2135, %v2016
      %v2137 = vadd.f32 %v2136, %v2030
      %v2138 = vadd.f32 %v2137, %v2044
      %v2139 = vrot.slane %v2138, 4
      %v2140 = vadd.f32 %v2138, %v2139
      %v2141 = vrot.slane %v2140, 2
      %v2142 = vadd.f32 %v2140, %v2141
      %v2143 = vrot.slane %v2142, 1
      %v2144 = vadd.f32 %v2142, %v2143
      %v2145 = vadd.f32 %v1947, %v1961
      %v2146 = vadd.f32 %v2145, %v1975
      %v2147 = vadd.f32 %v2146, %v1989
      %v2148 = vadd.f32 %v2147, %v2003
      %v2149 = vadd.f32 %v2148, %v2017
      %v2150 = vadd.f32 %v2149, %v2031
      %v2151 = vadd.f32 %v2150, %v2045
      %v2152 = vrot.slane %v2151, 4
      %v2153 = vadd.f32 %v2151, %v2152
      %v2154 = vrot.slane %v2153, 2
      %v2155 = vadd.f32 %v2153, %v2154
      %v2156 = vrot.slane %v2155, 1
      %v2157 = vadd.f32 %v2155, %v2156
      %v2158 = vadd.f32 %v1948, %v1962
      %v2159 = vadd.f32 %v2158, %v1976
      %v2160 = vadd.f32 %v2159, %v1990
      %v2161 = vadd.f32 %v2160, %v2004
      %v2162 = vadd.f32 %v2161, %v2018
      %v2163 = vadd.f32 %v2162, %v2032
      %v2164 = vadd.f32 %v2163, %v2046
      %v2165 = vrot.slane %v2164, 4
      %v2166 = vadd.f32 %v2164, %v2165
      %v2167 = vrot.slane %v2166, 2
      %v2168 = vadd.f32 %v2166, %v2167
      %v2169 = vrot.slane %v2168, 1
      %v2170 = vadd.f32 %v2168, %v2169
      %v2171 = vadd.f32 %v1949, %v1963
      %v2172 = vadd.f32 %v2171, %v1977
      %v2173 = vadd.f32 %v2172, %v1991
      %v2174 = vadd.f32 %v2173, %v2005
      %v2175 = vadd.f32 %v2174, %v2019
      %v2176 = vadd.f32 %v2175, %v2033
      %v2177 = vadd.f32 %v2176, %v2047
      %v2178 = vrot.slane %v2177, 4
      %v2179 = vadd.f32 %v2177, %v2178
      %v2180 = vrot.slane %v2179, 2
      %v2181 = vadd.f32 %v2179, %v2180
      %v2182 = vrot.slane %v2181, 1
      %v2183 = vadd.f32 %v2181, %v2182
      %v2184 = vadd.f32 %v1950, %v1964
      %v2185 = vadd.f32 %v2184, %v1978
      %v2186 = vadd.f32 %v2185, %v1992
      %v2187 = vadd.f32 %v2186, %v2006
      %v2188 = vadd.f32 %v2187, %v2020
      %v2189 = vadd.f32 %v2188, %v2034
      %v2190 = vadd.f32 %v2189, %v2048
      %v2191 = vrot.slane %v2190, 4
      %v2192 = vadd.f32 %v2190, %v2191
      %v2193 = vrot.slane %v2192, 2
      %v2194 = vadd.f32 %v2192, %v2193
      %v2195 = vrot.slane %v2194, 1
      %v2196 = vadd.f32 %v2194, %v2195
      %v2197 = vadd.f32 %v1951, %v1965
      %v2198 = vadd.f32 %v2197, %v1979
      %v2199 = vadd.f32 %v2198, %v1993
      %v2200 = vadd.f32 %v2199, %v2007
      %v2201 = vadd.f32 %v2200, %v2021
      %v2202 = vadd.f32 %v2201, %v2035
      %v2203 = vadd.f32 %v2202, %v2049
      %v2204 = vrot.slane %v2203, 4
      %v2205 = vadd.f32 %v2203, %v2204
      %v2206 = vrot.slane %v2205, 2
      %v2207 = vadd.f32 %v2205, %v2206
      %v2208 = vrot.slane %v2207, 1
      %v2209 = vadd.f32 %v2207, %v2208
      %v2210 = vadd.f32 %v1952, %v1966
      %v2211 = vadd.f32 %v2210, %v1980
      %v2212 = vadd.f32 %v2211, %v1994
      %v2213 = vadd.f32 %v2212, %v2008
      %v2214 = vadd.f32 %v2213, %v2022
      %v2215 = vadd.f32 %v2214, %v2036
      %v2216 = vadd.f32 %v2215, %v2050
      %v2217 = vrot.slane %v2216, 4
      %v2218 = vadd.f32 %v2216, %v2217
      %v2219 = vrot.slane %v2218, 2
      %v2220 = vadd.f32 %v2218, %v2219
      %v2221 = vrot.slane %v2220, 1
      %v2222 = vadd.f32 %v2220, %v2221
      %v2223 = vadd.f32 %v1953, %v1967
      %v2224 = vadd.f32 %v2223, %v1981
      %v2225 = vadd.f32 %v2224, %v1995
      %v2226 = vadd.f32 %v2225, %v2009
      %v2227 = vadd.f32 %v2226, %v2023
      %v2228 = vadd.f32 %v2227, %v2037
      %v2229 = vadd.f32 %v2228, %v2051
      %v2230 = vrot.slane %v2229, 4
      %v2231 = vadd.f32 %v2229, %v2230
      %v2232 = vrot.slane %v2231, 2
      %v2233 = vadd.f32 %v2231, %v2232
      %v2234 = vrot.slane %v2233, 1
      %v2235 = vadd.f32 %v2233, %v2234
      %v2250 = vcombine.low %v2066, %v2079
      %v2251 = vcombine.low %v2092, %v2105
      %v2252 = vcombine.low %v2118, %v2131
      %v2253 = vcombine.low %v2144, %v2157
      %v2255 = vunpack.c.l.s4 1966171168
      %v2256 = vunpack.c.0.s8 %v2255
      %v2257 = vlaneseq
      %v2258 = vshrl.u32 %v2257, 7
      %v2259 = vsub.s32 %v2256, %v2258
      %v2260 = vrot.slane %v2250, %v2259
      %v2262 = vunpack.c.l.s4 1966171168
      %v2263 = vunpack.c.0.s8 %v2262
      %v2264 = vlaneseq
      %v2265 = vshrl.u32 %v2264, 7
      %v2266 = vsub.s32 %v2263, %v2265
      %v2267 = vrot.slane %v2251, %v2266
      %v2269 = vunpack.c.l.s4 1966171168
      %v2270 = vunpack.c.0.s8 %v2269
      %v2271 = vlaneseq
      %v2272 = vshrl.u32 %v2271, 7
      %v2273 = vsub.s32 %v2270, %v2272
      %v2274 = vrot.slane %v2252, %v2273
      %v2276 = vunpack.c.l.s4 1966171168
      %v2277 = vunpack.c.0.s8 %v2276
      %v2278 = vlaneseq
      %v2279 = vshrl.u32 %v2278, 7
      %v2280 = vsub.s32 %v2277, %v2279
      %v2281 = vrot.slane %v2253, %v2280
      %v2282 = vcombine.low %v2260, %v2267
      %v2283 = vcombine.low %v2274, %v2281
      %v2285 = vunpack.c.l.s4 1966171168
      %v2286 = vunpack.c.0.s8 %v2285
      %v2287 = vlaneseq
      %v2288 = vshrl.u32 %v2287, 7
      %v2289 = vsub.s32 %v2286, %v2288
      %v2290 = vrot.slane %v2282, %v2289
      %v2292 = vunpack.c.l.s4 1966171168
      %v2293 = vunpack.c.0.s8 %v2292
      %v2294 = vlaneseq
      %v2295 = vshrl.u32 %v2294, 7
      %v2296 = vsub.s32 %v2293, %v2295
      %v2297 = vrot.slane %v2283, %v2296
      %v2298 = vcombine.low %v2290, %v2297
      %v2299 = vcombine.low %v2170, %v2183
      %v2300 = vcombine.low %v2196, %v2209
      %v2301 = vcombine.low %v2222, %v2235
      %v2303 = vunpack.c.l.s4 1966171168
      %v2304 = vunpack.c.0.s8 %v2303
      %v2305 = vlaneseq
      %v2306 = vshrl.u32 %v2305, 7
      %v2307 = vsub.s32 %v2304, %v2306
      %v2308 = vrot.slane %v2299, %v2307
      %v2310 = vunpack.c.l.s4 1966171168
      %v2311 = vunpack.c.0.s8 %v2310
      %v2312 = vlaneseq
      %v2313 = vshrl.u32 %v2312, 7
      %v2314 = vsub.s32 %v2311, %v2313
      %v2315 = vrot.slane %v2300, %v2314
      %v2317 = vunpack.c.l.s4 1966171168
      %v2318 = vunpack.c.0.s8 %v2317
      %v2319 = vlaneseq
      %v2320 = vshrl.u32 %v2319, 7
      %v2321 = vsub.s32 %v2318, %v2320
      %v2322 = vrot.slane %v2301, %v2321
      %v2323 = vcombine.low %v2308, %v2315
      %v2325 = vunpack.c.l.s4 1966171168
      %v2326 = vunpack.c.0.s8 %v2325
      %v2327 = vlaneseq
      %v2328 = vshrl.u32 %v2327, 7
      %v2329 = vsub.s32 %v2326, %v2328
      %v2330 = vrot.slane %v2323, %v2329
      %v2332 = vunpack.c.l.s4 1966171168
      %v2333 = vunpack.c.0.s8 %v2332
      %v2334 = vlaneseq
      %v2335 = vshrl.u32 %v2334, 7
      %v2336 = vsub.s32 %v2333, %v2335
      %v2337 = vrot.slane %v2322, %v2336
      %v2338 = vcombine.low %v2330, %v2337
      %v2341 = vadd.f32 %v2052, %v2298
      %v2342 = vadd.f32 %v2053, %v2338
      %2343 = vst [vmem:[#allocation2] sm:$0xff] %v2341
      %v2344 = vlaneseq
      %vm2345 = vcmp.ge.s32.totalorder %v2344, 0
      %vm2346 = vcmp.lt.s32.totalorder %v2344, 768
      %vm2347 = vmand %vm2345, %vm2346
      %2348 = vst.msk [vmem:[#allocation2 + $0x8] sm:$0x3f] %vm2347, %v2342
      // Predicated region
      $region53: #{efficientnet_forward.1} parent=47 // pred_check
        %p2349 = pneg %p304
      $region54: #{efficientnet_forward.1} parent=47 // pred_check_branch
        %2351 = sbr.rel (%p2349) target = $region56
      $region55: #{efficientnet_forward.1} parent=47 // pred_region
        %v2352 = vld [vmem:[#allocation2] sm:$0xff]
        %v2353 = vld [vmem:[#allocation2 + $0x8] sm:$0x3f]
        %v2354 = vmul.f32 %v2352, 0.015625
        %v2355 = vmul.f32 %v2353, 0.015625
        %v2356 = vld [vmem:[%s5] sm:$0xff]
        %v2357 = vld [vmem:[%s5 + $0x8] sm:$0xff]
        %v2358 = vld [vmem:[%s5 + $0x10] sm:$0xff]
        %v2359 = vld [vmem:[%s5 + $0x18] sm:$0xff]
        %v2360 = vld [vmem:[%s5 + $0x20] sm:$0xff]
        %v2361 = vld [vmem:[%s5 + $0x28] sm:$0xff]
        %v2362 = vld [vmem:[%s5 + $0x30] sm:$0xff]
        %v2363 = vld [vmem:[%s5 + $0x38] sm:$0xff]
        %v2364 = vld [vmem:[%s5 + $0x40] sm:$0xff]
        %v2365 = vld [vmem:[%s5 + $0x48] sm:$0xff]
        %v2366 = vld [vmem:[%s5 + $0x50] sm:$0xff]
        %v2367 = vld [vmem:[%s5 + $0x58] sm:$0xff]
        %v2368 = vld [vmem:[%s5 + $0x60] sm:$0xff]
        %v2369 = vld [vmem:[%s5 + $0x68] sm:$0xff]
        %v2370 = vld [vmem:[%s5 + $0x70] sm:$0xff]
        %v2371 = vld [vmem:[%s5 + $0x78] sm:$0xff]
        %v2372 = vld [vmem:[%s5 + $0x80] sm:$0xff]
        %v2373 = vld [vmem:[%s5 + $0x88] sm:$0xff]
        %v2374 = vld [vmem:[%s5 + $0x90] sm:$0xff]
        %v2375 = vld [vmem:[%s5 + $0x98] sm:$0xff]
        %v2376 = vld [vmem:[%s5 + $0xa0] sm:$0xff]
        %v2377 = vld [vmem:[%s5 + $0xa8] sm:$0xff]
        %v2378 = vld [vmem:[%s5 + $0xb0] sm:$0xff]
        %v2379 = vld [vmem:[%s5 + $0xb8] sm:$0xff]
        %v2380 = vld [vmem:[%s5 + $0xc0] sm:$0xff]
        %v2381 = vld [vmem:[%s5 + $0xc8] sm:$0xff]
        %v2382 = vld [vmem:[%s5 + $0xd0] sm:$0xff]
        %v2383 = vld [vmem:[%s5 + $0xd8] sm:$0xff]
        %v2384 = vld [vmem:[%s5 + $0xe0] sm:$0xff]
        %v2385 = vld [vmem:[%s5 + $0xe8] sm:$0xff]
        %v2386 = vld [vmem:[%s5 + $0xf0] sm:$0xff]
        %v2387 = vld [vmem:[%s5 + $0xf8] sm:$0xff]
        %v2388 = vld [vmem:[%s5 + $0x100] sm:$0xff]
        %v2389 = vld [vmem:[%s5 + $0x108] sm:$0xff]
        %v2390 = vld [vmem:[%s5 + $0x110] sm:$0xff]
        %v2391 = vld [vmem:[%s5 + $0x118] sm:$0xff]
        %v2392 = vld [vmem:[%s5 + $0x120] sm:$0xff]
        %v2393 = vld [vmem:[%s5 + $0x128] sm:$0xff]
        %v2394 = vld [vmem:[%s5 + $0x130] sm:$0xff]
        %v2395 = vld [vmem:[%s5 + $0x138] sm:$0xff]
        %v2396 = vld [vmem:[%s5 + $0x140] sm:$0xff]
        %v2397 = vld [vmem:[%s5 + $0x148] sm:$0xff]
        %v2398 = vld [vmem:[%s5 + $0x150] sm:$0xff]
        %v2399 = vld [vmem:[%s5 + $0x158] sm:$0xff]
        %v2400 = vld [vmem:[%s5 + $0x160] sm:$0xff]
        %v2401 = vld [vmem:[%s5 + $0x168] sm:$0xff]
        %v2402 = vld [vmem:[%s5 + $0x170] sm:$0xff]
        %v2403 = vld [vmem:[%s5 + $0x178] sm:$0xff]
        %v2404 = vld [vmem:[%s5 + $0x180] sm:$0xff]
        %v2405 = vld [vmem:[%s5 + $0x188] sm:$0xff]
        %v2406 = vld [vmem:[%s5 + $0x190] sm:$0xff]
        %v2407 = vld [vmem:[%s5 + $0x198] sm:$0xff]
        %v2408 = vld [vmem:[%s5 + $0x1a0] sm:$0xff]
        %v2409 = vld [vmem:[%s5 + $0x1a8] sm:$0xff]
        %v2410 = vld [vmem:[%s5 + $0x1b0] sm:$0xff]
        %v2411 = vld [vmem:[%s5 + $0x1b8] sm:$0xff]
        %v2412 = vld [vmem:[%s5 + $0x1c0] sm:$0xff]
        %v2413 = vld [vmem:[%s5 + $0x1c8] sm:$0xff]
        %v2414 = vld [vmem:[%s5 + $0x1d0] sm:$0xff]
        %v2415 = vld [vmem:[%s5 + $0x1d8] sm:$0xff]
        %v2416 = vld [vmem:[%s5 + $0x1e0] sm:$0xff]
        %v2417 = vld [vmem:[%s5 + $0x1e8] sm:$0xff]
        %v2418 = vld [vmem:[%s5 + $0x1f0] sm:$0xff]
        %v2419 = vld [vmem:[%s5 + $0x1f8] sm:$0xff]
        %v2420 = vld [vmem:[%s5 + $0x200] sm:$0xff]
        %v2421 = vld [vmem:[%s5 + $0x208] sm:$0xff]
        %v2422 = vld [vmem:[%s5 + $0x210] sm:$0xff]
        %v2423 = vld [vmem:[%s5 + $0x218] sm:$0xff]
        %v2424 = vld [vmem:[%s5 + $0x220] sm:$0xff]
        %v2425 = vld [vmem:[%s5 + $0x228] sm:$0xff]
        %v2426 = vld [vmem:[%s5 + $0x230] sm:$0xff]
        %v2427 = vld [vmem:[%s5 + $0x238] sm:$0xff]
        %v2428 = vld [vmem:[%s5 + $0x240] sm:$0xff]
        %v2429 = vld [vmem:[%s5 + $0x248] sm:$0xff]
        %v2430 = vld [vmem:[%s5 + $0x250] sm:$0xff]
        %v2431 = vld [vmem:[%s5 + $0x258] sm:$0xff]
        %v2432 = vld [vmem:[%s5 + $0x260] sm:$0xff]
        %v2433 = vld [vmem:[%s5 + $0x268] sm:$0xff]
        %v2434 = vld [vmem:[%s5 + $0x270] sm:$0xff]
        %v2435 = vld [vmem:[%s5 + $0x278] sm:$0xff]
        %v2436 = vld [vmem:[%s5 + $0x280] sm:$0xff]
        %v2437 = vld [vmem:[%s5 + $0x288] sm:$0xff]
        %v2438 = vld [vmem:[%s5 + $0x290] sm:$0xff]
        %v2439 = vld [vmem:[%s5 + $0x298] sm:$0xff]
        %v2440 = vld [vmem:[%s5 + $0x2a0] sm:$0xff]
        %v2441 = vld [vmem:[%s5 + $0x2a8] sm:$0xff]
        %v2442 = vld [vmem:[%s5 + $0x2b0] sm:$0xff]
        %v2443 = vld [vmem:[%s5 + $0x2b8] sm:$0xff]
        %v2444 = vld [vmem:[%s5 + $0x2c0] sm:$0xff]
        %v2445 = vld [vmem:[%s5 + $0x2c8] sm:$0xff]
        %v2446 = vld [vmem:[%s5 + $0x2d0] sm:$0xff]
        %v2447 = vld [vmem:[%s5 + $0x2d8] sm:$0xff]
        %v2448 = vld [vmem:[%s5 + $0x2e0] sm:$0xff]
        %v2449 = vld [vmem:[%s5 + $0x2e8] sm:$0xff]
        %v2450 = vld [vmem:[%s5 + $0x2f0] sm:$0xff]
        %v2451 = vld [vmem:[%s5 + $0x2f8] sm:$0xff]
        %v2452 = vld [vmem:[%s5 + $0x300] sm:$0xff]
        %v2453 = vld [vmem:[%s5 + $0x308] sm:$0xff]
        %v2454 = vld [vmem:[%s5 + $0x310] sm:$0xff]
        %v2455 = vld [vmem:[%s5 + $0x318] sm:$0xff]
        %v2456 = vld [vmem:[%s5 + $0x320] sm:$0xff]
        %v2457 = vld [vmem:[%s5 + $0x328] sm:$0xff]
        %v2458 = vld [vmem:[%s5 + $0x330] sm:$0xff]
        %v2459 = vld [vmem:[%s5 + $0x338] sm:$0xff]
        %v2460 = vld [vmem:[%s5 + $0x340] sm:$0xff]
        %v2461 = vld [vmem:[%s5 + $0x348] sm:$0xff]
        %v2462 = vld [vmem:[%s5 + $0x350] sm:$0xff]
        %v2463 = vld [vmem:[%s5 + $0x358] sm:$0xff]
        %v2464 = vld [vmem:[%s5 + $0x360] sm:$0xff]
        %v2465 = vld [vmem:[%s5 + $0x368] sm:$0xff]
        %v2466 = vld [vmem:[%s5 + $0x370] sm:$0xff]
        %v2467 = vld [vmem:[%s5 + $0x378] sm:$0xff]
        %v2468 = vld [vmem:[%s5 + $0x380] sm:$0xff]
        %v2469 = vld [vmem:[%s5 + $0x388] sm:$0xff]
        %v2470 = vld [vmem:[%s5 + $0x390] sm:$0xff]
        %v2471 = vld [vmem:[%s5 + $0x398] sm:$0xff]
        %v2472 = vld [vmem:[%s5 + $0x3a0] sm:$0xff]
        %v2473 = vld [vmem:[%s5 + $0x3a8] sm:$0xff]
        %v2474 = vld [vmem:[%s5 + $0x3b0] sm:$0xff]
        %v2475 = vld [vmem:[%s5 + $0x3b8] sm:$0xff]
        %v2476 = vld [vmem:[%s5 + $0x3c0] sm:$0xff]
        %v2477 = vld [vmem:[%s5 + $0x3c8] sm:$0xff]
        %v2478 = vld [vmem:[%s5 + $0x3d0] sm:$0xff]
        %v2479 = vld [vmem:[%s5 + $0x3d8] sm:$0xff]
        %v2480 = vld [vmem:[%s5 + $0x3e0] sm:$0xff]
        %v2481 = vld [vmem:[%s5 + $0x3e8] sm:$0xff]
        %v2482 = vld [vmem:[%s5 + $0x3f0] sm:$0xff]
        %v2483 = vld [vmem:[%s5 + $0x3f8] sm:$0xff]
        %v2484 = vld [vmem:[%s5 + $0x400] sm:$0xff]
        %v2485 = vld [vmem:[%s5 + $0x408] sm:$0xff]
        %v2486 = vld [vmem:[%s5 + $0x410] sm:$0xff]
        %v2487 = vld [vmem:[%s5 + $0x418] sm:$0xff]
        %v2488 = vld [vmem:[%s5 + $0x420] sm:$0xff]
        %v2489 = vld [vmem:[%s5 + $0x428] sm:$0xff]
        %v2490 = vld [vmem:[%s5 + $0x430] sm:$0xff]
        %v2491 = vld [vmem:[%s5 + $0x438] sm:$0xff]
        %v2492 = vld [vmem:[%s5 + $0x440] sm:$0xff]
        %v2493 = vld [vmem:[%s5 + $0x448] sm:$0xff]
        %v2494 = vld [vmem:[%s5 + $0x450] sm:$0xff]
        %v2495 = vld [vmem:[%s5 + $0x458] sm:$0xff]
        %v2496 = vld [vmem:[%s5 + $0x460] sm:$0xff]
        %v2497 = vld [vmem:[%s5 + $0x468] sm:$0xff]
        %v2498 = vld [vmem:[%s5 + $0x470] sm:$0xff]
        %v2499 = vld [vmem:[%s5 + $0x478] sm:$0xff]
        %v2500 = vld [vmem:[%s5 + $0x480] sm:$0xff]
        %v2501 = vld [vmem:[%s5 + $0x488] sm:$0xff]
        %v2502 = vld [vmem:[%s5 + $0x490] sm:$0xff]
        %v2503 = vld [vmem:[%s5 + $0x498] sm:$0xff]
        %v2504 = vld [vmem:[%s5 + $0x4a0] sm:$0xff]
        %v2505 = vld [vmem:[%s5 + $0x4a8] sm:$0xff]
        %v2506 = vld [vmem:[%s5 + $0x4b0] sm:$0xff]
        %v2507 = vld [vmem:[%s5 + $0x4b8] sm:$0xff]
        %v2508 = vld [vmem:[%s5 + $0x4c0] sm:$0xff]
        %v2509 = vld [vmem:[%s5 + $0x4c8] sm:$0xff]
        %v2510 = vld [vmem:[%s5 + $0x4d0] sm:$0xff]
        %v2511 = vld [vmem:[%s5 + $0x4d8] sm:$0xff]
        %v2512 = vld [vmem:[%s5 + $0x4e0] sm:$0xff]
        %v2513 = vld [vmem:[%s5 + $0x4e8] sm:$0xff]
        %v2514 = vld [vmem:[%s5 + $0x4f0] sm:$0xff]
        %v2515 = vld [vmem:[%s5 + $0x4f8] sm:$0xff]
        %v2516 = vld [vmem:[%s5 + $0x500] sm:$0xff]
        %v2517 = vld [vmem:[%s5 + $0x508] sm:$0xff]
        %v2518 = vld [vmem:[%s5 + $0x510] sm:$0xff]
        %v2519 = vld [vmem:[%s5 + $0x518] sm:$0xff]
        %v2520 = vld [vmem:[%s5 + $0x520] sm:$0xff]
        %v2521 = vld [vmem:[%s5 + $0x528] sm:$0xff]
        %v2522 = vld [vmem:[%s5 + $0x530] sm:$0xff]
        %v2523 = vld [vmem:[%s5 + $0x538] sm:$0xff]
        %v2524 = vld [vmem:[%s5 + $0x540] sm:$0xff]
        %v2525 = vld [vmem:[%s5 + $0x548] sm:$0xff]
        %v2526 = vld [vmem:[%s5 + $0x550] sm:$0xff]
        %v2527 = vld [vmem:[%s5 + $0x558] sm:$0xff]
        %v2528 = vld [vmem:[%s5 + $0x560] sm:$0xff]
        %v2529 = vld [vmem:[%s5 + $0x568] sm:$0xff]
        %v2530 = vld [vmem:[%s5 + $0x570] sm:$0xff]
        %v2531 = vld [vmem:[%s5 + $0x578] sm:$0xff]
        %v2532 = vld [vmem:[%s5 + $0x580] sm:$0xff]
        %v2533 = vld [vmem:[%s5 + $0x588] sm:$0xff]
        %v2534 = vld [vmem:[%s5 + $0x590] sm:$0xff]
        %v2535 = vld [vmem:[%s5 + $0x598] sm:$0xff]
        %v2536 = vld [vmem:[%s5 + $0x5a0] sm:$0xff]
        %v2537 = vld [vmem:[%s5 + $0x5a8] sm:$0xff]
        %v2538 = vld [vmem:[%s5 + $0x5b0] sm:$0xff]
        %v2539 = vld [vmem:[%s5 + $0x5b8] sm:$0xff]
        %v2540 = vld [vmem:[%s5 + $0x5c0] sm:$0xff]
        %v2541 = vld [vmem:[%s5 + $0x5c8] sm:$0xff]
        %v2542 = vld [vmem:[%s5 + $0x5d0] sm:$0xff]
        %v2543 = vld [vmem:[%s5 + $0x5d8] sm:$0xff]
        %v2544 = vld [vmem:[%s5 + $0x5e0] sm:$0xff]
        %v2545 = vld [vmem:[%s5 + $0x5e8] sm:$0xff]
        %v2546 = vld [vmem:[%s5 + $0x5f0] sm:$0xff]
        %v2547 = vld [vmem:[%s5 + $0x5f8] sm:$0xff]
        %v2548 = vld [vmem:[%s5 + $0x600] sm:$0xff]
        %v2549 = vld [vmem:[%s5 + $0x608] sm:$0xff]
        %v2550 = vld [vmem:[%s5 + $0x610] sm:$0xff]
        %v2551 = vld [vmem:[%s5 + $0x618] sm:$0xff]
        %v2552 = vld [vmem:[%s5 + $0x620] sm:$0xff]
        %v2553 = vld [vmem:[%s5 + $0x628] sm:$0xff]
        %v2554 = vld [vmem:[%s5 + $0x630] sm:$0xff]
        %v2555 = vld [vmem:[%s5 + $0x638] sm:$0xff]
        %v2556 = vld [vmem:[%s5 + $0x640] sm:$0xff]
        %v2557 = vld [vmem:[%s5 + $0x648] sm:$0xff]
        %v2558 = vld [vmem:[%s5 + $0x650] sm:$0xff]
        %v2559 = vld [vmem:[%s5 + $0x658] sm:$0xff]
        %v2560 = vld [vmem:[%s5 + $0x660] sm:$0xff]
        %v2561 = vld [vmem:[%s5 + $0x668] sm:$0xff]
        %v2562 = vld [vmem:[%s5 + $0x670] sm:$0xff]
        %v2563 = vld [vmem:[%s5 + $0x678] sm:$0xff]
        %v2564 = vld [vmem:[%s5 + $0x680] sm:$0xff]
        %v2565 = vld [vmem:[%s5 + $0x688] sm:$0xff]
        %v2566 = vld [vmem:[%s5 + $0x690] sm:$0xff]
        %v2567 = vld [vmem:[%s5 + $0x698] sm:$0xff]
        %v2568 = vld [vmem:[%s5 + $0x6a0] sm:$0xff]
        %v2569 = vld [vmem:[%s5 + $0x6a8] sm:$0xff]
        %v2570 = vld [vmem:[%s5 + $0x6b0] sm:$0xff]
        %v2571 = vld [vmem:[%s5 + $0x6b8] sm:$0xff]
        %v2572 = vld [vmem:[%s5 + $0x6c0] sm:$0xff]
        %v2573 = vld [vmem:[%s5 + $0x6c8] sm:$0xff]
        %v2574 = vld [vmem:[%s5 + $0x6d0] sm:$0xff]
        %v2575 = vld [vmem:[%s5 + $0x6d8] sm:$0xff]
        %v2576 = vld [vmem:[%s5 + $0x6e0] sm:$0xff]
        %v2577 = vld [vmem:[%s5 + $0x6e8] sm:$0xff]
        %v2578 = vld [vmem:[%s5 + $0x6f0] sm:$0xff]
        %v2579 = vld [vmem:[%s5 + $0x6f8] sm:$0xff]
        %v2580 = vld [vmem:[%s6] sm:$0x1]
        %v2583 = vlaneseq
        %v2584 = vshrl.u32 %v2583, 7
        %v2585 = vsub.s32 0, %v2584
        %v2586 = vrot.slane %v2354, %v2585
        %v2587 = vlaneseq
        %v2588 = vshrl.u32 %v2587, 7
        %v2589 = vsub.s32 1, %v2588
        %v2590 = vrot.slane %v2354, %v2589
        %v2591 = vlaneseq
        %v2592 = vshrl.u32 %v2591, 7
        %v2593 = vsub.s32 2, %v2592
        %v2594 = vrot.slane %v2354, %v2593
        %v2595 = vlaneseq
        %v2596 = vshrl.u32 %v2595, 7
        %v2597 = vsub.s32 3, %v2596
        %v2598 = vrot.slane %v2354, %v2597
        %v2599 = vlaneseq
        %v2600 = vshrl.u32 %v2599, 7
        %v2601 = vsub.s32 4, %v2600
        %v2602 = vrot.slane %v2354, %v2601
        %v2603 = vlaneseq
        %v2604 = vshrl.u32 %v2603, 7
        %v2605 = vsub.s32 5, %v2604
        %v2606 = vrot.slane %v2354, %v2605
        %v2607 = vlaneseq
        %v2608 = vshrl.u32 %v2607, 7
        %v2609 = vsub.s32 6, %v2608
        %v2610 = vrot.slane %v2354, %v2609
        %v2611 = vlaneseq
        %v2612 = vshrl.u32 %v2611, 7
        %v2613 = vsub.s32 7, %v2612
        %v2614 = vrot.slane %v2354, %v2613
        %v2615 = vlaneseq
        %v2616 = vshrl.u32 %v2615, 7
        %v2617 = vsub.s32 0, %v2616
        %v2618 = vrot.slane %v2355, %v2617
        %v2619 = vlaneseq
        %v2620 = vshrl.u32 %v2619, 7
        %v2621 = vsub.s32 1, %v2620
        %v2622 = vrot.slane %v2355, %v2621
        %v2623 = vlaneseq
        %v2624 = vshrl.u32 %v2623, 7
        %v2625 = vsub.s32 2, %v2624
        %v2626 = vrot.slane %v2355, %v2625
        %v2627 = vlaneseq
        %v2628 = vshrl.u32 %v2627, 7
        %v2629 = vsub.s32 3, %v2628
        %v2630 = vrot.slane %v2355, %v2629
        %v2631 = vlaneseq
        %v2632 = vshrl.u32 %v2631, 7
        %v2633 = vsub.s32 4, %v2632
        %v2634 = vrot.slane %v2355, %v2633
        %v2635 = vlaneseq
        %v2636 = vshrl.u32 %v2635, 7
        %v2637 = vsub.s32 5, %v2636
        %v2638 = vrot.slane %v2355, %v2637
        %2653 = vmatprep.subr.mxu0 0.0
        %2654 = vmatpush1.msra.mxu0 %v2356
        %2655 = vmatprep.subr.mxu0 0.0
        %2656 = vmatpush1.msra.mxu0 %v2357
        %2657 = vmatprep.subr.mxu0 0.0
        %2658 = vmatpush1.msra.mxu0 %v2358
        %2659 = vmatprep.subr.mxu0 0.0
        %2660 = vmatpush1.msra.mxu0 %v2359
        %2661 = vmatprep.subr.mxu0 0.0
        %2662 = vmatpush1.msra.mxu0 %v2360
        %2663 = vmatprep.subr.mxu0 0.0
        %2664 = vmatpush1.msra.mxu0 %v2361
        %2665 = vmatprep.subr.mxu0 0.0
        %2666 = vmatpush1.msra.mxu0 %v2362
        %2667 = vmatprep.subr.mxu0 0.0
        %2668 = vmatpush1.msra.mxu0 %v2363
        %2669 = vmatprep.subr.mxu0 0.0
        %2670 = vmatpush1.msra.mxu0 %v2364
        %2671 = vmatprep.subr.mxu0 0.0
        %2672 = vmatpush1.msra.mxu0 %v2365
        %2673 = vmatprep.subr.mxu0 0.0
        %2674 = vmatpush1.msra.mxu0 %v2366
        %2675 = vmatprep.subr.mxu0 0.0
        %2676 = vmatpush1.msra.mxu0 %v2367
        %2677 = vmatprep.subr.mxu0 0.0
        %2678 = vmatpush1.msra.mxu0 %v2368
        %2679 = vmatprep.subr.mxu0 0.0
        %2680 = vmatpush1.msra.mxu0 %v2369
        %2681 = vmatprep.subr.mxu0 0.0
        %2682 = vmatpush1.msra.mxu0 %v2370
        %2683 = vmatprep.subr.mxu0 0.0
        %2684 = vmatpush1.msra.mxu0 %v2371
        %2685 = vmatprep.subr.mxu0 0.0
        %2686 = vmatpush1.msra.mxu0 %v2372
        %2687 = vmatprep.subr.mxu0 0.0
        %2688 = vmatpush1.msra.mxu0 %v2373
        %2689 = vmatprep.subr.mxu0 0.0
        %2690 = vmatpush1.msra.mxu0 %v2374
        %2691 = vmatprep.subr.mxu0 0.0
        %2692 = vmatpush1.msra.mxu0 %v2375
        %2693 = vmatprep.subr.mxu0 0.0
        %2694 = vmatpush1.msra.mxu0 %v2376
        %2695 = vmatprep.subr.mxu0 0.0
        %2696 = vmatpush1.msra.mxu0 %v2377
        %2697 = vmatprep.subr.mxu0 0.0
        %2698 = vmatpush1.msra.mxu0 %v2378
        %2699 = vmatprep.subr.mxu0 0.0
        %2700 = vmatpush1.msra.mxu0 %v2379
        %2701 = vmatprep.subr.mxu0 0.0
        %2702 = vmatpush1.msra.mxu0 %v2380
        %2703 = vmatprep.subr.mxu0 0.0
        %2704 = vmatpush1.msra.mxu0 %v2381
        %2705 = vmatprep.subr.mxu0 0.0
        %2706 = vmatpush1.msra.mxu0 %v2382
        %2707 = vmatprep.subr.mxu0 0.0
        %2708 = vmatpush1.msra.mxu0 %v2383
        %2709 = vmatprep.subr.mxu0 0.0
        %2710 = vmatpush1.msra.mxu0 %v2384
        %2711 = vmatprep.subr.mxu0 0.0
        %2712 = vmatpush1.msra.mxu0 %v2385
        %2713 = vmatprep.subr.mxu0 0.0
        %2714 = vmatpush1.msra.mxu0 %v2386
        %2715 = vmatprep.subr.mxu0 0.0
        %2716 = vmatpush1.msra.mxu0 %v2387
        %2717 = vmatprep.mubr.f32.mxu0 %v2590
        %2718 = vmatmul.mubr.f32.gmra.mrb[0].mxu0 %v2586
        %v2719 = vpop.f32.mrb[0].mxu0
        %v2720 = vadd.f32 %v2580, %v2719
        %v2721 = vpop.f32.mrb[0].mxu0
        %2722 = vdwg.mxu0
        %2723 = vmatprep.subr.mxu0 0.0
        %2724 = vmatpush1.msra.mxu0 %v2388
        %2725 = vmatprep.subr.mxu0 0.0
        %2726 = vmatpush1.msra.mxu0 %v2389
        %2727 = vmatprep.subr.mxu0 0.0
        %2728 = vmatpush1.msra.mxu0 %v2390
        %2729 = vmatprep.subr.mxu0 0.0
        %2730 = vmatpush1.msra.mxu0 %v2391
        %2731 = vmatprep.subr.mxu0 0.0
        %2732 = vmatpush1.msra.mxu0 %v2392
        %2733 = vmatprep.subr.mxu0 0.0
        %2734 = vmatpush1.msra.mxu0 %v2393
        %2735 = vmatprep.subr.mxu0 0.0
        %2736 = vmatpush1.msra.mxu0 %v2394
        %2737 = vmatprep.subr.mxu0 0.0
        %2738 = vmatpush1.msra.mxu0 %v2395
        %2739 = vmatprep.subr.mxu0 0.0
        %2740 = vmatpush1.msra.mxu0 %v2396
        %2741 = vmatprep.subr.mxu0 0.0
        %2742 = vmatpush1.msra.mxu0 %v2397
        %2743 = vmatprep.subr.mxu0 0.0
        %2744 = vmatpush1.msra.mxu0 %v2398
        %2745 = vmatprep.subr.mxu0 0.0
        %2746 = vmatpush1.msra.mxu0 %v2399
        %2747 = vmatprep.subr.mxu0 0.0
        %2748 = vmatpush1.msra.mxu0 %v2400
        %2749 = vmatprep.subr.mxu0 0.0
        %2750 = vmatpush1.msra.mxu0 %v2401
        %2751 = vmatprep.subr.mxu0 0.0
        %2752 = vmatpush1.msra.mxu0 %v2402
        %2753 = vmatprep.subr.mxu0 0.0
        %2754 = vmatpush1.msra.mxu0 %v2403
        %2755 = vmatprep.subr.mxu0 0.0
        %2756 = vmatpush1.msra.mxu0 %v2404
        %2757 = vmatprep.subr.mxu0 0.0
        %2758 = vmatpush1.msra.mxu0 %v2405
        %2759 = vmatprep.subr.mxu0 0.0
        %2760 = vmatpush1.msra.mxu0 %v2406
        %2761 = vmatprep.subr.mxu0 0.0
        %2762 = vmatpush1.msra.mxu0 %v2407
        %2763 = vmatprep.subr.mxu0 0.0
        %2764 = vmatpush1.msra.mxu0 %v2408
        %2765 = vmatprep.subr.mxu0 0.0
        %2766 = vmatpush1.msra.mxu0 %v2409
        %2767 = vmatprep.subr.mxu0 0.0
        %2768 = vmatpush1.msra.mxu0 %v2410
        %2769 = vmatprep.subr.mxu0 0.0
        %2770 = vmatpush1.msra.mxu0 %v2411
        %2771 = vmatprep.subr.mxu0 0.0
        %2772 = vmatpush1.msra.mxu0 %v2412
        %2773 = vmatprep.subr.mxu0 0.0
        %2774 = vmatpush1.msra.mxu0 %v2413
        %2775 = vmatprep.subr.mxu0 0.0
        %2776 = vmatpush1.msra.mxu0 %v2414
        %2777 = vmatprep.subr.mxu0 0.0
        %2778 = vmatpush1.msra.mxu0 %v2415
        %2779 = vmatprep.subr.mxu0 0.0
        %2780 = vmatpush1.msra.mxu0 %v2416
        %2781 = vmatprep.subr.mxu0 0.0
        %2782 = vmatpush1.msra.mxu0 %v2417
        %2783 = vmatprep.subr.mxu0 0.0
        %2784 = vmatpush1.msra.mxu0 %v2418
        %2785 = vmatprep.subr.mxu0 0.0
        %2786 = vmatpush1.msra.mxu0 %v2419
        %2787 = vmatprep.mubr.f32.mxu0 %v2598
        %2788 = vmatmul.mubr.f32.gmra.mrb[0].mxu0 %v2594
        %v2789 = vpop.f32.mrb[0].mxu0
        %v2790 = vadd.f32 %v2720, %v2789
        %v2791 = vpop.f32.mrb[0].mxu0
        %2792 = vdwg.mxu0
        %2793 = vmatprep.subr.mxu0 0.0
        %2794 = vmatpush1.msra.mxu0 %v2420
        %2795 = vmatprep.subr.mxu0 0.0
        %2796 = vmatpush1.msra.mxu0 %v2421
        %2797 = vmatprep.subr.mxu0 0.0
        %2798 = vmatpush1.msra.mxu0 %v2422
        %2799 = vmatprep.subr.mxu0 0.0
        %2800 = vmatpush1.msra.mxu0 %v2423
        %2801 = vmatprep.subr.mxu0 0.0
        %2802 = vmatpush1.msra.mxu0 %v2424
        %2803 = vmatprep.subr.mxu0 0.0
        %2804 = vmatpush1.msra.mxu0 %v2425
        %2805 = vmatprep.subr.mxu0 0.0
        %2806 = vmatpush1.msra.mxu0 %v2426
        %2807 = vmatprep.subr.mxu0 0.0
        %2808 = vmatpush1.msra.mxu0 %v2427
        %2809 = vmatprep.subr.mxu0 0.0
        %2810 = vmatpush1.msra.mxu0 %v2428
        %2811 = vmatprep.subr.mxu0 0.0
        %2812 = vmatpush1.msra.mxu0 %v2429
        %2813 = vmatprep.subr.mxu0 0.0
        %2814 = vmatpush1.msra.mxu0 %v2430
        %2815 = vmatprep.subr.mxu0 0.0
        %2816 = vmatpush1.msra.mxu0 %v2431
        %2817 = vmatprep.subr.mxu0 0.0
        %2818 = vmatpush1.msra.mxu0 %v2432
        %2819 = vmatprep.subr.mxu0 0.0
        %2820 = vmatpush1.msra.mxu0 %v2433
        %2821 = vmatprep.subr.mxu0 0.0
        %2822 = vmatpush1.msra.mxu0 %v2434
        %2823 = vmatprep.subr.mxu0 0.0
        %2824 = vmatpush1.msra.mxu0 %v2435
        %2825 = vmatprep.subr.mxu0 0.0
        %2826 = vmatpush1.msra.mxu0 %v2436
        %2827 = vmatprep.subr.mxu0 0.0
        %2828 = vmatpush1.msra.mxu0 %v2437
        %2829 = vmatprep.subr.mxu0 0.0
        %2830 = vmatpush1.msra.mxu0 %v2438
        %2831 = vmatprep.subr.mxu0 0.0
        %2832 = vmatpush1.msra.mxu0 %v2439
        %2833 = vmatprep.subr.mxu0 0.0
        %2834 = vmatpush1.msra.mxu0 %v2440
        %2835 = vmatprep.subr.mxu0 0.0
        %2836 = vmatpush1.msra.mxu0 %v2441
        %2837 = vmatprep.subr.mxu0 0.0
        %2838 = vmatpush1.msra.mxu0 %v2442
        %2839 = vmatprep.subr.mxu0 0.0
        %2840 = vmatpush1.msra.mxu0 %v2443
        %2841 = vmatprep.subr.mxu0 0.0
        %2842 = vmatpush1.msra.mxu0 %v2444
        %2843 = vmatprep.subr.mxu0 0.0
        %2844 = vmatpush1.msra.mxu0 %v2445
        %2845 = vmatprep.subr.mxu0 0.0
        %2846 = vmatpush1.msra.mxu0 %v2446
        %2847 = vmatprep.subr.mxu0 0.0
        %2848 = vmatpush1.msra.mxu0 %v2447
        %2849 = vmatprep.subr.mxu0 0.0
        %2850 = vmatpush1.msra.mxu0 %v2448
        %2851 = vmatprep.subr.mxu0 0.0
        %2852 = vmatpush1.msra.mxu0 %v2449
        %2853 = vmatprep.subr.mxu0 0.0
        %2854 = vmatpush1.msra.mxu0 %v2450
        %2855 = vmatprep.subr.mxu0 0.0
        %2856 = vmatpush1.msra.mxu0 %v2451
        %2857 = vmatprep.mubr.f32.mxu0 %v2606
        %2858 = vmatmul.mubr.f32.gmra.mrb[0].mxu0 %v2602
        %v2859 = vpop.f32.mrb[0].mxu0
        %v2860 = vadd.f32 %v2790, %v2859
        %v2861 = vpop.f32.mrb[0].mxu0
        %2862 = vdwg.mxu0
        %2863 = vmatprep.subr.mxu0 0.0
        %2864 = vmatpush1.msra.mxu0 %v2452
        %2865 = vmatprep.subr.mxu0 0.0
        %2866 = vmatpush1.msra.mxu0 %v2453
        %2867 = vmatprep.subr.mxu0 0.0
        %2868 = vmatpush1.msra.mxu0 %v2454
        %2869 = vmatprep.subr.mxu0 0.0
        %2870 = vmatpush1.msra.mxu0 %v2455
        %2871 = vmatprep.subr.mxu0 0.0
        %2872 = vmatpush1.msra.mxu0 %v2456
        %2873 = vmatprep.subr.mxu0 0.0
        %2874 = vmatpush1.msra.mxu0 %v2457
        %2875 = vmatprep.subr.mxu0 0.0
        %2876 = vmatpush1.msra.mxu0 %v2458
        %2877 = vmatprep.subr.mxu0 0.0
        %2878 = vmatpush1.msra.mxu0 %v2459
        %2879 = vmatprep.subr.mxu0 0.0
        %2880 = vmatpush1.msra.mxu0 %v2460
        %2881 = vmatprep.subr.mxu0 0.0
        %2882 = vmatpush1.msra.mxu0 %v2461
        %2883 = vmatprep.subr.mxu0 0.0
        %2884 = vmatpush1.msra.mxu0 %v2462
        %2885 = vmatprep.subr.mxu0 0.0
        %2886 = vmatpush1.msra.mxu0 %v2463
        %2887 = vmatprep.subr.mxu0 0.0
        %2888 = vmatpush1.msra.mxu0 %v2464
        %2889 = vmatprep.subr.mxu0 0.0
        %2890 = vmatpush1.msra.mxu0 %v2465
        %2891 = vmatprep.subr.mxu0 0.0
        %2892 = vmatpush1.msra.mxu0 %v2466
        %2893 = vmatprep.subr.mxu0 0.0
        %2894 = vmatpush1.msra.mxu0 %v2467
        %2895 = vmatprep.subr.mxu0 0.0
        %2896 = vmatpush1.msra.mxu0 %v2468
        %2897 = vmatprep.subr.mxu0 0.0
        %2898 = vmatpush1.msra.mxu0 %v2469
        %2899 = vmatprep.subr.mxu0 0.0
        %2900 = vmatpush1.msra.mxu0 %v2470
        %2901 = vmatprep.subr.mxu0 0.0
        %2902 = vmatpush1.msra.mxu0 %v2471
        %2903 = vmatprep.subr.mxu0 0.0
        %2904 = vmatpush1.msra.mxu0 %v2472
        %2905 = vmatprep.subr.mxu0 0.0
        %2906 = vmatpush1.msra.mxu0 %v2473
        %2907 = vmatprep.subr.mxu0 0.0
        %2908 = vmatpush1.msra.mxu0 %v2474
        %2909 = vmatprep.subr.mxu0 0.0
        %2910 = vmatpush1.msra.mxu0 %v2475
        %2911 = vmatprep.subr.mxu0 0.0
        %2912 = vmatpush1.msra.mxu0 %v2476
        %2913 = vmatprep.subr.mxu0 0.0
        %2914 = vmatpush1.msra.mxu0 %v2477
        %2915 = vmatprep.subr.mxu0 0.0
        %2916 = vmatpush1.msra.mxu0 %v2478
        %2917 = vmatprep.subr.mxu0 0.0
        %2918 = vmatpush1.msra.mxu0 %v2479
        %2919 = vmatprep.subr.mxu0 0.0
        %2920 = vmatpush1.msra.mxu0 %v2480
        %2921 = vmatprep.subr.mxu0 0.0
        %2922 = vmatpush1.msra.mxu0 %v2481
        %2923 = vmatprep.subr.mxu0 0.0
        %2924 = vmatpush1.msra.mxu0 %v2482
        %2925 = vmatprep.subr.mxu0 0.0
        %2926 = vmatpush1.msra.mxu0 %v2483
        %2927 = vmatprep.mubr.f32.mxu0 %v2614
        %2928 = vmatmul.mubr.f32.gmra.mrb[0].mxu0 %v2610
        %v2929 = vpop.f32.mrb[0].mxu0
        %v2930 = vadd.f32 %v2860, %v2929
        %v2931 = vpop.f32.mrb[0].mxu0
        %2932 = vdwg.mxu0
        %2933 = vmatprep.subr.mxu0 0.0
        %2934 = vmatpush1.msra.mxu0 %v2484
        %2935 = vmatprep.subr.mxu0 0.0
        %2936 = vmatpush1.msra.mxu0 %v2485
        %2937 = vmatprep.subr.mxu0 0.0
        %2938 = vmatpush1.msra.mxu0 %v2486
        %2939 = vmatprep.subr.mxu0 0.0
        %2940 = vmatpush1.msra.mxu0 %v2487
        %2941 = vmatprep.subr.mxu0 0.0
        %2942 = vmatpush1.msra.mxu0 %v2488
        %2943 = vmatprep.subr.mxu0 0.0
        %2944 = vmatpush1.msra.mxu0 %v2489
        %2945 = vmatprep.subr.mxu0 0.0
        %2946 = vmatpush1.msra.mxu0 %v2490
        %2947 = vmatprep.subr.mxu0 0.0
        %2948 = vmatpush1.msra.mxu0 %v2491
        %2949 = vmatprep.subr.mxu0 0.0
        %2950 = vmatpush1.msra.mxu0 %v2492
        %2951 = vmatprep.subr.mxu0 0.0
        %2952 = vmatpush1.msra.mxu0 %v2493
        %2953 = vmatprep.subr.mxu0 0.0
        %2954 = vmatpush1.msra.mxu0 %v2494
        %2955 = vmatprep.subr.mxu0 0.0
        %2956 = vmatpush1.msra.mxu0 %v2495
        %2957 = vmatprep.subr.mxu0 0.0
        %2958 = vmatpush1.msra.mxu0 %v2496
        %2959 = vmatprep.subr.mxu0 0.0
        %2960 = vmatpush1.msra.mxu0 %v2497
        %2961 = vmatprep.subr.mxu0 0.0
        %2962 = vmatpush1.msra.mxu0 %v2498
        %2963 = vmatprep.subr.mxu0 0.0
        %2964 = vmatpush1.msra.mxu0 %v2499
        %2965 = vmatprep.subr.mxu0 0.0
        %2966 = vmatpush1.msra.mxu0 %v2500
        %2967 = vmatprep.subr.mxu0 0.0
        %2968 = vmatpush1.msra.mxu0 %v2501
        %2969 = vmatprep.subr.mxu0 0.0
        %2970 = vmatpush1.msra.mxu0 %v2502
        %2971 = vmatprep.subr.mxu0 0.0
        %2972 = vmatpush1.msra.mxu0 %v2503
        %2973 = vmatprep.subr.mxu0 0.0
        %2974 = vmatpush1.msra.mxu0 %v2504
        %2975 = vmatprep.subr.mxu0 0.0
        %2976 = vmatpush1.msra.mxu0 %v2505
        %2977 = vmatprep.subr.mxu0 0.0
        %2978 = vmatpush1.msra.mxu0 %v2506
        %2979 = vmatprep.subr.mxu0 0.0
        %2980 = vmatpush1.msra.mxu0 %v2507
        %2981 = vmatprep.subr.mxu0 0.0
        %2982 = vmatpush1.msra.mxu0 %v2508
        %2983 = vmatprep.subr.mxu0 0.0
        %2984 = vmatpush1.msra.mxu0 %v2509
        %2985 = vmatprep.subr.mxu0 0.0
        %2986 = vmatpush1.msra.mxu0 %v2510
        %2987 = vmatprep.subr.mxu0 0.0
        %2988 = vmatpush1.msra.mxu0 %v2511
        %2989 = vmatprep.subr.mxu0 0.0
        %2990 = vmatpush1.msra.mxu0 %v2512
        %2991 = vmatprep.subr.mxu0 0.0
        %2992 = vmatpush1.msra.mxu0 %v2513
        %2993 = vmatprep.subr.mxu0 0.0
        %2994 = vmatpush1.msra.mxu0 %v2514
        %2995 = vmatprep.subr.mxu0 0.0
        %2996 = vmatpush1.msra.mxu0 %v2515
        %2997 = vmatprep.mubr.f32.mxu0 %v2622
        %2998 = vmatmul.mubr.f32.gmra.mrb[0].mxu0 %v2618
        %v2999 = vpop.f32.mrb[0].mxu0
        %v3000 = vadd.f32 %v2930, %v2999
        %v3001 = vpop.f32.mrb[0].mxu0
        %3002 = vdwg.mxu0
        %3003 = vmatprep.subr.mxu0 0.0
        %3004 = vmatpush1.msra.mxu0 %v2516
        %3005 = vmatprep.subr.mxu0 0.0
        %3006 = vmatpush1.msra.mxu0 %v2517
        %3007 = vmatprep.subr.mxu0 0.0
        %3008 = vmatpush1.msra.mxu0 %v2518
        %3009 = vmatprep.subr.mxu0 0.0
        %3010 = vmatpush1.msra.mxu0 %v2519
        %3011 = vmatprep.subr.mxu0 0.0
        %3012 = vmatpush1.msra.mxu0 %v2520
        %3013 = vmatprep.subr.mxu0 0.0
        %3014 = vmatpush1.msra.mxu0 %v2521
        %3015 = vmatprep.subr.mxu0 0.0
        %3016 = vmatpush1.msra.mxu0 %v2522
        %3017 = vmatprep.subr.mxu0 0.0
        %3018 = vmatpush1.msra.mxu0 %v2523
        %3019 = vmatprep.subr.mxu0 0.0
        %3020 = vmatpush1.msra.mxu0 %v2524
        %3021 = vmatprep.subr.mxu0 0.0
        %3022 = vmatpush1.msra.mxu0 %v2525
        %3023 = vmatprep.subr.mxu0 0.0
        %3024 = vmatpush1.msra.mxu0 %v2526
        %3025 = vmatprep.subr.mxu0 0.0
        %3026 = vmatpush1.msra.mxu0 %v2527
        %3027 = vmatprep.subr.mxu0 0.0
        %3028 = vmatpush1.msra.mxu0 %v2528
        %3029 = vmatprep.subr.mxu0 0.0
        %3030 = vmatpush1.msra.mxu0 %v2529
        %3031 = vmatprep.subr.mxu0 0.0
        %3032 = vmatpush1.msra.mxu0 %v2530
        %3033 = vmatprep.subr.mxu0 0.0
        %3034 = vmatpush1.msra.mxu0 %v2531
        %3035 = vmatprep.subr.mxu0 0.0
        %3036 = vmatpush1.msra.mxu0 %v2532
        %3037 = vmatprep.subr.mxu0 0.0
        %3038 = vmatpush1.msra.mxu0 %v2533
        %3039 = vmatprep.subr.mxu0 0.0
        %3040 = vmatpush1.msra.mxu0 %v2534
        %3041 = vmatprep.subr.mxu0 0.0
        %3042 = vmatpush1.msra.mxu0 %v2535
        %3043 = vmatprep.subr.mxu0 0.0
        %3044 = vmatpush1.msra.mxu0 %v2536
        %3045 = vmatprep.subr.mxu0 0.0
        %3046 = vmatpush1.msra.mxu0 %v2537
        %3047 = vmatprep.subr.mxu0 0.0
        %3048 = vmatpush1.msra.mxu0 %v2538
        %3049 = vmatprep.subr.mxu0 0.0
        %3050 = vmatpush1.msra.mxu0 %v2539
        %3051 = vmatprep.subr.mxu0 0.0
        %3052 = vmatpush1.msra.mxu0 %v2540
        %3053 = vmatprep.subr.mxu0 0.0
        %3054 = vmatpush1.msra.mxu0 %v2541
        %3055 = vmatprep.subr.mxu0 0.0
        %3056 = vmatpush1.msra.mxu0 %v2542
        %3057 = vmatprep.subr.mxu0 0.0
        %3058 = vmatpush1.msra.mxu0 %v2543
        %3059 = vmatprep.subr.mxu0 0.0
        %3060 = vmatpush1.msra.mxu0 %v2544
        %3061 = vmatprep.subr.mxu0 0.0
        %3062 = vmatpush1.msra.mxu0 %v2545
        %3063 = vmatprep.subr.mxu0 0.0
        %3064 = vmatpush1.msra.mxu0 %v2546
        %3065 = vmatprep.subr.mxu0 0.0
        %3066 = vmatpush1.msra.mxu0 %v2547
        %3067 = vmatprep.mubr.f32.mxu0 %v2630
        %3068 = vmatmul.mubr.f32.gmra.mrb[0].mxu0 %v2626
        %v3069 = vpop.f32.mrb[0].mxu0
        %v3070 = vadd.f32 %v3000, %v3069
        %v3071 = vpop.f32.mrb[0].mxu0
        %3072 = vdwg.mxu0
        %3073 = vmatprep.subr.mxu0 0.0
        %3074 = vmatpush1.msra.mxu0 %v2548
        %3075 = vmatprep.subr.mxu0 0.0
        %3076 = vmatpush1.msra.mxu0 %v2549
        %3077 = vmatprep.subr.mxu0 0.0
        %3078 = vmatpush1.msra.mxu0 %v2550
        %3079 = vmatprep.subr.mxu0 0.0
        %3080 = vmatpush1.msra.mxu0 %v2551
        %3081 = vmatprep.subr.mxu0 0.0
        %3082 = vmatpush1.msra.mxu0 %v2552
        %3083 = vmatprep.subr.mxu0 0.0
        %3084 = vmatpush1.msra.mxu0 %v2553
        %3085 = vmatprep.subr.mxu0 0.0
        %3086 = vmatpush1.msra.mxu0 %v2554
        %3087 = vmatprep.subr.mxu0 0.0
        %3088 = vmatpush1.msra.mxu0 %v2555
        %3089 = vmatprep.subr.mxu0 0.0
        %3090 = vmatpush1.msra.mxu0 %v2556
        %3091 = vmatprep.subr.mxu0 0.0
        %3092 = vmatpush1.msra.mxu0 %v2557
        %3093 = vmatprep.subr.mxu0 0.0
        %3094 = vmatpush1.msra.mxu0 %v2558
        %3095 = vmatprep.subr.mxu0 0.0
        %3096 = vmatpush1.msra.mxu0 %v2559
        %3097 = vmatprep.subr.mxu0 0.0
        %3098 = vmatpush1.msra.mxu0 %v2560
        %3099 = vmatprep.subr.mxu0 0.0
        %3100 = vmatpush1.msra.mxu0 %v2561
        %3101 = vmatprep.subr.mxu0 0.0
        %3102 = vmatpush1.msra.mxu0 %v2562
        %3103 = vmatprep.subr.mxu0 0.0
        %3104 = vmatpush1.msra.mxu0 %v2563
        %3105 = vmatprep.subr.mxu0 0.0
        %3106 = vmatpush1.msra.mxu0 %v2564
        %3107 = vmatprep.subr.mxu0 0.0
        %3108 = vmatpush1.msra.mxu0 %v2565
        %3109 = vmatprep.subr.mxu0 0.0
        %3110 = vmatpush1.msra.mxu0 %v2566
        %3111 = vmatprep.subr.mxu0 0.0
        %3112 = vmatpush1.msra.mxu0 %v2567
        %3113 = vmatprep.subr.mxu0 0.0
        %3114 = vmatpush1.msra.mxu0 %v2568
        %3115 = vmatprep.subr.mxu0 0.0
        %3116 = vmatpush1.msra.mxu0 %v2569
        %3117 = vmatprep.subr.mxu0 0.0
        %3118 = vmatpush1.msra.mxu0 %v2570
        %3119 = vmatprep.subr.mxu0 0.0
        %3120 = vmatpush1.msra.mxu0 %v2571
        %3121 = vmatprep.subr.mxu0 0.0
        %3122 = vmatpush1.msra.mxu0 %v2572
        %3123 = vmatprep.subr.mxu0 0.0
        %3124 = vmatpush1.msra.mxu0 %v2573
        %3125 = vmatprep.subr.mxu0 0.0
        %3126 = vmatpush1.msra.mxu0 %v2574
        %3127 = vmatprep.subr.mxu0 0.0
        %3128 = vmatpush1.msra.mxu0 %v2575
        %3129 = vmatprep.subr.mxu0 0.0
        %3130 = vmatpush1.msra.mxu0 %v2576
        %3131 = vmatprep.subr.mxu0 0.0
        %3132 = vmatpush1.msra.mxu0 %v2577
        %3133 = vmatprep.subr.mxu0 0.0
        %3134 = vmatpush1.msra.mxu0 %v2578
        %3135 = vmatprep.subr.mxu0 0.0
        %3136 = vmatpush1.msra.mxu0 %v2579
        %3137 = vmatprep.mubr.f32.mxu0 %v2638
        %3138 = vmatmul.mubr.f32.gmra.mrb[0].mxu0 %v2634
        %v3139 = vpop.f32.mrb[0].mxu0
        %v3140 = vadd.f32 %v3070, %v3139
        %v3141 = vpop.f32.mrb[0].mxu0
        %3142 = vdwg.mxu0
        %3143 = vst [vmem:[%s302] sm:$0x1] %v3140
      $region56: #{efficientnet_forward.1} parent=47 // pred_fallthru
        _
      %p3144 = scmp.lt.s32.totalorder %s22, 1
      %s3145 = scalar_select %p3144, %s22, 1
      %s3146 = scalar_lea.vmem %s7, %s3145
      // Predicated region
      $region57: #{efficientnet_forward.1} parent=47 // pred_check
        %p3147 = pneg %p202
      $region58: #{efficientnet_forward.1} parent=47 // pred_check_branch
        %3149 = sbr.rel (%p3147) target = $region60
      $region59: #{efficientnet_forward.1} parent=47 // pred_region
        _
      $region60: #{efficientnet_forward.1} parent=47 // pred_fallthru
        _
    $region48: #{efficientnet_forward.1} parent=5 // pred_fallthru
      _
    %p3150 = scmp.le.s32.totalorder 2, %s13
    // Predicated region
    $region61: #{efficientnet_forward.1} parent=5 // pred_check
      %p3151 = pneg %p3150
    $region62: #{efficientnet_forward.1} parent=5 // pred_check_branch
      %3153 = sbr.rel (%p3151) target = $region64
    $region63: #{efficientnet_forward.1} parent=5 // pred_region
      %s3154 = ssub.s32 %s13, 2
      // Predicated region
      $region65: #{efficientnet_forward.1} parent=63 // pred_check
        %p3155 = pneg %p208
      $region66: #{efficientnet_forward.1} parent=63 // pred_check_branch
        %3157 = sbr.rel (%p3155) target = $region68
      $region67: #{efficientnet_forward.1} parent=63 // pred_region
        %p3158 = scmp.lt.s32.totalorder %s24, 1
        %s3159 = scalar_select %p3158, %s24, 1
        %s3160 = scalar_lea.vmem %s7, %s3159
      $region68: #{efficientnet_forward.1} parent=63 // pred_fallthru
        _
    $region64: #{efficientnet_forward.1} parent=5 // pred_fallthru
      _
  $region6: #{efficientnet_forward.1} parent=0 // loop_footer
    %s17 = sadd.s32 1, %s13
  $region7: #{efficientnet_forward.1} parent=0 // loop_footer_branch
    %12 = sbr.rel target = $region3
  $region8: #{efficientnet_forward.1} parent=0 // loop_exit
    _

</llo_original>
